<compile_context>
chip_gen: v5e
topology: v5e:2x2
jax: 0.10.0
libtpu: 0.0.40
codegen_flags: <defaults>
</compile_context>

<pallas_src>
import math
from functools import partial

import jax
import jax.numpy as jnp
from jax import lax
from jax.experimental import pallas as pl
from jax.experimental.pallas import tpu as pltpu


def _swin_attn_kernel(x_ref, wqkv_ref, bqkv_ref, wo_ref, bo_ref, g_ref, b_ref,
                      o_ref, *, dim, num_heads, wb, wsz, mm_dtype):
    """One block of `wb` windows: QKV -> per-head attention -> out-proj -> +res -> LN."""
    C = dim
    H = num_heads
    D = C // H
    T = wb * wsz

    # x block arrives channels-first: (C, T).  One small transpose to token-major.
    x_cn = x_ref[0]                                   # (C, T) f32
    x_nc = x_cn.T                                     # (T, C) f32

    # Fused QKV projection.  The 1/sqrt(D) scale is already folded into the Q
    # columns of wqkv/bqkv by the wrapper; bf16 MXU inputs, f32 accumulation.
    qkv = jnp.dot(x_nc.astype(mm_dtype), wqkv_ref[...],
                  preferred_element_type=jnp.float32) + bqkv_ref[...]   # (T, 3C) f32
    # Sublane split into windows; single cast to the matmul dtype for q/k/v.
    qkv = qkv.reshape(wb, wsz, 3 * C).astype(mm_dtype)                  # (wb, W, 3C)

    q = qkv[:, :, 0 * C:1 * C]
    k = qkv[:, :, 1 * C:2 * C]
    v = qkv[:, :, 2 * C:3 * C]

    # Per-head scaled dot-product attention, batched over all wb windows of the
    # block.  H is unrolled (single-batch-dim einsums lower cleanly on Mosaic).
    head_outs = []
    for h in range(H):
        sl = slice(h * D, (h + 1) * D)
        s = jnp.einsum('bqd,bkd->bqk', q[:, :, sl], k[:, :, sl],
                       preferred_element_type=jnp.float32)              # (wb, W, W) f32
        s = s - jnp.max(s, axis=-1, keepdims=True)
        p = jnp.exp(s)
        p = p * pl.reciprocal(jnp.sum(p, axis=-1, keepdims=True), approx=True)
        head_outs.append(jnp.einsum('bqk,bkd->bqd', p.astype(mm_dtype), v[:, :, sl],
                                    preferred_element_type=jnp.float32))
    attn = jnp.concatenate(head_outs, axis=-1).reshape(T, C)            # (T, C) f32

    # Output projection + residual (residual kept in f32).
    out = jnp.dot(attn.astype(mm_dtype), wo_ref[...],
                  preferred_element_type=jnp.float32) + bo_ref[...]
    y = out + x_nc

    # LayerNorm over the channel dim (biased variance, eps=1e-5, like PyTorch).
    mean = jnp.mean(y, axis=-1, keepdims=True)
    var = jnp.mean((y - mean) ** 2, axis=-1, keepdims=True)
    y = (y - mean) * lax.rsqrt(var + 1e-5)
    y = y * g_ref[...] + b_ref[...]

    # Back to channels-first; token (lane) dim is a multiple of 128 -> dense stores.
    o_ref[0] = y.T.astype(o_ref.dtype)


def swin_attention_1d(x, params, *, window_size=16, num_heads=4,
                      windows_per_block=32, matmul_dtype=jnp.bfloat16):
    """x: [B, C, N] float32 -> [B, C, N] float32 (matches the PyTorch module).

    bf16 MXU inputs + f32 accumulation are the fast path on all TPU
    generations (v5e/v6e/v7x); pass matmul_dtype=jnp.float32 only for
    strict-parity debugging.  `windows_per_block` sets the max tokens per grid
    step (sweep up to 64 on v5e/v6e's 128 MiB VMEM; 16-32 on v7x's 64 MiB).
    """
    B, C, N = x.shape
    W = window_size
    assert C % num_heads == 0, "dim must be divisible by num_heads"
    D = C // num_heads

    # Token-block granularity: lcm(W, 128) keeps every block a whole number of
    # windows AND a multiple of 128 lanes (dense, unmasked stores).
    g = W * 128 // math.gcd(W, 128)
    m = -(-N // g)                                  # g-token groups needed (ceil)
    max_c = max(1, (windows_per_block * W) // g)    # max groups per grid step
    # Choose groups-per-block to (1) minimize tail-padding waste, (2) maximize
    # the block size -- avoids padding N up to a full windows_per_block*W.
    best_c, best_waste = 1, None
    for c in range(1, max_c + 1):
        waste = -(-m // c) * c - m
        if best_waste is None or waste < best_waste or \
                (waste == best_waste and c > best_c):
            best_c, best_waste = c, waste
    block_tokens = best_c * g
    n_pad = -(-m // best_c) * best_c * g
    n_blocks = n_pad // block_tokens
    wb = block_tokens // W

    xp = x if n_pad == N else jnp.pad(x, ((0, 0), (0, 0), (0, n_pad - N)))

    # Fold the 1/sqrt(D) attention scale into the Q rows of the in-projection,
    # then pre-transpose and pre-cast the weights once (no in-kernel .T).
    scale_col = jnp.concatenate([
        jnp.full((C,), 1.0 / math.sqrt(D), jnp.float32),
        jnp.ones((2 * C,), jnp.float32)])
    wqkv_t = (params["in_proj_weight"] * scale_col[:, None]).T.astype(matmul_dtype)  # (C, 3C)
    bqkv = (params["in_proj_bias"] * scale_col).reshape(1, 3 * C).astype(jnp.float32)
    wo_t = params["out_proj_weight"].T.astype(matmul_dtype)                          # (C, C)
    bo = params["out_proj_bias"].reshape(1, C).astype(jnp.float32)
    gamma = params["ln_weight"].reshape(1, C).astype(jnp.float32)
    beta = params["ln_bias"].reshape(1, C).astype(jnp.float32)

    # Cost estimate (QKV + out-proj + attention matmuls; exp/recip/rsqrt).
    tokens = B * n_pad
    w_itemsize = jnp.dtype(matmul_dtype).itemsize
    weight_bytes = (3 * C * C + C * C) * w_itemsize + 7 * C * 4
    cost = pl.CostEstimate(
        flops=int(tokens * (2 * C * 3 * C + 2 * C * C + 4 * W * C)),
        transcendentals=int(tokens * (num_heads * W + num_heads + 1)),
        bytes_accessed=int(2 * B * C * n_pad * 4 + weight_bytes))

    # VMEM budget: double-buffered x/out blocks + double-buffered weights
    # (grid-invariant; a Buffered(1) pipeline_mode would halve this on v7x
    # large-C configs) + live f32/bf16 intermediates.  Generous headroom,
    # capped well under physical VMEM on every generation.
    xblock_bytes = C * block_tokens * 4
    interm_bytes = block_tokens * 3 * C * (4 + w_itemsize) + 6 * block_tokens * C * 4
    footprint = 4 * xblock_bytes + 2 * weight_bytes + interm_bytes
    vmem_limit = int(min(96 * 2 ** 20, max(32 * 2 ** 20, 3 * footprint)))

    kernel = partial(_swin_attn_kernel, dim=C, num_heads=num_heads,
                     wb=wb, wsz=W, mm_dtype=matmul_dtype)

    y = pl.pallas_call(
        kernel,
        out_shape=jax.ShapeDtypeStruct((B, C, n_pad), jnp.float32),
        grid_spec=pltpu.PrefetchScalarGridSpec(
            num_scalar_prefetch=0,
            grid=(B, n_blocks),
            in_specs=[
                pl.BlockSpec((1, C, block_tokens), lambda b, t: (b, 0, t)),  # x block
                pl.BlockSpec((C, 3 * C), lambda b, t: (0, 0)),               # Wqkv^T (scaled)
                pl.BlockSpec((1, 3 * C), lambda b, t: (0, 0)),               # bqkv (scaled)
                pl.BlockSpec((C, C), lambda b, t: (0, 0)),                   # Wo^T
                pl.BlockSpec((1, C), lambda b, t: (0, 0)),                   # bo
                pl.BlockSpec((1, C), lambda b, t: (0, 0)),                   # LN gamma
                pl.BlockSpec((1, C), lambda b, t: (0, 0)),                   # LN beta
            ],
            out_specs=pl.BlockSpec((1, C, block_tokens), lambda b, t: (b, 0, t)),
        ),
        compiler_params=pltpu.CompilerParams(
            dimension_semantics=("parallel", "parallel"),
            vmem_limit_bytes=vmem_limit),
        cost_estimate=cost,
    )(xp, wqkv_t, bqkv, wo_t, bo, gamma, beta)

    if n_pad != N:
        y = y[:, :, :N]
    return y


def make_params(dim, key):
    """Deterministic init (shapes match nn.MultiheadAttention + LayerNorm)."""
    k1, k2, k3, k4 = jax.random.split(key, 4)
    s = 1.0 / math.sqrt(dim)
    return {
        "in_proj_weight": jax.random.uniform(k1, (3 * dim, dim), jnp.float32, -s, s),
        "in_proj_bias": jax.random.uniform(k2, (3 * dim,), jnp.float32, -s, s),
        "out_proj_weight": jax.random.uniform(k3, (dim, dim), jnp.float32, -s, s),
        "out_proj_bias": jax.random.uniform(k4, (dim,), jnp.float32, -s, s),
        "ln_weight": jnp.ones((dim,), jnp.float32),
        "ln_bias": jnp.zeros((dim,), jnp.float32),
    }


def _reference(x, params, *, window_size=16, num_heads=4):
    """Pure-JAX f32 reference mirroring the PyTorch module exactly."""
    B, C, N = x.shape
    W = window_size
    D = C // num_heads
    xt = jnp.transpose(x, (0, 2, 1))
    pad = (W - N % W) % W
    if pad:
        xt = jnp.pad(xt, ((0, 0), (0, pad), (0, 0)))
    n_pad = xt.shape[1]
    xw = xt.reshape(B * (n_pad // W), W, C)
    nb = xw.shape[0]
    qkv = xw @ params["in_proj_weight"].T + params["in_proj_bias"]
    q, k, v = qkv[..., :C], qkv[..., C:2 * C], qkv[..., 2 * C:]
    q = q.reshape(nb, W, num_heads, D)
    k = k.reshape(nb, W, num_heads, D)
    v = v.reshape(nb, W, num_heads, D)
    s = jnp.einsum('bqhd,bkhd->bhqk', q, k) * (1.0 / math.sqrt(D))
    p = jax.nn.softmax(s, axis=-1)
    a = jnp.einsum('bhqk,bkhd->bqhd', p, v).reshape(nb, W, C)
    out = a @ params["out_proj_weight"].T + params["out_proj_bias"]
    y = out + xw
    mean = y.mean(-1, keepdims=True)
    var = ((y - mean) ** 2).mean(-1, keepdims=True)
    y = (y - mean) / jnp.sqrt(var + 1e-5) * params["ln_weight"] + params["ln_bias"]
    y = y.reshape(B, n_pad, C)[:, :N, :]
    return jnp.transpose(y, (0, 2, 1))


if __name__ == "__main__":
    # dim=32 (divisible by 4 heads), N=40 so window padding is exercised.
    B, C, N = 2, 32, 40
    window_size, num_heads = 16, 4

    key = jax.random.PRNGKey(0)
    kx, kp = jax.random.split(key)
    x = jax.random.normal(kx, (B, C, N), dtype=jnp.float32)
    params = make_params(C, kp)

    fn = jax.jit(partial(swin_attention_1d, window_size=window_size,
                         num_heads=num_heads))
    out = fn(x, params)
    jax.block_until_ready(out)
    assert out.shape == (B, C, N), out.shape

    ref = _reference(x, params, window_size=window_size, num_heads=num_heads)
    max_err = float(jnp.max(jnp.abs(out - ref)))
    # Tolerance covers bf16 matmul inputs + approx reciprocal (f32 accumulation).
    assert jnp.allclose(out, ref, atol=5e-2, rtol=5e-2), max_err
    print("KERNEL_OK")
</pallas_src>

<mosaic_0001>
module attributes {stable_mosaic.version = 11 : i64} {
  func.func @_swin_attn_kernel(%arg0: i32, %arg1: i32, %arg2: memref<1x32x128xf32, #tpu.memory_space<vmem>>, %arg3: memref<32x96xbf16, #tpu.memory_space<vmem>>, %arg4: memref<1x96xf32, #tpu.memory_space<vmem>>, %arg5: memref<32x32xbf16, #tpu.memory_space<vmem>>, %arg6: memref<1x32xf32, #tpu.memory_space<vmem>>, %arg7: memref<1x32xf32, #tpu.memory_space<vmem>>, %arg8: memref<1x32xf32, #tpu.memory_space<vmem>>, %arg9: memref<1x32x128xf32, #tpu.memory_space<vmem>>) attributes {dimension_semantics = [#tpu.dimension_semantics<parallel>, #tpu.dimension_semantics<parallel>], iteration_bounds = array<i64: 2, 1>, scalar_prefetch = 0 : i64, scratch_operands = 0 : i64, tpu.core_type = #tpu.core_type<tc>, window_params = [{transform_indices = @transform_0, window_bounds = array<i64: 1, 32, 128>}, {pipeline_mode = #tpu.pipeline_mode<synchronous>, transform_indices = @transform_1, window_bounds = array<i64: 32, 96>}, {pipeline_mode = #tpu.pipeline_mode<synchronous>, transform_indices = @transform_2, window_bounds = array<i64: 1, 96>}, {pipeline_mode = #tpu.pipeline_mode<synchronous>, transform_indices = @transform_3, window_bounds = array<i64: 32, 32>}, {pipeline_mode = #tpu.pipeline_mode<synchronous>, transform_indices = @transform_4, window_bounds = array<i64: 1, 32>}, {pipeline_mode = #tpu.pipeline_mode<synchronous>, transform_indices = @transform_5, window_bounds = array<i64: 1, 32>}, {pipeline_mode = #tpu.pipeline_mode<synchronous>, transform_indices = @transform_6, window_bounds = array<i64: 1, 32>}, {transform_indices = @transform_7, window_bounds = array<i64: 1, 32, 128>}]} {
    %c0 = arith.constant 0 : index
    %c0_0 = arith.constant 0 : index
    %c0_1 = arith.constant 0 : index
    %0 = vector.load %arg2[%c0, %c0_0, %c0_1] : memref<1x32x128xf32, #tpu.memory_space<vmem>>, vector<1x32x128xf32>
    %1 = vector.shape_cast %0 : vector<1x32x128xf32> to vector<32x128xf32>
    %2 = tpu.transpose %1, [1, 0] : vector<32x128xf32> -> vector<128x32xf32>
    %3 = arith.truncf %2 : vector<128x32xf32> to vector<128x32xbf16>
    %c0_2 = arith.constant 0 : index
    %c0_3 = arith.constant 0 : index
    %4 = vector.load %arg3[%c0_2, %c0_3] : memref<32x96xbf16, #tpu.memory_space<vmem>>, vector<32x96xbf16>
    %cst = arith.constant dense<0.000000e+00> : vector<128x96xf32>
    %5 = tpu.matmul %3, %4, %cst {dimension_numbers = #tpu.dot_dimension_numbers<[1], [0], [0], [1], [0, 0, 1, 1], [], []>} : vector<128x32xbf16>, vector<32x96xbf16>, vector<128x96xf32> -> vector<128x96xf32>
    %c0_4 = arith.constant 0 : index
    %c0_5 = arith.constant 0 : index
    %6 = vector.load %arg4[%c0_4, %c0_5] : memref<1x96xf32, #tpu.memory_space<vmem>>, vector<1x96xf32>
    %7 = vector.broadcast %6 : vector<1x96xf32> to vector<128x96xf32>
    %8 = arith.addf %5, %7 : vector<128x96xf32>
    %9 = vector.shape_cast %8 : vector<128x96xf32> to vector<8x16x96xf32>
    %10 = arith.truncf %9 : vector<8x16x96xf32> to vector<8x16x96xbf16>
    %11 = vector.extract_strided_slice %10 {offsets = [0, 0, 0], sizes = [8, 16, 32], strides = [1, 1, 1]} : vector<8x16x96xbf16> to vector<8x16x32xbf16>
    %12 = vector.extract_strided_slice %10 {offsets = [0, 0, 32], sizes = [8, 16, 32], strides = [1, 1, 1]} : vector<8x16x96xbf16> to vector<8x16x32xbf16>
    %13 = vector.extract_strided_slice %10 {offsets = [0, 0, 64], sizes = [8, 16, 32], strides = [1, 1, 1]} : vector<8x16x96xbf16> to vector<8x16x32xbf16>
    %14 = vector.extract_strided_slice %11 {offsets = [0, 0, 0], sizes = [8, 16, 8], strides = [1, 1, 1]} : vector<8x16x32xbf16> to vector<8x16x8xbf16>
    %15 = vector.extract_strided_slice %12 {offsets = [0, 0, 0], sizes = [8, 16, 8], strides = [1, 1, 1]} : vector<8x16x32xbf16> to vector<8x16x8xbf16>
    "tpu.trace_start"() <{level = 10 : i32, message = "bqd,bkd->bqk"}> : () -> ()
    %cst_6 = arith.constant dense<0.000000e+00> : vector<8x16x16xf32>
    %16 = tpu.matmul %14, %15, %cst_6 {dimension_numbers = #tpu.dot_dimension_numbers<[2], [2], [1], [1], [0, 0, 0, 1, 1, 1], [0], [0]>} : vector<8x16x8xbf16>, vector<8x16x8xbf16>, vector<8x16x16xf32> -> vector<8x16x16xf32>
    "tpu.trace_stop"() : () -> ()
    %cst_7 = arith.constant dense<0xFF800000> : vector<8x16xf32>
    %17 = vector.multi_reduction <maximumf>, %16, %cst_7 [2] : vector<8x16x16xf32> to vector<8x16xf32>
    %18 = vector.shape_cast %17 : vector<8x16xf32> to vector<8x16x1xf32>
    %19 = vector.broadcast %18 : vector<8x16x1xf32> to vector<8x16x16xf32>
    %20 = arith.subf %16, %19 : vector<8x16x16xf32>
    %21 = math.exp %20 : vector<8x16x16xf32>
    %cst_8 = arith.constant dense<0.000000e+00> : vector<8x16xf32>
    %22 = vector.multi_reduction <add>, %21, %cst_8 [2] : vector<8x16x16xf32> to vector<8x16xf32>
    %23 = vector.shape_cast %22 : vector<8x16xf32> to vector<8x16x1xf32>
    %24 = tpu.reciprocal %23 {approx = true} : vector<8x16x1xf32> -> vector<8x16x1xf32>
    %25 = vector.broadcast %24 : vector<8x16x1xf32> to vector<8x16x16xf32>
    %26 = arith.mulf %21, %25 : vector<8x16x16xf32>
    %27 = arith.truncf %26 : vector<8x16x16xf32> to vector<8x16x16xbf16>
    %28 = vector.extract_strided_slice %13 {offsets = [0, 0, 0], sizes = [8, 16, 8], strides = [1, 1, 1]} : vector<8x16x32xbf16> to vector<8x16x8xbf16>
    "tpu.trace_start"() <{level = 10 : i32, message = "bqk,bkd->bqd"}> : () -> ()
    %cst_9 = arith.constant dense<0.000000e+00> : vector<8x16x8xf32>
    %29 = tpu.matmul %27, %28, %cst_9 {dimension_numbers = #tpu.dot_dimension_numbers<[2], [1], [1], [2], [0, 0, 0, 1, 1, 2], [0], [0]>} : vector<8x16x16xbf16>, vector<8x16x8xbf16>, vector<8x16x8xf32> -> vector<8x16x8xf32>
    "tpu.trace_stop"() : () -> ()
    %30 = vector.extract_strided_slice %11 {offsets = [0, 0, 8], sizes = [8, 16, 8], strides = [1, 1, 1]} : vector<8x16x32xbf16> to vector<8x16x8xbf16>
    %31 = vector.extract_strided_slice %12 {offsets = [0, 0, 8], sizes = [8, 16, 8], strides = [1, 1, 1]} : vector<8x16x32xbf16> to vector<8x16x8xbf16>
    "tpu.trace_start"() <{level = 10 : i32, message = "bqd,bkd->bqk"}> : () -> ()
    %cst_10 = arith.constant dense<0.000000e+00> : vector<8x16x16xf32>
    %32 = tpu.matmul %30, %31, %cst_10 {dimension_numbers = #tpu.dot_dimension_numbers<[2], [2], [1], [1], [0, 0, 0, 1, 1, 1], [0], [0]>} : vector<8x16x8xbf16>, vector<8x16x8xbf16>, vector<8x16x16xf32> -> vector<8x16x16xf32>
    "tpu.trace_stop"() : () -> ()
    %cst_11 = arith.constant dense<0xFF800000> : vector<8x16xf32>
    %33 = vector.multi_reduction <maximumf>, %32, %cst_11 [2] : vector<8x16x16xf32> to vector<8x16xf32>
    %34 = vector.shape_cast %33 : vector<8x16xf32> to vector<8x16x1xf32>
    %35 = vector.broadcast %34 : vector<8x16x1xf32> to vector<8x16x16xf32>
    %36 = arith.subf %32, %35 : vector<8x16x16xf32>
    %37 = math.exp %36 : vector<8x16x16xf32>
    %cst_12 = arith.constant dense<0.000000e+00> : vector<8x16xf32>
    %38 = vector.multi_reduction <add>, %37, %cst_12 [2] : vector<8x16x16xf32> to vector<8x16xf32>
    %39 = vector.shape_cast %38 : vector<8x16xf32> to vector<8x16x1xf32>
    %40 = tpu.reciprocal %39 {approx = true} : vector<8x16x1xf32> -> vector<8x16x1xf32>
    %41 = vector.broadcast %40 : vector<8x16x1xf32> to vector<8x16x16xf32>
    %42 = arith.mulf %37, %41 : vector<8x16x16xf32>
    %43 = arith.truncf %42 : vector<8x16x16xf32> to vector<8x16x16xbf16>
    %44 = vector.extract_strided_slice %13 {offsets = [0, 0, 8], sizes = [8, 16, 8], strides = [1, 1, 1]} : vector<8x16x32xbf16> to vector<8x16x8xbf16>
    "tpu.trace_start"() <{level = 10 : i32, message = "bqk,bkd->bqd"}> : () -> ()
    %cst_13 = arith.constant dense<0.000000e+00> : vector<8x16x8xf32>
    %45 = tpu.matmul %43, %44, %cst_13 {dimension_numbers = #tpu.dot_dimension_numbers<[2], [1], [1], [2], [0, 0, 0, 1, 1, 2], [0], [0]>} : vector<8x16x16xbf16>, vector<8x16x8xbf16>, vector<8x16x8xf32> -> vector<8x16x8xf32>
    "tpu.trace_stop"() : () -> ()
    %46 = vector.extract_strided_slice %11 {offsets = [0, 0, 16], sizes = [8, 16, 8], strides = [1, 1, 1]} : vector<8x16x32xbf16> to vector<8x16x8xbf16>
    %47 = vector.extract_strided_slice %12 {offsets = [0, 0, 16], sizes = [8, 16, 8], strides = [1, 1, 1]} : vector<8x16x32xbf16> to vector<8x16x8xbf16>
    "tpu.trace_start"() <{level = 10 : i32, message = "bqd,bkd->bqk"}> : () -> ()
    %cst_14 = arith.constant dense<0.000000e+00> : vector<8x16x16xf32>
    %48 = tpu.matmul %46, %47, %cst_14 {dimension_numbers = #tpu.dot_dimension_numbers<[2], [2], [1], [1], [0, 0, 0, 1, 1, 1], [0], [0]>} : vector<8x16x8xbf16>, vector<8x16x8xbf16>, vector<8x16x16xf32> -> vector<8x16x16xf32>
    "tpu.trace_stop"() : () -> ()
    %cst_15 = arith.constant dense<0xFF800000> : vector<8x16xf32>
    %49 = vector.multi_reduction <maximumf>, %48, %cst_15 [2] : vector<8x16x16xf32> to vector<8x16xf32>
    %50 = vector.shape_cast %49 : vector<8x16xf32> to vector<8x16x1xf32>
    %51 = vector.broadcast %50 : vector<8x16x1xf32> to vector<8x16x16xf32>
    %52 = arith.subf %48, %51 : vector<8x16x16xf32>
    %53 = math.exp %52 : vector<8x16x16xf32>
    %cst_16 = arith.constant dense<0.000000e+00> : vector<8x16xf32>
    %54 = vector.multi_reduction <add>, %53, %cst_16 [2] : vector<8x16x16xf32> to vector<8x16xf32>
    %55 = vector.shape_cast %54 : vector<8x16xf32> to vector<8x16x1xf32>
    %56 = tpu.reciprocal %55 {approx = true} : vector<8x16x1xf32> -> vector<8x16x1xf32>
    %57 = vector.broadcast %56 : vector<8x16x1xf32> to vector<8x16x16xf32>
    %58 = arith.mulf %53, %57 : vector<8x16x16xf32>
    %59 = arith.truncf %58 : vector<8x16x16xf32> to vector<8x16x16xbf16>
    %60 = vector.extract_strided_slice %13 {offsets = [0, 0, 16], sizes = [8, 16, 8], strides = [1, 1, 1]} : vector<8x16x32xbf16> to vector<8x16x8xbf16>
    "tpu.trace_start"() <{level = 10 : i32, message = "bqk,bkd->bqd"}> : () -> ()
    %cst_17 = arith.constant dense<0.000000e+00> : vector<8x16x8xf32>
    %61 = tpu.matmul %59, %60, %cst_17 {dimension_numbers = #tpu.dot_dimension_numbers<[2], [1], [1], [2], [0, 0, 0, 1, 1, 2], [0], [0]>} : vector<8x16x16xbf16>, vector<8x16x8xbf16>, vector<8x16x8xf32> -> vector<8x16x8xf32>
    "tpu.trace_stop"() : () -> ()
    %62 = vector.extract_strided_slice %11 {offsets = [0, 0, 24], sizes = [8, 16, 8], strides = [1, 1, 1]} : vector<8x16x32xbf16> to vector<8x16x8xbf16>
    %63 = vector.extract_strided_slice %12 {offsets = [0, 0, 24], sizes = [8, 16, 8], strides = [1, 1, 1]} : vector<8x16x32xbf16> to vector<8x16x8xbf16>
    "tpu.trace_start"() <{level = 10 : i32, message = "bqd,bkd->bqk"}> : () -> ()
    %cst_18 = arith.constant dense<0.000000e+00> : vector<8x16x16xf32>
    %64 = tpu.matmul %62, %63, %cst_18 {dimension_numbers = #tpu.dot_dimension_numbers<[2], [2], [1], [1], [0, 0, 0, 1, 1, 1], [0], [0]>} : vector<8x16x8xbf16>, vector<8x16x8xbf16>, vector<8x16x16xf32> -> vector<8x16x16xf32>
    "tpu.trace_stop"() : () -> ()
    %cst_19 = arith.constant dense<0xFF800000> : vector<8x16xf32>
    %65 = vector.multi_reduction <maximumf>, %64, %cst_19 [2] : vector<8x16x16xf32> to vector<8x16xf32>
    %66 = vector.shape_cast %65 : vector<8x16xf32> to vector<8x16x1xf32>
    %67 = vector.broadcast %66 : vector<8x16x1xf32> to vector<8x16x16xf32>
    %68 = arith.subf %64, %67 : vector<8x16x16xf32>
    %69 = math.exp %68 : vector<8x16x16xf32>
    %cst_20 = arith.constant dense<0.000000e+00> : vector<8x16xf32>
    %70 = vector.multi_reduction <add>, %69, %cst_20 [2] : vector<8x16x16xf32> to vector<8x16xf32>
    %71 = vector.shape_cast %70 : vector<8x16xf32> to vector<8x16x1xf32>
    %72 = tpu.reciprocal %71 {approx = true} : vector<8x16x1xf32> -> vector<8x16x1xf32>
    %73 = vector.broadcast %72 : vector<8x16x1xf32> to vector<8x16x16xf32>
    %74 = arith.mulf %69, %73 : vector<8x16x16xf32>
    %75 = arith.truncf %74 : vector<8x16x16xf32> to vector<8x16x16xbf16>
    %76 = vector.extract_strided_slice %13 {offsets = [0, 0, 24], sizes = [8, 16, 8], strides = [1, 1, 1]} : vector<8x16x32xbf16> to vector<8x16x8xbf16>
    "tpu.trace_start"() <{level = 10 : i32, message = "bqk,bkd->bqd"}> : () -> ()
    %cst_21 = arith.constant dense<0.000000e+00> : vector<8x16x8xf32>
    %77 = tpu.matmul %75, %76, %cst_21 {dimension_numbers = #tpu.dot_dimension_numbers<[2], [1], [1], [2], [0, 0, 0, 1, 1, 2], [0], [0]>} : vector<8x16x16xbf16>, vector<8x16x8xbf16>, vector<8x16x8xf32> -> vector<8x16x8xf32>
    "tpu.trace_stop"() : () -> ()
    %78 = tpu.concatenate %29, %45, %61, %77 in 2 : vector<8x16x8xf32>, vector<8x16x8xf32>, vector<8x16x8xf32>, vector<8x16x8xf32> -> vector<8x16x32xf32>
    %79 = vector.shape_cast %78 : vector<8x16x32xf32> to vector<128x32xf32>
    %80 = arith.truncf %79 : vector<128x32xf32> to vector<128x32xbf16>
    %c0_22 = arith.constant 0 : index
    %c0_23 = arith.constant 0 : index
    %81 = vector.load %arg5[%c0_22, %c0_23] : memref<32x32xbf16, #tpu.memory_space<vmem>>, vector<32x32xbf16>
    %cst_24 = arith.constant dense<0.000000e+00> : vector<128x32xf32>
    %82 = tpu.matmul %80, %81, %cst_24 {dimension_numbers = #tpu.dot_dimension_numbers<[1], [0], [0], [1], [0, 0, 1, 1], [], []>} : vector<128x32xbf16>, vector<32x32xbf16>, vector<128x32xf32> -> vector<128x32xf32>
    %c0_25 = arith.constant 0 : index
    %c0_26 = arith.constant 0 : index
    %83 = vector.load %arg6[%c0_25, %c0_26] : memref<1x32xf32, #tpu.memory_space<vmem>>, vector<1x32xf32>
    %84 = vector.broadcast %83 : vector<1x32xf32> to vector<128x32xf32>
    %85 = arith.addf %82, %84 : vector<128x32xf32>
    %86 = arith.addf %85, %2 : vector<128x32xf32>
    %cst_27 = arith.constant dense<0.000000e+00> : vector<128xf32>
    %87 = vector.multi_reduction <add>, %86, %cst_27 [1] : vector<128x32xf32> to vector<128xf32>
    %88 = vector.shape_cast %87 : vector<128xf32> to vector<128x1xf32>
    %cst_28 = arith.constant 3.200000e+01 : f32
    %89 = vector.broadcast %cst_28 : f32 to vector<128x1xf32>
    %90 = arith.divf %88, %89 : vector<128x1xf32>
    %91 = vector.broadcast %90 : vector<128x1xf32> to vector<128x32xf32>
    %92 = arith.subf %86, %91 : vector<128x32xf32>
    %93 = arith.mulf %92, %92 : vector<128x32xf32>
    %cst_29 = arith.constant dense<0.000000e+00> : vector<128xf32>
    %94 = vector.multi_reduction <add>, %93, %cst_29 [1] : vector<128x32xf32> to vector<128xf32>
    %95 = vector.shape_cast %94 : vector<128xf32> to vector<128x1xf32>
    %cst_30 = arith.constant 3.200000e+01 : f32
    %96 = vector.broadcast %cst_30 : f32 to vector<128x1xf32>
    %97 = arith.divf %95, %96 : vector<128x1xf32>
    %98 = vector.broadcast %90 : vector<128x1xf32> to vector<128x32xf32>
    %99 = arith.subf %86, %98 : vector<128x32xf32>
    %cst_31 = arith.constant 9.99999974E-6 : f32
    %100 = vector.broadcast %cst_31 : f32 to vector<128x1xf32>
    %101 = arith.addf %97, %100 : vector<128x1xf32>
    %102 = math.rsqrt %101 : vector<128x1xf32>
    %103 = vector.broadcast %102 : vector<128x1xf32> to vector<128x32xf32>
    %104 = arith.mulf %99, %103 : vector<128x32xf32>
    %c0_32 = arith.constant 0 : index
    %c0_33 = arith.constant 0 : index
    %105 = vector.load %arg7[%c0_32, %c0_33] : memref<1x32xf32, #tpu.memory_space<vmem>>, vector<1x32xf32>
    %106 = vector.broadcast %105 : vector<1x32xf32> to vector<128x32xf32>
    %107 = arith.mulf %104, %106 : vector<128x32xf32>
    %c0_34 = arith.constant 0 : index
    %c0_35 = arith.constant 0 : index
    %108 = vector.load %arg8[%c0_34, %c0_35] : memref<1x32xf32, #tpu.memory_space<vmem>>, vector<1x32xf32>
    %109 = vector.broadcast %108 : vector<1x32xf32> to vector<128x32xf32>
    %110 = arith.addf %107, %109 : vector<128x32xf32>
    %111 = tpu.transpose %110, [1, 0] : vector<128x32xf32> -> vector<32x128xf32>
    %c0_36 = arith.constant 0 : index
    %c0_37 = arith.constant 0 : index
    %c0_38 = arith.constant 0 : index
    %112 = vector.load %arg9[%c0_36, %c0_37, %c0_38] : memref<1x32x128xf32, #tpu.memory_space<vmem>>, vector<1x32x128xf32>
    %113 = vector.shape_cast %112 : vector<1x32x128xf32> to vector<32x128xf32>
    %114 = vector.shape_cast %111 : vector<32x128xf32> to vector<1x32x128xf32>
    tpu.vector_store %arg9[%c0_36, %c0_37, %c0_38], %114 {strides = array<i32>} : memref<1x32x128xf32, #tpu.memory_space<vmem>>, vector<1x32x128xf32>,
    return
  }
  func.func @transform_0(%arg0: i32, %arg1: i32) -> (i32, i32, i32) {
    %c0_i32 = arith.constant 0 : i32
    %c0_i32_0 = arith.constant 0 : i32
    return %arg0, %c0_i32, %arg1 : i32, i32, i32
  }
  func.func @transform_1(%arg0: i32, %arg1: i32) -> (i32, i32) {
    %c0_i32 = arith.constant 0 : i32
    %c0_i32_0 = arith.constant 0 : i32
    %c0_i32_1 = arith.constant 0 : i32
    return %c0_i32, %c0_i32_0 : i32, i32
  }
  func.func @transform_2(%arg0: i32, %arg1: i32) -> (i32, i32) {
    %c0_i32 = arith.constant 0 : i32
    %c0_i32_0 = arith.constant 0 : i32
    %c0_i32_1 = arith.constant 0 : i32
    return %c0_i32, %c0_i32_0 : i32, i32
  }
  func.func @transform_3(%arg0: i32, %arg1: i32) -> (i32, i32) {
    %c0_i32 = arith.constant 0 : i32
    %c0_i32_0 = arith.constant 0 : i32
    %c0_i32_1 = arith.constant 0 : i32
    return %c0_i32, %c0_i32_0 : i32, i32
  }
  func.func @transform_4(%arg0: i32, %arg1: i32) -> (i32, i32) {
    %c0_i32 = arith.constant 0 : i32
    %c0_i32_0 = arith.constant 0 : i32
    %c0_i32_1 = arith.constant 0 : i32
    return %c0_i32, %c0_i32_0 : i32, i32
  }
  func.func @transform_5(%arg0: i32, %arg1: i32) -> (i32, i32) {
    %c0_i32 = arith.constant 0 : i32
    %c0_i32_0 = arith.constant 0 : i32
    %c0_i32_1 = arith.constant 0 : i32
    return %c0_i32, %c0_i32_0 : i32, i32
  }
  func.func @transform_6(%arg0: i32, %arg1: i32) -> (i32, i32) {
    %c0_i32 = arith.constant 0 : i32
    %c0_i32_0 = arith.constant 0 : i32
    %c0_i32_1 = arith.constant 0 : i32
    return %c0_i32, %c0_i32_0 : i32, i32
  }
  func.func @transform_7(%arg0: i32, %arg1: i32) -> (i32, i32, i32) {
    %c0_i32 = arith.constant 0 : i32
    %c0_i32_0 = arith.constant 0 : i32
    return %arg0, %c0_i32, %arg1 : i32, i32, i32
  }
}

</mosaic_0001>

<llo_original>
// kernel: swin_attention_1d.1
$region0: #{swin_attention_1d.1}
  #allocation0 [shape = 'u32[]', space=smem, size = 0x4, offset = 0x4, fixed_abs, tag = 'smem constant byte address 0x4 - core index']
  #allocation1 [shape = 'u32[72,128]{1,0:T(1,128)}', space=vmem, size = 0x9000, scoped, tag = 'internal scratch']
  %s0 = inlined_call_operand.vmem [shape: f32[2,32,128], index: 0, kind: input, shape index: {}]
  %s1 = inlined_call_operand.vmem [shape: bf16[32,96], index: 1, kind: input, shape index: {}]
  %s2 = inlined_call_operand.vmem [shape: f32[1,96], index: 2, kind: input, shape index: {}]
  %s3 = inlined_call_operand.vmem [shape: bf16[32,32], index: 3, kind: input, shape index: {}]
  %s4 = inlined_call_operand.vmem [shape: f32[1,32], index: 4, kind: input, shape index: {}]
  %s5 = inlined_call_operand.vmem [shape: f32[1,32], index: 5, kind: input, shape index: {}]
  %s6 = inlined_call_operand.vmem [shape: f32[1,32], index: 6, kind: input, shape index: {}]
  %s7 = inlined_call_operand.hbm [shape: f32[2,32,128], index: 7, kind: output, shape index: {}]
  %s8 = sld [smem:[#allocation0]]
  $region61: #{swin_attention_1d.1} parent=0
    _
  %s10 = ssub.s32 1, %s8
  %s11 = scalar_select 0, %s10, %s8
  $region1: #{swin_attention_1d.1} parent=0
    #allocation2 [shape = 'u8[32768]{0}', space=vmem, size = 0x8000, scoped, tag = 'output window, operand 0']
    #allocation3 [shape = 's32[2]{0}', space=sflag, size = 0x8, scoped, tag = 'scoped memory for swin_attention_1d.1']
    %12 = vsyncpa [#allocation3], 0
    %s13 = scalar_lea.sflag [#allocation3], 1
    %14 = vsyncpa %s13, 0
    loop: start=0, step=1, limit=4
    $region2: #{swin_attention_1d.1} parent=1 // loop_pre_header
      _
    $region3: #{swin_attention_1d.1} parent=1 // loop_header
      %s16 = sphi 0, %s20
      %p17 = scmp.ge.s32.totalorder %s16, 4
      %s23 = sphi 0, %s35
      %s24 = sphi 0, %s31
      %s25 = sphi 0, %s23
      %s26 = sphi 0, %s24
      %s27 = sphi 0, %s25
      %s28 = sphi 0, %s26
      %s40 = sphi 0, %s42
      %s43 = sphi 0, %s40
      %s44 = sphi 0, %s43
      %s60 = sphi 0, %s44
      %s64 = sphi 0, %s64
      %s66 = sphi 0, %s64
      %s67 = sphi 0, %s66
      %s81 = sphi 0, %s67
      %s85 = sphi 0, %s85
      %s87 = sphi 0, %s85
      %s88 = sphi 0, %s87
      %s102 = sphi 0, %s88
      %s106 = sphi 0, %s106
      %s108 = sphi 0, %s106
      %s109 = sphi 0, %s108
      %s123 = sphi 0, %s109
      %s127 = sphi 0, %s127
      %s129 = sphi 0, %s127
      %s130 = sphi 0, %s129
      %s144 = sphi 0, %s130
      %s148 = sphi 0, %s148
      %s150 = sphi 0, %s148
      %s151 = sphi 0, %s150
      %s165 = sphi 0, %s151
      %s169 = sphi 0, %s169
      %s171 = sphi 0, %s169
      %s172 = sphi 0, %s171
      %s186 = sphi 0, %s172
      %s194 = sphi 0, %s196
      %s197 = sphi 0, %s194
      %s198 = sphi 0, %s197
      %s214 = sphi 0, %s198
    $region4: #{swin_attention_1d.1} parent=1 // loop_header_branch
      %19 = sbr.rel (%p17) target = $region8
    $region5: #{swin_attention_1d.1} parent=1 // loop_body
      %s21 = ssub.s32 %s16, 1
      %s22 = ssub.s32 %s16, 2
      %s29 = sadd.s32 1, %s24
      %p30 = scmp.ge.s32.totalorder %s29, 1
      %s31 = scalar_select %p30, 0, %s29
      %s32 = sadd.s32 1, %s23
      %s33 = scalar_select %p30, %s32, %s23
      %p34 = scmp.ge.s32.totalorder %s33, 2
      %s35 = scalar_select %p34, 0, %s33
      %s36 = ssub.s32 %s23, %s35
      %s37 = ssub.s32 %s24, %s31
      %s38 = sor.u32 %s36, %s37
      %p39 = scmp.eq.s32.totalorder %s38, 0
      %s41 = sadd.s32 %s40, 1
      %s42 = scalar_select %p39, %s40, %s41
      %p45 = pneg %p39
      %p46 = scmp.eq.s32.totalorder %s16, 1
      %p47 = por %p45, %p46
      %p48 = scmp.ne.s32.totalorder %s40, %s43
      %p49 = scmp.eq.s32.totalorder %s16, 0
      %p50 = por %p48, %p49
      %p51 = scmp.ne.s32.totalorder %s40, %s43
      %p52 = scmp.eq.s32.totalorder %s21, 1
      %p53 = por %p51, %p52
      %p54 = scmp.ne.s32.totalorder %s43, %s44
      %p55 = scmp.eq.s32.totalorder %s21, 0
      %p56 = por %p54, %p55
      %p57 = scmp.ne.s32.totalorder %s43, %s44
      %p58 = scmp.eq.s32.totalorder %s22, 1
      %p59 = por %p57, %p58
      %p61 = scmp.ne.s32.totalorder %s44, %s60
      %p62 = scmp.eq.s32.totalorder %s22, 0
      %p63 = por %p61, %p62
      %s65 = sadd.s32 %s64, 1
      %p68 = scmp.eq.s32.totalorder %s16, 1
      %p69 = scmp.ne.s32.totalorder %s64, %s66
      %p70 = scmp.eq.s32.totalorder %s16, 0
      %p71 = por %p69, %p70
      %p72 = scmp.ne.s32.totalorder %s64, %s66
      %p73 = scmp.eq.s32.totalorder %s21, 1
      %p74 = por %p72, %p73
      %p75 = scmp.ne.s32.totalorder %s66, %s67
      %p76 = scmp.eq.s32.totalorder %s21, 0
      %p77 = por %p75, %p76
      %p78 = scmp.ne.s32.totalorder %s66, %s67
      %p79 = scmp.eq.s32.totalorder %s22, 1
      %p80 = por %p78, %p79
      %p82 = scmp.ne.s32.totalorder %s67, %s81
      %p83 = scmp.eq.s32.totalorder %s22, 0
      %p84 = por %p82, %p83
      %s86 = sadd.s32 %s85, 1
      %p89 = scmp.eq.s32.totalorder %s16, 1
      %p90 = scmp.ne.s32.totalorder %s85, %s87
      %p91 = scmp.eq.s32.totalorder %s16, 0
      %p92 = por %p90, %p91
      %p93 = scmp.ne.s32.totalorder %s85, %s87
      %p94 = scmp.eq.s32.totalorder %s21, 1
      %p95 = por %p93, %p94
      %p96 = scmp.ne.s32.totalorder %s87, %s88
      %p97 = scmp.eq.s32.totalorder %s21, 0
      %p98 = por %p96, %p97
      %p99 = scmp.ne.s32.totalorder %s87, %s88
      %p100 = scmp.eq.s32.totalorder %s22, 1
      %p101 = por %p99, %p100
      %p103 = scmp.ne.s32.totalorder %s88, %s102
      %p104 = scmp.eq.s32.totalorder %s22, 0
      %p105 = por %p103, %p104
      %s107 = sadd.s32 %s106, 1
      %p110 = scmp.eq.s32.totalorder %s16, 1
      %p111 = scmp.ne.s32.totalorder %s106, %s108
      %p112 = scmp.eq.s32.totalorder %s16, 0
      %p113 = por %p111, %p112
      %p114 = scmp.ne.s32.totalorder %s106, %s108
      %p115 = scmp.eq.s32.totalorder %s21, 1
      %p116 = por %p114, %p115
      %p117 = scmp.ne.s32.totalorder %s108, %s109
      %p118 = scmp.eq.s32.totalorder %s21, 0
      %p119 = por %p117, %p118
      %p120 = scmp.ne.s32.totalorder %s108, %s109
      %p121 = scmp.eq.s32.totalorder %s22, 1
      %p122 = por %p120, %p121
      %p124 = scmp.ne.s32.totalorder %s109, %s123
      %p125 = scmp.eq.s32.totalorder %s22, 0
      %p126 = por %p124, %p125
      %s128 = sadd.s32 %s127, 1
      %p131 = scmp.eq.s32.totalorder %s16, 1
      %p132 = scmp.ne.s32.totalorder %s127, %s129
      %p133 = scmp.eq.s32.totalorder %s16, 0
      %p134 = por %p132, %p133
      %p135 = scmp.ne.s32.totalorder %s127, %s129
      %p136 = scmp.eq.s32.totalorder %s21, 1
      %p137 = por %p135, %p136
      %p138 = scmp.ne.s32.totalorder %s129, %s130
      %p139 = scmp.eq.s32.totalorder %s21, 0
      %p140 = por %p138, %p139
      %p141 = scmp.ne.s32.totalorder %s129, %s130
      %p142 = scmp.eq.s32.totalorder %s22, 1
      %p143 = por %p141, %p142
      %p145 = scmp.ne.s32.totalorder %s130, %s144
      %p146 = scmp.eq.s32.totalorder %s22, 0
      %p147 = por %p145, %p146
      %s149 = sadd.s32 %s148, 1
      %p152 = scmp.eq.s32.totalorder %s16, 1
      %p153 = scmp.ne.s32.totalorder %s148, %s150
      %p154 = scmp.eq.s32.totalorder %s16, 0
      %p155 = por %p153, %p154
      %p156 = scmp.ne.s32.totalorder %s148, %s150
      %p157 = scmp.eq.s32.totalorder %s21, 1
      %p158 = por %p156, %p157
      %p159 = scmp.ne.s32.totalorder %s150, %s151
      %p160 = scmp.eq.s32.totalorder %s21, 0
      %p161 = por %p159, %p160
      %p162 = scmp.ne.s32.totalorder %s150, %s151
      %p163 = scmp.eq.s32.totalorder %s22, 1
      %p164 = por %p162, %p163
      %p166 = scmp.ne.s32.totalorder %s151, %s165
      %p167 = scmp.eq.s32.totalorder %s22, 0
      %p168 = por %p166, %p167
      %s170 = sadd.s32 %s169, 1
      %p173 = scmp.eq.s32.totalorder %s16, 1
      %p174 = scmp.ne.s32.totalorder %s169, %s171
      %p175 = scmp.eq.s32.totalorder %s16, 0
      %p176 = por %p174, %p175
      %p177 = scmp.ne.s32.totalorder %s169, %s171
      %p178 = scmp.eq.s32.totalorder %s21, 1
      %p179 = por %p177, %p178
      %p180 = scmp.ne.s32.totalorder %s171, %s172
      %p181 = scmp.eq.s32.totalorder %s21, 0
      %p182 = por %p180, %p181
      %p183 = scmp.ne.s32.totalorder %s171, %s172
      %p184 = scmp.eq.s32.totalorder %s22, 1
      %p185 = por %p183, %p184
      %p187 = scmp.ne.s32.totalorder %s172, %s186
      %p188 = scmp.eq.s32.totalorder %s22, 0
      %p189 = por %p187, %p188
      %s190 = ssub.s32 %s23, %s35
      %s191 = ssub.s32 %s24, %s31
      %s192 = sor.u32 %s190, %s191
      %p193 = scmp.eq.s32.totalorder %s192, 0
      %s195 = sadd.s32 %s194, 1
      %s196 = scalar_select %p193, %s194, %s195
      %p199 = pneg %p193
      %p200 = scmp.eq.s32.totalorder %s16, 1
      %p201 = por %p199, %p200
      %p202 = scmp.ne.s32.totalorder %s194, %s197
      %p203 = scmp.eq.s32.totalorder %s16, 0
      %p204 = por %p202, %p203
      %p205 = scmp.ne.s32.totalorder %s194, %s197
      %p206 = scmp.eq.s32.totalorder %s21, 1
      %p207 = por %p205, %p206
      %p208 = scmp.ne.s32.totalorder %s197, %s198
      %p209 = scmp.eq.s32.totalorder %s21, 0
      %p210 = por %p208, %p209
      %p211 = scmp.ne.s32.totalorder %s197, %s198
      %p212 = scmp.eq.s32.totalorder %s22, 1
      %p213 = por %p211, %p212
      %p215 = scmp.ne.s32.totalorder %s198, %s214
      %p216 = scmp.eq.s32.totalorder %s22, 0
      %p217 = por %p215, %p216
      %p218 = scmp.le.s32.totalorder 1, %s16
      %p219 = scmp.lt.s32.totalorder %s16, 3
      %p220 = pnand %p218, %p219
      %p221 = pneg %p220
      // Predicated region
      $region9: #{swin_attention_1d.1} parent=5 // pred_check
        _
      $region10: #{swin_attention_1d.1} parent=5 // pred_check_branch
        %223 = sbr.rel (%p220) target = $region12
      $region11: #{swin_attention_1d.1} parent=5 // pred_region
        %s224 = ssub.s32 %s16, 1
        // Predicated region
        $region13: #{swin_attention_1d.1} parent=11 // pred_check
          %p225 = pneg %p77
        $region14: #{swin_attention_1d.1} parent=11 // pred_check_branch
          %227 = sbr.rel (%p225) target = $region16
        $region15: #{swin_attention_1d.1} parent=11 // pred_region
          _
        $region16: #{swin_attention_1d.1} parent=11 // pred_fallthru
          _
        // Predicated region
        $region17: #{swin_attention_1d.1} parent=11 // pred_check
          %p228 = pneg %p98
        $region18: #{swin_attention_1d.1} parent=11 // pred_check_branch
          %230 = sbr.rel (%p228) target = $region20
        $region19: #{swin_attention_1d.1} parent=11 // pred_region
          _
        $region20: #{swin_attention_1d.1} parent=11 // pred_fallthru
          _
        // Predicated region
        $region21: #{swin_attention_1d.1} parent=11 // pred_check
          %p231 = pneg %p119
        $region22: #{swin_attention_1d.1} parent=11 // pred_check_branch
          %233 = sbr.rel (%p231) target = $region24
        $region23: #{swin_attention_1d.1} parent=11 // pred_region
          _
        $region24: #{swin_attention_1d.1} parent=11 // pred_fallthru
          _
        // Predicated region
        $region25: #{swin_attention_1d.1} parent=11 // pred_check
          %p234 = pneg %p140
        $region26: #{swin_attention_1d.1} parent=11 // pred_check_branch
          %236 = sbr.rel (%p234) target = $region28
        $region27: #{swin_attention_1d.1} parent=11 // pred_region
          _
        $region28: #{swin_attention_1d.1} parent=11 // pred_fallthru
          _
        // Predicated region
        $region29: #{swin_attention_1d.1} parent=11 // pred_check
          %p237 = pneg %p161
        $region30: #{swin_attention_1d.1} parent=11 // pred_check_branch
          %239 = sbr.rel (%p237) target = $region32
        $region31: #{swin_attention_1d.1} parent=11 // pred_region
          _
        $region32: #{swin_attention_1d.1} parent=11 // pred_fallthru
          _
        // Predicated region
        $region33: #{swin_attention_1d.1} parent=11 // pred_check
          %p240 = pneg %p182
        $region34: #{swin_attention_1d.1} parent=11 // pred_check_branch
          %242 = sbr.rel (%p240) target = $region36
        $region35: #{swin_attention_1d.1} parent=11 // pred_region
          _
        $region36: #{swin_attention_1d.1} parent=11 // pred_fallthru
          _
      $region12: #{swin_attention_1d.1} parent=5 // pred_fallthru
        _
      %p243 = scmp.lt.s32.totalorder %s16, 2
      // Predicated region
      $region37: #{swin_attention_1d.1} parent=5 // pred_check
        %p244 = pneg %p243
      $region38: #{swin_attention_1d.1} parent=5 // pred_check_branch
        %246 = sbr.rel (%p244) target = $region40
      $region39: #{swin_attention_1d.1} parent=5 // pred_region
        // Predicated region
        $region41: #{swin_attention_1d.1} parent=39 // pred_check
          %p247 = pneg %p50
        $region42: #{swin_attention_1d.1} parent=39 // pred_check_branch
          %249 = sbr.rel (%p247) target = $region44
        $region43: #{swin_attention_1d.1} parent=39 // pred_region
          %p250 = scmp.lt.s32.totalorder %s23, 1
          %s251 = scalar_select %p250, %s23, 1
          %p252 = scmp.lt.s32.totalorder %s24, 0
          %s253 = scalar_select %p252, %s24, 0
          %s254 = smul.addr %s251, 4
          %s255 = sadd.s32 %s253, %s254
          %s256 = smul.addr %s255, 8
          %s257 = scalar_lea.vmem %s0, %s256
        $region44: #{swin_attention_1d.1} parent=39 // pred_fallthru
          _
      $region40: #{swin_attention_1d.1} parent=5 // pred_fallthru
        _
      %p258 = scmp.le.s32.totalorder 1, %s16
      %p259 = scmp.lt.s32.totalorder %s16, 3
      %p260 = pnand %p258, %p259
      %p261 = pneg %p260
      // Predicated region
      $region45: #{swin_attention_1d.1} parent=5 // pred_check
        _
      $region46: #{swin_attention_1d.1} parent=5 // pred_check_branch
        %263 = sbr.rel (%p260) target = $region48
      $region47: #{swin_attention_1d.1} parent=5 // pred_region
        %s264 = ssub.s32 %s16, 1
        %p265 = scmp.lt.s32.totalorder %s25, 1
        %s266 = scalar_select %p265, %s25, 1
        %p267 = scmp.lt.s32.totalorder %s26, 0
        %s268 = scalar_select %p267, %s26, 0
        %s269 = smul.addr %s266, 4
        %s270 = sadd.s32 %s268, %s269
        %s271 = smul.addr %s270, 8
        %s272 = scalar_lea.vmem %s0, %s271
        %p273 = pneg %p56
        %p274 = pneg %p53
        %p275 = pneg %p77
        %p276 = pneg %p74
        %p277 = pneg %p98
        %p278 = pneg %p95
        %p279 = pneg %p119
        %p280 = pneg %p116
        %p281 = pneg %p140
        %p282 = pneg %p137
        %p283 = pneg %p161
        %p284 = pneg %p158
        %p285 = pneg %p182
        %p286 = pneg %p179
        %p287 = pneg %p210
        %p288 = pneg %p207
        %s289 = sand.u32 %s197, 1
        %s290 = scalar_lea.sflag [#allocation3], %s289
        %s291 = sand.u32 %s197, 1
        %s292 = smul.addr %s291, 32
        %s293 = scalar_lea.vmem [#allocation2], %s292
        %p294 = scmp.lt.s32.totalorder %s25, 1
        %s295 = scalar_select %p294, %s25, 1
        %p296 = scmp.lt.s32.totalorder %s26, 0
        %s297 = scalar_select %p296, %s26, 0
        %s298 = smul.addr %s295, 4
        %s299 = sadd.s32 %s297, %s298
        %s300 = smul.addr %s299, 8
        %s301 = scalar_lea.vmem %s0, %s300
        %v303 = vld [vmem:[%s301] sm:$0xff]
        %v304 = vld [vmem:[%s301 + $0x8] sm:$0xff]
        %v305 = vld [vmem:[%s301 + $0x10] sm:$0xff]
        %v306 = vld [vmem:[%s301 + $0x18] sm:$0xff]
        %307 = vxpose.xlu0.b32.start [1/16] %v303, 128
        %308 = vxpose.xlu0.b32.cont [2/16] %v304, 128
        %309 = vxpose.xlu0.b32.cont [3/16] %v305, 128
        %310 = vxpose.xlu0.b32.cont [4/16] %v306, 128
        %311 = vxpose.xlu0.b32.cont [5/16] 0.0, 128
        %312 = vxpose.xlu0.b32.cont [6/16] 0.0, 128
        %313 = vxpose.xlu0.b32.cont [7/16] 0.0, 128
        %314 = vxpose.xlu0.b32.cont [8/16] 0.0, 128
        %315 = vxpose.xlu0.b32.cont [9/16] 0.0, 128
        %316 = vxpose.xlu0.b32.cont [10/16] 0.0, 128
        %317 = vxpose.xlu0.b32.cont [11/16] 0.0, 128
        %318 = vxpose.xlu0.b32.cont [12/16] 0.0, 128
        %319 = vxpose.xlu0.b32.cont [13/16] 0.0, 128
        %320 = vxpose.xlu0.b32.cont [14/16] 0.0, 128
        %321 = vxpose.xlu0.b32.cont [15/16] 0.0, 128
        %322 = vxpose.xlu0.b32.end [16/16] 0.0, 128
        %v323 = vpop.trf.xlu0
        %v324 = vpop.trf.xlu0
        %v325 = vpop.trf.xlu0
        %v326 = vpop.trf.xlu0
        %v327 = vpop.trf.xlu0
        %v328 = vpop.trf.xlu0
        %v329 = vpop.trf.xlu0
        %v330 = vpop.trf.xlu0
        %v331 = vpop.trf.xlu0
        %v332 = vpop.trf.xlu0
        %v333 = vpop.trf.xlu0
        %v334 = vpop.trf.xlu0
        %v335 = vpop.trf.xlu0
        %v336 = vpop.trf.xlu0
        %v337 = vpop.trf.xlu0
        %v338 = vpop.trf.xlu0
        %v339 = vpack.c.bf16 %v324, %v323
        %v340 = vpack.c.bf16 %v326, %v325
        %v341 = vpack.c.bf16 %v328, %v327
        %v342 = vpack.c.bf16 %v330, %v329
        %v343 = vpack.c.bf16 %v332, %v331
        %v344 = vpack.c.bf16 %v334, %v333
        %v345 = vpack.c.bf16 %v336, %v335
        %v346 = vpack.c.bf16 %v338, %v337
        %v347 = vld [vmem:[%s1] sm:$0xf]
        %v348 = vld [vmem:[%s1 + $0x4] sm:$0xf]
        %v349 = vld [vmem:[%s1 + $0x8] sm:$0xf]
        %v350 = vld [vmem:[%s1 + $0xc] sm:$0xf]
        %v351 = vld [vmem:[%s2] sm:$0x1]
        %v353 = vperm.slane %v351, 0
        %v359 = vunpack.c.l.b16 %v347
        %v360 = vunpack.c.l.b16 %v348
        %v361 = vunpack.c.l.b16 %v349
        %v362 = vunpack.c.l.b16 %v350
        %v363 = vpack.c.b16 %v360, %v359
        %v364 = vpack.c.b16 %v362, %v361
        %vm367 = vcmask 261120
        %v369 = vsel %vm367, %v339, 0
        %v372 = vsel %vm367, %v340, 0
        %v375 = vsel %vm367, %v341, 0
        %v378 = vsel %vm367, %v342, 0
        %v381 = vsel %vm367, %v343, 0
        %v384 = vsel %vm367, %v344, 0
        %v387 = vsel %vm367, %v345, 0
        %v390 = vsel %vm367, %v346, 0
        %392 = vmatpush.bf16.msra.mxu0 0
        %393 = vmatpush.bf16.msra.mxu0 0
        %394 = vmatpush.bf16.msra.mxu0 0
        %395 = vmatpush.bf16.msra.mxu0 0
        %396 = vmatpush.bf16.msra.mxu0 0
        %397 = vmatpush.bf16.msra.mxu0 0
        %398 = vmatpush.bf16.msra.mxu0 %v364
        %399 = vmatpush.bf16.msra.mxu0 %v363
        %400 = vmatmul.bf16.gmra.mxu0 %v369
        %v401 = vpop.f32.mrf.mxu0
        %v402 = vadd.f32 %v353, %v401
        %v403 = vpop.f32.mrf.mxu0
        %v404 = vadd.f32 %v353, %v403
        %405 = vmatmul.bf16.gmra.mxu0 %v372
        %v406 = vpop.f32.mrf.mxu0
        %v407 = vadd.f32 %v353, %v406
        %v408 = vpop.f32.mrf.mxu0
        %v409 = vadd.f32 %v353, %v408
        %410 = vmatmul.bf16.gmra.mxu0 %v375
        %v411 = vpop.f32.mrf.mxu0
        %v412 = vadd.f32 %v353, %v411
        %v413 = vpop.f32.mrf.mxu0
        %v414 = vadd.f32 %v353, %v413
        %415 = vmatmul.bf16.gmra.mxu0 %v378
        %v416 = vpop.f32.mrf.mxu0
        %v417 = vadd.f32 %v353, %v416
        %v418 = vpop.f32.mrf.mxu0
        %v419 = vadd.f32 %v353, %v418
        %420 = vmatmul.bf16.gmra.mxu0 %v381
        %v421 = vpop.f32.mrf.mxu0
        %v422 = vadd.f32 %v353, %v421
        %v423 = vpop.f32.mrf.mxu0
        %v424 = vadd.f32 %v353, %v423
        %425 = vmatmul.bf16.gmra.mxu0 %v384
        %v426 = vpop.f32.mrf.mxu0
        %v427 = vadd.f32 %v353, %v426
        %v428 = vpop.f32.mrf.mxu0
        %v429 = vadd.f32 %v353, %v428
        %430 = vmatmul.bf16.gmra.mxu0 %v387
        %v431 = vpop.f32.mrf.mxu0
        %v432 = vadd.f32 %v353, %v431
        %v433 = vpop.f32.mrf.mxu0
        %v434 = vadd.f32 %v353, %v433
        %435 = vmatmul.bf16.gmra.mxu0 %v390
        %v436 = vpop.f32.mrf.mxu0
        %v437 = vadd.f32 %v353, %v436
        %v438 = vpop.f32.mrf.mxu0
        %v439 = vadd.f32 %v353, %v438
        %440 = vdwg.mxu0
        %v441 = vpack.c.bf16 %v402, %v402
        %v442 = vpack.c.bf16 %v404, %v404
        %v443 = vpack.c.bf16 %v407, %v407
        %v444 = vpack.c.bf16 %v409, %v409
        %v445 = vpack.c.bf16 %v412, %v412
        %v446 = vpack.c.bf16 %v414, %v414
        %v447 = vpack.c.bf16 %v417, %v417
        %v448 = vpack.c.bf16 %v419, %v419
        %v449 = vpack.c.bf16 %v422, %v422
        %v450 = vpack.c.bf16 %v424, %v424
        %v451 = vpack.c.bf16 %v427, %v427
        %v452 = vpack.c.bf16 %v429, %v429
        %v453 = vpack.c.bf16 %v432, %v432
        %v454 = vpack.c.bf16 %v434, %v434
        %v455 = vpack.c.bf16 %v437, %v437
        %v456 = vpack.c.bf16 %v439, %v439
        %v459 = vunpack.c.l.b16 %v441
        %v460 = vunpack.c.l.b16 %v442
        %v461 = vpack.c.b16 %v460, %v459
        %462 = vrot.lane.b32.xlu0 %v461, 96
        %v463 = vpop.permute.xlu0 %462
        %vm464 = vcmask 64512
        %v466 = vsel %vm464, %v461, 0
        %v469 = vsel %vm464, %v463, 0
        %471 = vmatpush.bf16.xpose.msra.mxu0 0
        %472 = vmatpush.bf16.xpose.msra.mxu0 0
        %473 = vmatpush.bf16.xpose.msra.mxu0 0
        %474 = vmatpush.bf16.xpose.msra.mxu0 0
        %475 = vmatpush.bf16.xpose.msra.mxu0 0
        %476 = vmatpush.bf16.xpose.msra.mxu0 0
        %477 = vmatpush.bf16.xpose.msra.mxu0 0
        %478 = vmatpush.bf16.xpose.msra.mxu0 %v469
        %479 = vmatmul.bf16.gmra.mxu0 %v466
        %v480 = vpop.f32.mrf.mxu0
        %v481 = vadd.f32 0.0, %v480
        %v482 = vpop.f32.mrf.mxu0
        %v483 = vadd.f32 0.0, %v482
        %484 = vdwg.mxu0
        %v487 = vunpack.c.l.b16 %v443
        %v488 = vunpack.c.l.b16 %v444
        %v489 = vpack.c.b16 %v488, %v487
        %490 = vrot.lane.b32.xlu0 %v489, 96
        %v491 = vpop.permute.xlu0 %490
        %v493 = vsel %vm464, %v489, 0
        %v496 = vsel %vm464, %v491, 0
        %498 = vmatpush.bf16.xpose.msra.mxu0 0
        %499 = vmatpush.bf16.xpose.msra.mxu0 0
        %500 = vmatpush.bf16.xpose.msra.mxu0 0
        %501 = vmatpush.bf16.xpose.msra.mxu0 0
        %502 = vmatpush.bf16.xpose.msra.mxu0 0
        %503 = vmatpush.bf16.xpose.msra.mxu0 0
        %504 = vmatpush.bf16.xpose.msra.mxu0 0
        %505 = vmatpush.bf16.xpose.msra.mxu0 %v496
        %506 = vmatmul.bf16.gmra.mxu0 %v493
        %v507 = vpop.f32.mrf.mxu0
        %v508 = vadd.f32 0.0, %v507
        %v509 = vpop.f32.mrf.mxu0
        %v510 = vadd.f32 0.0, %v509
        %511 = vdwg.mxu0
        %v514 = vunpack.c.l.b16 %v445
        %v515 = vunpack.c.l.b16 %v446
        %v516 = vpack.c.b16 %v515, %v514
        %517 = vrot.lane.b32.xlu0 %v516, 96
        %v518 = vpop.permute.xlu0 %517
        %v520 = vsel %vm464, %v516, 0
        %v523 = vsel %vm464, %v518, 0
        %525 = vmatpush.bf16.xpose.msra.mxu0 0
        %526 = vmatpush.bf16.xpose.msra.mxu0 0
        %527 = vmatpush.bf16.xpose.msra.mxu0 0
        %528 = vmatpush.bf16.xpose.msra.mxu0 0
        %529 = vmatpush.bf16.xpose.msra.mxu0 0
        %530 = vmatpush.bf16.xpose.msra.mxu0 0
        %531 = vmatpush.bf16.xpose.msra.mxu0 0
        %532 = vmatpush.bf16.xpose.msra.mxu0 %v523
        %533 = vmatmul.bf16.gmra.mxu0 %v520
        %v534 = vpop.f32.mrf.mxu0
        %v535 = vadd.f32 0.0, %v534
        %v536 = vpop.f32.mrf.mxu0
        %v537 = vadd.f32 0.0, %v536
        %538 = vdwg.mxu0
        %v541 = vunpack.c.l.b16 %v447
        %v542 = vunpack.c.l.b16 %v448
        %v543 = vpack.c.b16 %v542, %v541
        %544 = vrot.lane.b32.xlu0 %v543, 96
        %v545 = vpop.permute.xlu0 %544
        %v547 = vsel %vm464, %v543, 0
        %v550 = vsel %vm464, %v545, 0
        %552 = vmatpush.bf16.xpose.msra.mxu0 0
        %553 = vmatpush.bf16.xpose.msra.mxu0 0
        %554 = vmatpush.bf16.xpose.msra.mxu0 0
        %555 = vmatpush.bf16.xpose.msra.mxu0 0
        %556 = vmatpush.bf16.xpose.msra.mxu0 0
        %557 = vmatpush.bf16.xpose.msra.mxu0 0
        %558 = vmatpush.bf16.xpose.msra.mxu0 0
        %559 = vmatpush.bf16.xpose.msra.mxu0 %v550
        %560 = vmatmul.bf16.gmra.mxu0 %v547
        %v561 = vpop.f32.mrf.mxu0
        %v562 = vadd.f32 0.0, %v561
        %v563 = vpop.f32.mrf.mxu0
        %v564 = vadd.f32 0.0, %v563
        %565 = vdwg.mxu0
        %v568 = vunpack.c.l.b16 %v449
        %v569 = vunpack.c.l.b16 %v450
        %v570 = vpack.c.b16 %v569, %v568
        %571 = vrot.lane.b32.xlu0 %v570, 96
        %v572 = vpop.permute.xlu0 %571
        %v574 = vsel %vm464, %v570, 0
        %v577 = vsel %vm464, %v572, 0
        %579 = vmatpush.bf16.xpose.msra.mxu0 0
        %580 = vmatpush.bf16.xpose.msra.mxu0 0
        %581 = vmatpush.bf16.xpose.msra.mxu0 0
        %582 = vmatpush.bf16.xpose.msra.mxu0 0
        %583 = vmatpush.bf16.xpose.msra.mxu0 0
        %584 = vmatpush.bf16.xpose.msra.mxu0 0
        %585 = vmatpush.bf16.xpose.msra.mxu0 0
        %586 = vmatpush.bf16.xpose.msra.mxu0 %v577
        %587 = vmatmul.bf16.gmra.mxu0 %v574
        %v588 = vpop.f32.mrf.mxu0
        %v589 = vadd.f32 0.0, %v588
        %v590 = vpop.f32.mrf.mxu0
        %v591 = vadd.f32 0.0, %v590
        %592 = vdwg.mxu0
        %v595 = vunpack.c.l.b16 %v451
        %v596 = vunpack.c.l.b16 %v452
        %v597 = vpack.c.b16 %v596, %v595
        %598 = vrot.lane.b32.xlu0 %v597, 96
        %v599 = vpop.permute.xlu0 %598
        %v601 = vsel %vm464, %v597, 0
        %v604 = vsel %vm464, %v599, 0
        %606 = vmatpush.bf16.xpose.msra.mxu0 0
        %607 = vmatpush.bf16.xpose.msra.mxu0 0
        %608 = vmatpush.bf16.xpose.msra.mxu0 0
        %609 = vmatpush.bf16.xpose.msra.mxu0 0
        %610 = vmatpush.bf16.xpose.msra.mxu0 0
        %611 = vmatpush.bf16.xpose.msra.mxu0 0
        %612 = vmatpush.bf16.xpose.msra.mxu0 0
        %613 = vmatpush.bf16.xpose.msra.mxu0 %v604
        %614 = vmatmul.bf16.gmra.mxu0 %v601
        %v615 = vpop.f32.mrf.mxu0
        %v616 = vadd.f32 0.0, %v615
        %v617 = vpop.f32.mrf.mxu0
        %v618 = vadd.f32 0.0, %v617
        %619 = vdwg.mxu0
        %v622 = vunpack.c.l.b16 %v453
        %v623 = vunpack.c.l.b16 %v454
        %v624 = vpack.c.b16 %v623, %v622
        %625 = vrot.lane.b32.xlu0 %v624, 96
        %v626 = vpop.permute.xlu0 %625
        %v628 = vsel %vm464, %v624, 0
        %v631 = vsel %vm464, %v626, 0
        %633 = vmatpush.bf16.xpose.msra.mxu0 0
        %634 = vmatpush.bf16.xpose.msra.mxu0 0
        %635 = vmatpush.bf16.xpose.msra.mxu0 0
        %636 = vmatpush.bf16.xpose.msra.mxu0 0
        %637 = vmatpush.bf16.xpose.msra.mxu0 0
        %638 = vmatpush.bf16.xpose.msra.mxu0 0
        %639 = vmatpush.bf16.xpose.msra.mxu0 0
        %640 = vmatpush.bf16.xpose.msra.mxu0 %v631
        %641 = vmatmul.bf16.gmra.mxu0 %v628
        %v642 = vpop.f32.mrf.mxu0
        %v643 = vadd.f32 0.0, %v642
        %v644 = vpop.f32.mrf.mxu0
        %v645 = vadd.f32 0.0, %v644
        %646 = vdwg.mxu0
        %v649 = vunpack.c.l.b16 %v455
        %v650 = vunpack.c.l.b16 %v456
        %v651 = vpack.c.b16 %v650, %v649
        %652 = vrot.lane.b32.xlu0 %v651, 96
        %v653 = vpop.permute.xlu0 %652
        %v655 = vsel %vm464, %v651, 0
        %v658 = vsel %vm464, %v653, 0
        %660 = vmatpush.bf16.xpose.msra.mxu0 0
        %661 = vmatpush.bf16.xpose.msra.mxu0 0
        %662 = vmatpush.bf16.xpose.msra.mxu0 0
        %663 = vmatpush.bf16.xpose.msra.mxu0 0
        %664 = vmatpush.bf16.xpose.msra.mxu0 0
        %665 = vmatpush.bf16.xpose.msra.mxu0 0
        %666 = vmatpush.bf16.xpose.msra.mxu0 0
        %667 = vmatpush.bf16.xpose.msra.mxu0 %v658
        %668 = vmatmul.bf16.gmra.mxu0 %v655
        %v669 = vpop.f32.mrf.mxu0
        %v670 = vadd.f32 0.0, %v669
        %v671 = vpop.f32.mrf.mxu0
        %v672 = vadd.f32 0.0, %v671
        %673 = vdwg.mxu0
        %vm674 = vcmask 130048
        %v675 = vsel %vm674, %v481, -inf
        %676 = vmax.xlane.f32.xlu0 %v675
        %v677 = vpop.xlane.xlu0 %676
        %v678 = vsel %vm674, %v483, -inf
        %679 = vmax.xlane.f32.xlu0 %v678
        %v680 = vpop.xlane.xlu0 %679
        %v681 = vsel %vm674, %v508, -inf
        %682 = vmax.xlane.f32.xlu0 %v681
        %v683 = vpop.xlane.xlu0 %682
        %v684 = vsel %vm674, %v510, -inf
        %685 = vmax.xlane.f32.xlu0 %v684
        %v686 = vpop.xlane.xlu0 %685
        %v687 = vsel %vm674, %v535, -inf
        %688 = vmax.xlane.f32.xlu0 %v687
        %v689 = vpop.xlane.xlu0 %688
        %v690 = vsel %vm674, %v537, -inf
        %691 = vmax.xlane.f32.xlu0 %v690
        %v692 = vpop.xlane.xlu0 %691
        %v693 = vsel %vm674, %v562, -inf
        %694 = vmax.xlane.f32.xlu0 %v693
        %v695 = vpop.xlane.xlu0 %694
        %v696 = vsel %vm674, %v564, -inf
        %697 = vmax.xlane.f32.xlu0 %v696
        %v698 = vpop.xlane.xlu0 %697
        %v699 = vsel %vm674, %v589, -inf
        %700 = vmax.xlane.f32.xlu0 %v699
        %v701 = vpop.xlane.xlu0 %700
        %v702 = vsel %vm674, %v591, -inf
        %703 = vmax.xlane.f32.xlu0 %v702
        %v704 = vpop.xlane.xlu0 %703
        %v705 = vsel %vm674, %v616, -inf
        %706 = vmax.xlane.f32.xlu0 %v705
        %v707 = vpop.xlane.xlu0 %706
        %v708 = vsel %vm674, %v618, -inf
        %709 = vmax.xlane.f32.xlu0 %v708
        %v710 = vpop.xlane.xlu0 %709
        %v711 = vsel %vm674, %v643, -inf
        %712 = vmax.xlane.f32.xlu0 %v711
        %v713 = vpop.xlane.xlu0 %712
        %v714 = vsel %vm674, %v645, -inf
        %715 = vmax.xlane.f32.xlu0 %v714
        %v716 = vpop.xlane.xlu0 %715
        %v717 = vsel %vm674, %v670, -inf
        %718 = vmax.xlane.f32.xlu0 %v717
        %v719 = vpop.xlane.xlu0 %718
        %v720 = vsel %vm674, %v672, -inf
        %721 = vmax.xlane.f32.xlu0 %v720
        %v722 = vpop.xlane.xlu0 %721
        %v723 = vsub.f32 %v481, %v677
        %v724 = vsub.f32 %v483, %v680
        %v725 = vsub.f32 %v508, %v683
        %v726 = vsub.f32 %v510, %v686
        %v727 = vsub.f32 %v535, %v689
        %v728 = vsub.f32 %v537, %v692
        %v729 = vsub.f32 %v562, %v695
        %v730 = vsub.f32 %v564, %v698
        %v731 = vsub.f32 %v589, %v701
        %v732 = vsub.f32 %v591, %v704
        %v733 = vsub.f32 %v616, %v707
        %v734 = vsub.f32 %v618, %v710
        %v735 = vsub.f32 %v643, %v713
        %v736 = vsub.f32 %v645, %v716
        %v737 = vsub.f32 %v670, %v719
        %v738 = vsub.f32 %v672, %v722
        %v739 = vmul.f32 %v723, 1.442695
        %v740 = vpow.pop %v739
        %v741 = vmul.f32 %v724, 1.442695
        %v742 = vpow.pop %v741
        %v743 = vmul.f32 %v725, 1.442695
        %v744 = vpow.pop %v743
        %v745 = vmul.f32 %v726, 1.442695
        %v746 = vpow.pop %v745
        %v747 = vmul.f32 %v727, 1.442695
        %v748 = vpow.pop %v747
        %v749 = vmul.f32 %v728, 1.442695
        %v750 = vpow.pop %v749
        %v751 = vmul.f32 %v729, 1.442695
        %v752 = vpow.pop %v751
        %v753 = vmul.f32 %v730, 1.442695
        %v754 = vpow.pop %v753
        %v755 = vmul.f32 %v731, 1.442695
        %v756 = vpow.pop %v755
        %v757 = vmul.f32 %v732, 1.442695
        %v758 = vpow.pop %v757
        %v759 = vmul.f32 %v733, 1.442695
        %v760 = vpow.pop %v759
        %v761 = vmul.f32 %v734, 1.442695
        %v762 = vpow.pop %v761
        %v763 = vmul.f32 %v735, 1.442695
        %v764 = vpow.pop %v763
        %v765 = vmul.f32 %v736, 1.442695
        %v766 = vpow.pop %v765
        %v767 = vmul.f32 %v737, 1.442695
        %v768 = vpow.pop %v767
        %v769 = vmul.f32 %v738, 1.442695
        %v770 = vpow.pop %v769
        %v771 = vsel %vm674, %v740, 0.0
        %772 = vadd.xlane.f32.xlu0 %v771
        %v773 = vpop.xlane.xlu0 %772
        %v774 = vsel %vm674, %v742, 0.0
        %775 = vadd.xlane.f32.xlu0 %v774
        %v776 = vpop.xlane.xlu0 %775
        %v777 = vsel %vm674, %v744, 0.0
        %778 = vadd.xlane.f32.xlu0 %v777
        %v779 = vpop.xlane.xlu0 %778
        %v780 = vsel %vm674, %v746, 0.0
        %781 = vadd.xlane.f32.xlu0 %v780
        %v782 = vpop.xlane.xlu0 %781
        %v783 = vsel %vm674, %v748, 0.0
        %784 = vadd.xlane.f32.xlu0 %v783
        %v785 = vpop.xlane.xlu0 %784
        %v786 = vsel %vm674, %v750, 0.0
        %787 = vadd.xlane.f32.xlu0 %v786
        %v788 = vpop.xlane.xlu0 %787
        %v789 = vsel %vm674, %v752, 0.0
        %790 = vadd.xlane.f32.xlu0 %v789
        %v791 = vpop.xlane.xlu0 %790
        %v792 = vsel %vm674, %v754, 0.0
        %793 = vadd.xlane.f32.xlu0 %v792
        %v794 = vpop.xlane.xlu0 %793
        %v795 = vsel %vm674, %v756, 0.0
        %796 = vadd.xlane.f32.xlu0 %v795
        %v797 = vpop.xlane.xlu0 %796
        %v798 = vsel %vm674, %v758, 0.0
        %799 = vadd.xlane.f32.xlu0 %v798
        %v800 = vpop.xlane.xlu0 %799
        %v801 = vsel %vm674, %v760, 0.0
        %802 = vadd.xlane.f32.xlu0 %v801
        %v803 = vpop.xlane.xlu0 %802
        %v804 = vsel %vm674, %v762, 0.0
        %805 = vadd.xlane.f32.xlu0 %v804
        %v806 = vpop.xlane.xlu0 %805
        %v807 = vsel %vm674, %v764, 0.0
        %808 = vadd.xlane.f32.xlu0 %v807
        %v809 = vpop.xlane.xlu0 %808
        %v810 = vsel %vm674, %v766, 0.0
        %811 = vadd.xlane.f32.xlu0 %v810
        %v812 = vpop.xlane.xlu0 %811
        %v813 = vsel %vm674, %v768, 0.0
        %814 = vadd.xlane.f32.xlu0 %v813
        %v815 = vpop.xlane.xlu0 %814
        %v816 = vsel %vm674, %v770, 0.0
        %817 = vadd.xlane.f32.xlu0 %v816
        %v818 = vpop.xlane.xlu0 %817
        %v819 = vrcp.pop %v773
        %v820 = vrcp.pop %v776
        %v821 = vrcp.pop %v779
        %v822 = vrcp.pop %v782
        %v823 = vrcp.pop %v785
        %v824 = vrcp.pop %v788
        %v825 = vrcp.pop %v791
        %v826 = vrcp.pop %v794
        %v827 = vrcp.pop %v797
        %v828 = vrcp.pop %v800
        %v829 = vrcp.pop %v803
        %v830 = vrcp.pop %v806
        %v831 = vrcp.pop %v809
        %v832 = vrcp.pop %v812
        %v833 = vrcp.pop %v815
        %v834 = vrcp.pop %v818
        %v835 = vmul.f32 %v740, %v819
        %v836 = vmul.f32 %v742, %v820
        %v837 = vmul.f32 %v744, %v821
        %v838 = vmul.f32 %v746, %v822
        %v839 = vmul.f32 %v748, %v823
        %v840 = vmul.f32 %v750, %v824
        %v841 = vmul.f32 %v752, %v825
        %v842 = vmul.f32 %v754, %v826
        %v843 = vmul.f32 %v756, %v827
        %v844 = vmul.f32 %v758, %v828
        %v845 = vmul.f32 %v760, %v829
        %v846 = vmul.f32 %v762, %v830
        %v847 = vmul.f32 %v764, %v831
        %v848 = vmul.f32 %v766, %v832
        %v849 = vmul.f32 %v768, %v833
        %v850 = vmul.f32 %v770, %v834
        %v851 = vpack.c.bf16 %v835, %v835
        %v852 = vpack.c.bf16 %v836, %v836
        %v853 = vpack.c.bf16 %v837, %v837
        %v854 = vpack.c.bf16 %v838, %v838
        %v855 = vpack.c.bf16 %v839, %v839
        %v856 = vpack.c.bf16 %v840, %v840
        %v857 = vpack.c.bf16 %v841, %v841
        %v858 = vpack.c.bf16 %v842, %v842
        %v859 = vpack.c.bf16 %v843, %v843
        %v860 = vpack.c.bf16 %v844, %v844
        %v861 = vpack.c.bf16 %v845, %v845
        %v862 = vpack.c.bf16 %v846, %v846
        %v863 = vpack.c.bf16 %v847, %v847
        %v864 = vpack.c.bf16 %v848, %v848
        %v865 = vpack.c.bf16 %v849, %v849
        %v866 = vpack.c.bf16 %v850, %v850
        %v869 = vunpack.c.l.b16 %v851
        %v870 = vunpack.c.l.b16 %v852
        %v871 = vpack.c.b16 %v870, %v869
        %872 = vrot.lane.b32.xlu0 %v461, 64
        %v873 = vpop.permute.xlu0 %872
        %v876 = vsel %vm674, %v871, 0
        %878 = vmatpush.bf16.msra.mxu0 0
        %879 = vmatpush.bf16.msra.mxu0 0
        %880 = vmatpush.bf16.msra.mxu0 0
        %881 = vmatpush.bf16.msra.mxu0 0
        %882 = vmatpush.bf16.msra.mxu0 0
        %883 = vmatpush.bf16.msra.mxu0 0
        %884 = vmatpush.bf16.msra.mxu0 0
        %885 = vmatpush.bf16.msra.mxu0 %v873
        %886 = vmatmul.bf16.gmra.mxu0 %v876
        %v887 = vpop.f32.mrf.mxu0
        %v888 = vadd.f32 0.0, %v887
        %v889 = vpop.f32.mrf.mxu0
        %v890 = vadd.f32 0.0, %v889
        %891 = vdwg.mxu0
        %v894 = vunpack.c.l.b16 %v853
        %v895 = vunpack.c.l.b16 %v854
        %v896 = vpack.c.b16 %v895, %v894
        %897 = vrot.lane.b32.xlu0 %v489, 64
        %v898 = vpop.permute.xlu0 %897
        %v901 = vsel %vm674, %v896, 0
        %903 = vmatpush.bf16.msra.mxu0 0
        %904 = vmatpush.bf16.msra.mxu0 0
        %905 = vmatpush.bf16.msra.mxu0 0
        %906 = vmatpush.bf16.msra.mxu0 0
        %907 = vmatpush.bf16.msra.mxu0 0
        %908 = vmatpush.bf16.msra.mxu0 0
        %909 = vmatpush.bf16.msra.mxu0 0
        %910 = vmatpush.bf16.msra.mxu0 %v898
        %911 = vmatmul.bf16.gmra.mxu0 %v901
        %v912 = vpop.f32.mrf.mxu0
        %v913 = vadd.f32 0.0, %v912
        %v914 = vpop.f32.mrf.mxu0
        %v915 = vadd.f32 0.0, %v914
        %916 = vdwg.mxu0
        %v919 = vunpack.c.l.b16 %v855
        %v920 = vunpack.c.l.b16 %v856
        %v921 = vpack.c.b16 %v920, %v919
        %922 = vrot.lane.b32.xlu0 %v516, 64
        %v923 = vpop.permute.xlu0 %922
        %v926 = vsel %vm674, %v921, 0
        %928 = vmatpush.bf16.msra.mxu0 0
        %929 = vmatpush.bf16.msra.mxu0 0
        %930 = vmatpush.bf16.msra.mxu0 0
        %931 = vmatpush.bf16.msra.mxu0 0
        %932 = vmatpush.bf16.msra.mxu0 0
        %933 = vmatpush.bf16.msra.mxu0 0
        %934 = vmatpush.bf16.msra.mxu0 0
        %935 = vmatpush.bf16.msra.mxu0 %v923
        %936 = vmatmul.bf16.gmra.mxu0 %v926
        %v937 = vpop.f32.mrf.mxu0
        %v938 = vadd.f32 0.0, %v937
        %v939 = vpop.f32.mrf.mxu0
        %v940 = vadd.f32 0.0, %v939
        %941 = vdwg.mxu0
        %v944 = vunpack.c.l.b16 %v857
        %v945 = vunpack.c.l.b16 %v858
        %v946 = vpack.c.b16 %v945, %v944
        %947 = vrot.lane.b32.xlu0 %v543, 64
        %v948 = vpop.permute.xlu0 %947
        %v951 = vsel %vm674, %v946, 0
        %953 = vmatpush.bf16.msra.mxu0 0
        %954 = vmatpush.bf16.msra.mxu0 0
        %955 = vmatpush.bf16.msra.mxu0 0
        %956 = vmatpush.bf16.msra.mxu0 0
        %957 = vmatpush.bf16.msra.mxu0 0
        %958 = vmatpush.bf16.msra.mxu0 0
        %959 = vmatpush.bf16.msra.mxu0 0
        %960 = vmatpush.bf16.msra.mxu0 %v948
        %961 = vmatmul.bf16.gmra.mxu0 %v951
        %v962 = vpop.f32.mrf.mxu0
        %v963 = vadd.f32 0.0, %v962
        %v964 = vpop.f32.mrf.mxu0
        %v965 = vadd.f32 0.0, %v964
        %966 = vdwg.mxu0
        %v969 = vunpack.c.l.b16 %v859
        %v970 = vunpack.c.l.b16 %v860
        %v971 = vpack.c.b16 %v970, %v969
        %972 = vrot.lane.b32.xlu0 %v570, 64
        %v973 = vpop.permute.xlu0 %972
        %v976 = vsel %vm674, %v971, 0
        %978 = vmatpush.bf16.msra.mxu0 0
        %979 = vmatpush.bf16.msra.mxu0 0
        %980 = vmatpush.bf16.msra.mxu0 0
        %981 = vmatpush.bf16.msra.mxu0 0
        %982 = vmatpush.bf16.msra.mxu0 0
        %983 = vmatpush.bf16.msra.mxu0 0
        %984 = vmatpush.bf16.msra.mxu0 0
        %985 = vmatpush.bf16.msra.mxu0 %v973
        %986 = vmatmul.bf16.gmra.mxu0 %v976
        %v987 = vpop.f32.mrf.mxu0
        %v988 = vadd.f32 0.0, %v987
        %v989 = vpop.f32.mrf.mxu0
        %v990 = vadd.f32 0.0, %v989
        %991 = vdwg.mxu0
        %v994 = vunpack.c.l.b16 %v861
        %v995 = vunpack.c.l.b16 %v862
        %v996 = vpack.c.b16 %v995, %v994
        %997 = vrot.lane.b32.xlu0 %v597, 64
        %v998 = vpop.permute.xlu0 %997
        %v1001 = vsel %vm674, %v996, 0
        %1003 = vmatpush.bf16.msra.mxu0 0
        %1004 = vmatpush.bf16.msra.mxu0 0
        %1005 = vmatpush.bf16.msra.mxu0 0
        %1006 = vmatpush.bf16.msra.mxu0 0
        %1007 = vmatpush.bf16.msra.mxu0 0
        %1008 = vmatpush.bf16.msra.mxu0 0
        %1009 = vmatpush.bf16.msra.mxu0 0
        %1010 = vmatpush.bf16.msra.mxu0 %v998
        %1011 = vmatmul.bf16.gmra.mxu0 %v1001
        %v1012 = vpop.f32.mrf.mxu0
        %v1013 = vadd.f32 0.0, %v1012
        %v1014 = vpop.f32.mrf.mxu0
        %v1015 = vadd.f32 0.0, %v1014
        %1016 = vdwg.mxu0
        %v1019 = vunpack.c.l.b16 %v863
        %v1020 = vunpack.c.l.b16 %v864
        %v1021 = vpack.c.b16 %v1020, %v1019
        %1022 = vrot.lane.b32.xlu0 %v624, 64
        %v1023 = vpop.permute.xlu0 %1022
        %v1026 = vsel %vm674, %v1021, 0
        %1028 = vmatpush.bf16.msra.mxu0 0
        %1029 = vmatpush.bf16.msra.mxu0 0
        %1030 = vmatpush.bf16.msra.mxu0 0
        %1031 = vmatpush.bf16.msra.mxu0 0
        %1032 = vmatpush.bf16.msra.mxu0 0
        %1033 = vmatpush.bf16.msra.mxu0 0
        %1034 = vmatpush.bf16.msra.mxu0 0
        %1035 = vmatpush.bf16.msra.mxu0 %v1023
        %1036 = vmatmul.bf16.gmra.mxu0 %v1026
        %v1037 = vpop.f32.mrf.mxu0
        %v1038 = vadd.f32 0.0, %v1037
        %v1039 = vpop.f32.mrf.mxu0
        %v1040 = vadd.f32 0.0, %v1039
        %1041 = vdwg.mxu0
        %v1044 = vunpack.c.l.b16 %v865
        %v1045 = vunpack.c.l.b16 %v866
        %v1046 = vpack.c.b16 %v1045, %v1044
        %1047 = vrot.lane.b32.xlu0 %v651, 64
        %v1048 = vpop.permute.xlu0 %1047
        %v1051 = vsel %vm674, %v1046, 0
        %1053 = vmatpush.bf16.msra.mxu0 0
        %1054 = vmatpush.bf16.msra.mxu0 0
        %1055 = vmatpush.bf16.msra.mxu0 0
        %1056 = vmatpush.bf16.msra.mxu0 0
        %1057 = vmatpush.bf16.msra.mxu0 0
        %1058 = vmatpush.bf16.msra.mxu0 0
        %1059 = vmatpush.bf16.msra.mxu0 0
        %1060 = vmatpush.bf16.msra.mxu0 %v1048
        %1061 = vmatmul.bf16.gmra.mxu0 %v1051
        %v1062 = vpop.f32.mrf.mxu0
        %v1063 = vadd.f32 0.0, %v1062
        %v1064 = vpop.f32.mrf.mxu0
        %v1065 = vadd.f32 0.0, %v1064
        %1066 = vdwg.mxu0
        %1067 = vrot.lane.b32.xlu0 %v461, 120
        %v1068 = vpop.permute.xlu0 %1067
        %1069 = vrot.lane.b32.xlu0 %v461, 88
        %v1070 = vpop.permute.xlu0 %1069
        %v1072 = vsel %vm464, %v1068, 0
        %v1075 = vsel %vm464, %v1070, 0
        %1077 = vmatpush.bf16.xpose.msra.mxu0 0
        %1078 = vmatpush.bf16.xpose.msra.mxu0 0
        %1079 = vmatpush.bf16.xpose.msra.mxu0 0
        %1080 = vmatpush.bf16.xpose.msra.mxu0 0
        %1081 = vmatpush.bf16.xpose.msra.mxu0 0
        %1082 = vmatpush.bf16.xpose.msra.mxu0 0
        %1083 = vmatpush.bf16.xpose.msra.mxu0 0
        %1084 = vmatpush.bf16.xpose.msra.mxu0 %v1075
        %1085 = vmatmul.bf16.gmra.mxu0 %v1072
        %v1086 = vpop.f32.mrf.mxu0
        %v1087 = vadd.f32 0.0, %v1086
        %v1088 = vpop.f32.mrf.mxu0
        %v1089 = vadd.f32 0.0, %v1088
        %1090 = vdwg.mxu0
        %1091 = vrot.lane.b32.xlu0 %v489, 120
        %v1092 = vpop.permute.xlu0 %1091
        %1093 = vrot.lane.b32.xlu0 %v489, 88
        %v1094 = vpop.permute.xlu0 %1093
        %v1096 = vsel %vm464, %v1092, 0
        %v1099 = vsel %vm464, %v1094, 0
        %1101 = vmatpush.bf16.xpose.msra.mxu0 0
        %1102 = vmatpush.bf16.xpose.msra.mxu0 0
        %1103 = vmatpush.bf16.xpose.msra.mxu0 0
        %1104 = vmatpush.bf16.xpose.msra.mxu0 0
        %1105 = vmatpush.bf16.xpose.msra.mxu0 0
        %1106 = vmatpush.bf16.xpose.msra.mxu0 0
        %1107 = vmatpush.bf16.xpose.msra.mxu0 0
        %1108 = vmatpush.bf16.xpose.msra.mxu0 %v1099
        %1109 = vmatmul.bf16.gmra.mxu0 %v1096
        %v1110 = vpop.f32.mrf.mxu0
        %v1111 = vadd.f32 0.0, %v1110
        %v1112 = vpop.f32.mrf.mxu0
        %v1113 = vadd.f32 0.0, %v1112
        %1114 = vdwg.mxu0
        %1115 = vrot.lane.b32.xlu0 %v516, 120
        %v1116 = vpop.permute.xlu0 %1115
        %1117 = vrot.lane.b32.xlu0 %v516, 88
        %v1118 = vpop.permute.xlu0 %1117
        %v1120 = vsel %vm464, %v1116, 0
        %v1123 = vsel %vm464, %v1118, 0
        %1125 = vmatpush.bf16.xpose.msra.mxu0 0
        %1126 = vmatpush.bf16.xpose.msra.mxu0 0
        %1127 = vmatpush.bf16.xpose.msra.mxu0 0
        %1128 = vmatpush.bf16.xpose.msra.mxu0 0
        %1129 = vmatpush.bf16.xpose.msra.mxu0 0
        %1130 = vmatpush.bf16.xpose.msra.mxu0 0
        %1131 = vmatpush.bf16.xpose.msra.mxu0 0
        %1132 = vmatpush.bf16.xpose.msra.mxu0 %v1123
        %1133 = vmatmul.bf16.gmra.mxu0 %v1120
        %v1134 = vpop.f32.mrf.mxu0
        %v1135 = vadd.f32 0.0, %v1134
        %v1136 = vpop.f32.mrf.mxu0
        %v1137 = vadd.f32 0.0, %v1136
        %1138 = vdwg.mxu0
        %1139 = vrot.lane.b32.xlu0 %v543, 120
        %v1140 = vpop.permute.xlu0 %1139
        %1141 = vrot.lane.b32.xlu0 %v543, 88
        %v1142 = vpop.permute.xlu0 %1141
        %v1144 = vsel %vm464, %v1140, 0
        %v1147 = vsel %vm464, %v1142, 0
        %1149 = vmatpush.bf16.xpose.msra.mxu0 0
        %1150 = vmatpush.bf16.xpose.msra.mxu0 0
        %1151 = vmatpush.bf16.xpose.msra.mxu0 0
        %1152 = vmatpush.bf16.xpose.msra.mxu0 0
        %1153 = vmatpush.bf16.xpose.msra.mxu0 0
        %1154 = vmatpush.bf16.xpose.msra.mxu0 0
        %1155 = vmatpush.bf16.xpose.msra.mxu0 0
        %1156 = vmatpush.bf16.xpose.msra.mxu0 %v1147
        %1157 = vmatmul.bf16.gmra.mxu0 %v1144
        %v1158 = vpop.f32.mrf.mxu0
        %v1159 = vadd.f32 0.0, %v1158
        %v1160 = vpop.f32.mrf.mxu0
        %v1161 = vadd.f32 0.0, %v1160
        %1162 = vdwg.mxu0
        %1163 = vrot.lane.b32.xlu0 %v570, 120
        %v1164 = vpop.permute.xlu0 %1163
        %1165 = vrot.lane.b32.xlu0 %v570, 88
        %v1166 = vpop.permute.xlu0 %1165
        %v1168 = vsel %vm464, %v1164, 0
        %v1171 = vsel %vm464, %v1166, 0
        %1173 = vmatpush.bf16.xpose.msra.mxu0 0
        %1174 = vmatpush.bf16.xpose.msra.mxu0 0
        %1175 = vmatpush.bf16.xpose.msra.mxu0 0
        %1176 = vmatpush.bf16.xpose.msra.mxu0 0
        %1177 = vmatpush.bf16.xpose.msra.mxu0 0
        %1178 = vmatpush.bf16.xpose.msra.mxu0 0
        %1179 = vmatpush.bf16.xpose.msra.mxu0 0
        %1180 = vmatpush.bf16.xpose.msra.mxu0 %v1171
        %1181 = vmatmul.bf16.gmra.mxu0 %v1168
        %v1182 = vpop.f32.mrf.mxu0
        %v1183 = vadd.f32 0.0, %v1182
        %v1184 = vpop.f32.mrf.mxu0
        %v1185 = vadd.f32 0.0, %v1184
        %1186 = vdwg.mxu0
        %1187 = vrot.lane.b32.xlu0 %v597, 120
        %v1188 = vpop.permute.xlu0 %1187
        %1189 = vrot.lane.b32.xlu0 %v597, 88
        %v1190 = vpop.permute.xlu0 %1189
        %v1192 = vsel %vm464, %v1188, 0
        %v1195 = vsel %vm464, %v1190, 0
        %1197 = vmatpush.bf16.xpose.msra.mxu0 0
        %1198 = vmatpush.bf16.xpose.msra.mxu0 0
        %1199 = vmatpush.bf16.xpose.msra.mxu0 0
        %1200 = vmatpush.bf16.xpose.msra.mxu0 0
        %1201 = vmatpush.bf16.xpose.msra.mxu0 0
        %1202 = vmatpush.bf16.xpose.msra.mxu0 0
        %1203 = vmatpush.bf16.xpose.msra.mxu0 0
        %1204 = vmatpush.bf16.xpose.msra.mxu0 %v1195
        %1205 = vmatmul.bf16.gmra.mxu0 %v1192
        %v1206 = vpop.f32.mrf.mxu0
        %v1207 = vadd.f32 0.0, %v1206
        %v1208 = vpop.f32.mrf.mxu0
        %v1209 = vadd.f32 0.0, %v1208
        %1210 = vdwg.mxu0
        %1211 = vrot.lane.b32.xlu0 %v624, 120
        %v1212 = vpop.permute.xlu0 %1211
        %1213 = vrot.lane.b32.xlu0 %v624, 88
        %v1214 = vpop.permute.xlu0 %1213
        %v1216 = vsel %vm464, %v1212, 0
        %v1219 = vsel %vm464, %v1214, 0
        %1221 = vmatpush.bf16.xpose.msra.mxu0 0
        %1222 = vmatpush.bf16.xpose.msra.mxu0 0
        %1223 = vmatpush.bf16.xpose.msra.mxu0 0
        %1224 = vmatpush.bf16.xpose.msra.mxu0 0
        %1225 = vmatpush.bf16.xpose.msra.mxu0 0
        %1226 = vmatpush.bf16.xpose.msra.mxu0 0
        %1227 = vmatpush.bf16.xpose.msra.mxu0 0
        %1228 = vmatpush.bf16.xpose.msra.mxu0 %v1219
        %1229 = vmatmul.bf16.gmra.mxu0 %v1216
        %v1230 = vpop.f32.mrf.mxu0
        %v1231 = vadd.f32 0.0, %v1230
        %v1232 = vpop.f32.mrf.mxu0
        %v1233 = vadd.f32 0.0, %v1232
        %1234 = vdwg.mxu0
        %1235 = vrot.lane.b32.xlu0 %v651, 120
        %v1236 = vpop.permute.xlu0 %1235
        %1237 = vrot.lane.b32.xlu0 %v651, 88
        %v1238 = vpop.permute.xlu0 %1237
        %v1240 = vsel %vm464, %v1236, 0
        %v1243 = vsel %vm464, %v1238, 0
        %1245 = vmatpush.bf16.xpose.msra.mxu0 0
        %1246 = vmatpush.bf16.xpose.msra.mxu0 0
        %1247 = vmatpush.bf16.xpose.msra.mxu0 0
        %1248 = vmatpush.bf16.xpose.msra.mxu0 0
        %1249 = vmatpush.bf16.xpose.msra.mxu0 0
        %1250 = vmatpush.bf16.xpose.msra.mxu0 0
        %1251 = vmatpush.bf16.xpose.msra.mxu0 0
        %1252 = vmatpush.bf16.xpose.msra.mxu0 %v1243
        %1253 = vmatmul.bf16.gmra.mxu0 %v1240
        %v1254 = vpop.f32.mrf.mxu0
        %v1255 = vadd.f32 0.0, %v1254
        %v1256 = vpop.f32.mrf.mxu0
        %v1257 = vadd.f32 0.0, %v1256
        %1258 = vdwg.mxu0
        %v1259 = vsel %vm674, %v1087, -inf
        %1260 = vmax.xlane.f32.xlu0 %v1259
        %v1261 = vpop.xlane.xlu0 %1260
        %v1262 = vsel %vm674, %v1089, -inf
        %1263 = vmax.xlane.f32.xlu0 %v1262
        %v1264 = vpop.xlane.xlu0 %1263
        %v1265 = vsel %vm674, %v1111, -inf
        %1266 = vmax.xlane.f32.xlu0 %v1265
        %v1267 = vpop.xlane.xlu0 %1266
        %v1268 = vsel %vm674, %v1113, -inf
        %1269 = vmax.xlane.f32.xlu0 %v1268
        %v1270 = vpop.xlane.xlu0 %1269
        %v1271 = vsel %vm674, %v1135, -inf
        %1272 = vmax.xlane.f32.xlu0 %v1271
        %v1273 = vpop.xlane.xlu0 %1272
        %v1274 = vsel %vm674, %v1137, -inf
        %1275 = vmax.xlane.f32.xlu0 %v1274
        %v1276 = vpop.xlane.xlu0 %1275
        %v1277 = vsel %vm674, %v1159, -inf
        %1278 = vmax.xlane.f32.xlu0 %v1277
        %v1279 = vpop.xlane.xlu0 %1278
        %v1280 = vsel %vm674, %v1161, -inf
        %1281 = vmax.xlane.f32.xlu0 %v1280
        %v1282 = vpop.xlane.xlu0 %1281
        %v1283 = vsel %vm674, %v1183, -inf
        %1284 = vmax.xlane.f32.xlu0 %v1283
        %v1285 = vpop.xlane.xlu0 %1284
        %v1286 = vsel %vm674, %v1185, -inf
        %1287 = vmax.xlane.f32.xlu0 %v1286
        %v1288 = vpop.xlane.xlu0 %1287
        %v1289 = vsel %vm674, %v1207, -inf
        %1290 = vmax.xlane.f32.xlu0 %v1289
        %v1291 = vpop.xlane.xlu0 %1290
        %v1292 = vsel %vm674, %v1209, -inf
        %1293 = vmax.xlane.f32.xlu0 %v1292
        %v1294 = vpop.xlane.xlu0 %1293
        %v1295 = vsel %vm674, %v1231, -inf
        %1296 = vmax.xlane.f32.xlu0 %v1295
        %v1297 = vpop.xlane.xlu0 %1296
        %v1298 = vsel %vm674, %v1233, -inf
        %1299 = vmax.xlane.f32.xlu0 %v1298
        %v1300 = vpop.xlane.xlu0 %1299
        %v1301 = vsel %vm674, %v1255, -inf
        %1302 = vmax.xlane.f32.xlu0 %v1301
        %v1303 = vpop.xlane.xlu0 %1302
        %v1304 = vsel %vm674, %v1257, -inf
        %1305 = vmax.xlane.f32.xlu0 %v1304
        %v1306 = vpop.xlane.xlu0 %1305
        %v1307 = vsub.f32 %v1087, %v1261
        %v1308 = vsub.f32 %v1089, %v1264
        %v1309 = vsub.f32 %v1111, %v1267
        %v1310 = vsub.f32 %v1113, %v1270
        %v1311 = vsub.f32 %v1135, %v1273
        %v1312 = vsub.f32 %v1137, %v1276
        %v1313 = vsub.f32 %v1159, %v1279
        %v1314 = vsub.f32 %v1161, %v1282
        %v1315 = vsub.f32 %v1183, %v1285
        %v1316 = vsub.f32 %v1185, %v1288
        %v1317 = vsub.f32 %v1207, %v1291
        %v1318 = vsub.f32 %v1209, %v1294
        %v1319 = vsub.f32 %v1231, %v1297
        %v1320 = vsub.f32 %v1233, %v1300
        %v1321 = vsub.f32 %v1255, %v1303
        %v1322 = vsub.f32 %v1257, %v1306
        %v1323 = vmul.f32 %v1307, 1.442695
        %v1324 = vpow.pop %v1323
        %v1325 = vmul.f32 %v1308, 1.442695
        %v1326 = vpow.pop %v1325
        %v1327 = vmul.f32 %v1309, 1.442695
        %v1328 = vpow.pop %v1327
        %v1329 = vmul.f32 %v1310, 1.442695
        %v1330 = vpow.pop %v1329
        %v1331 = vmul.f32 %v1311, 1.442695
        %v1332 = vpow.pop %v1331
        %v1333 = vmul.f32 %v1312, 1.442695
        %v1334 = vpow.pop %v1333
        %v1335 = vmul.f32 %v1313, 1.442695
        %v1336 = vpow.pop %v1335
        %v1337 = vmul.f32 %v1314, 1.442695
        %v1338 = vpow.pop %v1337
        %v1339 = vmul.f32 %v1315, 1.442695
        %v1340 = vpow.pop %v1339
        %v1341 = vmul.f32 %v1316, 1.442695
        %v1342 = vpow.pop %v1341
        %v1343 = vmul.f32 %v1317, 1.442695
        %v1344 = vpow.pop %v1343
        %v1345 = vmul.f32 %v1318, 1.442695
        %v1346 = vpow.pop %v1345
        %v1347 = vmul.f32 %v1319, 1.442695
        %v1348 = vpow.pop %v1347
        %v1349 = vmul.f32 %v1320, 1.442695
        %v1350 = vpow.pop %v1349
        %v1351 = vmul.f32 %v1321, 1.442695
        %v1352 = vpow.pop %v1351
        %v1353 = vmul.f32 %v1322, 1.442695
        %v1354 = vpow.pop %v1353
        %v1355 = vsel %vm674, %v1324, 0.0
        %1356 = vadd.xlane.f32.xlu0 %v1355
        %v1357 = vpop.xlane.xlu0 %1356
        %v1358 = vsel %vm674, %v1326, 0.0
        %1359 = vadd.xlane.f32.xlu0 %v1358
        %v1360 = vpop.xlane.xlu0 %1359
        %v1361 = vsel %vm674, %v1328, 0.0
        %1362 = vadd.xlane.f32.xlu0 %v1361
        %v1363 = vpop.xlane.xlu0 %1362
        %v1364 = vsel %vm674, %v1330, 0.0
        %1365 = vadd.xlane.f32.xlu0 %v1364
        %v1366 = vpop.xlane.xlu0 %1365
        %v1367 = vsel %vm674, %v1332, 0.0
        %1368 = vadd.xlane.f32.xlu0 %v1367
        %v1369 = vpop.xlane.xlu0 %1368
        %v1370 = vsel %vm674, %v1334, 0.0
        %1371 = vadd.xlane.f32.xlu0 %v1370
        %v1372 = vpop.xlane.xlu0 %1371
        %v1373 = vsel %vm674, %v1336, 0.0
        %1374 = vadd.xlane.f32.xlu0 %v1373
        %v1375 = vpop.xlane.xlu0 %1374
        %v1376 = vsel %vm674, %v1338, 0.0
        %1377 = vadd.xlane.f32.xlu0 %v1376
        %v1378 = vpop.xlane.xlu0 %1377
        %v1379 = vsel %vm674, %v1340, 0.0
        %1380 = vadd.xlane.f32.xlu0 %v1379
        %v1381 = vpop.xlane.xlu0 %1380
        %v1382 = vsel %vm674, %v1342, 0.0
        %1383 = vadd.xlane.f32.xlu0 %v1382
        %v1384 = vpop.xlane.xlu0 %1383
        %v1385 = vsel %vm674, %v1344, 0.0
        %1386 = vadd.xlane.f32.xlu0 %v1385
        %v1387 = vpop.xlane.xlu0 %1386
        %v1388 = vsel %vm674, %v1346, 0.0
        %1389 = vadd.xlane.f32.xlu0 %v1388
        %v1390 = vpop.xlane.xlu0 %1389
        %v1391 = vsel %vm674, %v1348, 0.0
        %1392 = vadd.xlane.f32.xlu0 %v1391
        %v1393 = vpop.xlane.xlu0 %1392
        %v1394 = vsel %vm674, %v1350, 0.0
        %1395 = vadd.xlane.f32.xlu0 %v1394
        %v1396 = vpop.xlane.xlu0 %1395
        %v1397 = vsel %vm674, %v1352, 0.0
        %1398 = vadd.xlane.f32.xlu0 %v1397
        %v1399 = vpop.xlane.xlu0 %1398
        %v1400 = vsel %vm674, %v1354, 0.0
        %1401 = vadd.xlane.f32.xlu0 %v1400
        %v1402 = vpop.xlane.xlu0 %1401
        %v1403 = vrcp.pop %v1357
        %v1404 = vrcp.pop %v1360
        %v1405 = vrcp.pop %v1363
        %v1406 = vrcp.pop %v1366
        %v1407 = vrcp.pop %v1369
        %v1408 = vrcp.pop %v1372
        %v1409 = vrcp.pop %v1375
        %v1410 = vrcp.pop %v1378
        %v1411 = vrcp.pop %v1381
        %v1412 = vrcp.pop %v1384
        %v1413 = vrcp.pop %v1387
        %v1414 = vrcp.pop %v1390
        %v1415 = vrcp.pop %v1393
        %v1416 = vrcp.pop %v1396
        %v1417 = vrcp.pop %v1399
        %v1418 = vrcp.pop %v1402
        %v1419 = vmul.f32 %v1324, %v1403
        %v1420 = vmul.f32 %v1326, %v1404
        %v1421 = vmul.f32 %v1328, %v1405
        %v1422 = vmul.f32 %v1330, %v1406
        %v1423 = vmul.f32 %v1332, %v1407
        %v1424 = vmul.f32 %v1334, %v1408
        %v1425 = vmul.f32 %v1336, %v1409
        %v1426 = vmul.f32 %v1338, %v1410
        %v1427 = vmul.f32 %v1340, %v1411
        %v1428 = vmul.f32 %v1342, %v1412
        %v1429 = vmul.f32 %v1344, %v1413
        %v1430 = vmul.f32 %v1346, %v1414
        %v1431 = vmul.f32 %v1348, %v1415
        %v1432 = vmul.f32 %v1350, %v1416
        %v1433 = vmul.f32 %v1352, %v1417
        %v1434 = vmul.f32 %v1354, %v1418
        %v1435 = vpack.c.bf16 %v1419, %v1419
        %v1436 = vpack.c.bf16 %v1420, %v1420
        %v1437 = vpack.c.bf16 %v1421, %v1421
        %v1438 = vpack.c.bf16 %v1422, %v1422
        %v1439 = vpack.c.bf16 %v1423, %v1423
        %v1440 = vpack.c.bf16 %v1424, %v1424
        %v1441 = vpack.c.bf16 %v1425, %v1425
        %v1442 = vpack.c.bf16 %v1426, %v1426
        %v1443 = vpack.c.bf16 %v1427, %v1427
        %v1444 = vpack.c.bf16 %v1428, %v1428
        %v1445 = vpack.c.bf16 %v1429, %v1429
        %v1446 = vpack.c.bf16 %v1430, %v1430
        %v1447 = vpack.c.bf16 %v1431, %v1431
        %v1448 = vpack.c.bf16 %v1432, %v1432
        %v1449 = vpack.c.bf16 %v1433, %v1433
        %v1450 = vpack.c.bf16 %v1434, %v1434
        %v1453 = vunpack.c.l.b16 %v1435
        %v1454 = vunpack.c.l.b16 %v1436
        %v1455 = vpack.c.b16 %v1454, %v1453
        %1456 = vrot.lane.b32.xlu0 %v461, 56
        %v1457 = vpop.permute.xlu0 %1456
        %v1460 = vsel %vm674, %v1455, 0
        %1462 = vmatpush.bf16.msra.mxu0 0
        %1463 = vmatpush.bf16.msra.mxu0 0
        %1464 = vmatpush.bf16.msra.mxu0 0
        %1465 = vmatpush.bf16.msra.mxu0 0
        %1466 = vmatpush.bf16.msra.mxu0 0
        %1467 = vmatpush.bf16.msra.mxu0 0
        %1468 = vmatpush.bf16.msra.mxu0 0
        %1469 = vmatpush.bf16.msra.mxu0 %v1457
        %1470 = vmatmul.bf16.gmra.mxu0 %v1460
        %v1471 = vpop.f32.mrf.mxu0
        %v1472 = vadd.f32 0.0, %v1471
        %v1473 = vpop.f32.mrf.mxu0
        %v1474 = vadd.f32 0.0, %v1473
        %1475 = vdwg.mxu0
        %v1478 = vunpack.c.l.b16 %v1437
        %v1479 = vunpack.c.l.b16 %v1438
        %v1480 = vpack.c.b16 %v1479, %v1478
        %1481 = vrot.lane.b32.xlu0 %v489, 56
        %v1482 = vpop.permute.xlu0 %1481
        %v1485 = vsel %vm674, %v1480, 0
        %1487 = vmatpush.bf16.msra.mxu0 0
        %1488 = vmatpush.bf16.msra.mxu0 0
        %1489 = vmatpush.bf16.msra.mxu0 0
        %1490 = vmatpush.bf16.msra.mxu0 0
        %1491 = vmatpush.bf16.msra.mxu0 0
        %1492 = vmatpush.bf16.msra.mxu0 0
        %1493 = vmatpush.bf16.msra.mxu0 0
        %1494 = vmatpush.bf16.msra.mxu0 %v1482
        %1495 = vmatmul.bf16.gmra.mxu0 %v1485
        %v1496 = vpop.f32.mrf.mxu0
        %v1497 = vadd.f32 0.0, %v1496
        %v1498 = vpop.f32.mrf.mxu0
        %v1499 = vadd.f32 0.0, %v1498
        %1500 = vdwg.mxu0
        %v1503 = vunpack.c.l.b16 %v1439
        %v1504 = vunpack.c.l.b16 %v1440
        %v1505 = vpack.c.b16 %v1504, %v1503
        %1506 = vrot.lane.b32.xlu0 %v516, 56
        %v1507 = vpop.permute.xlu0 %1506
        %v1510 = vsel %vm674, %v1505, 0
        %1512 = vmatpush.bf16.msra.mxu0 0
        %1513 = vmatpush.bf16.msra.mxu0 0
        %1514 = vmatpush.bf16.msra.mxu0 0
        %1515 = vmatpush.bf16.msra.mxu0 0
        %1516 = vmatpush.bf16.msra.mxu0 0
        %1517 = vmatpush.bf16.msra.mxu0 0
        %1518 = vmatpush.bf16.msra.mxu0 0
        %1519 = vmatpush.bf16.msra.mxu0 %v1507
        %1520 = vmatmul.bf16.gmra.mxu0 %v1510
        %v1521 = vpop.f32.mrf.mxu0
        %v1522 = vadd.f32 0.0, %v1521
        %v1523 = vpop.f32.mrf.mxu0
        %v1524 = vadd.f32 0.0, %v1523
        %1525 = vdwg.mxu0
        %v1528 = vunpack.c.l.b16 %v1441
        %v1529 = vunpack.c.l.b16 %v1442
        %v1530 = vpack.c.b16 %v1529, %v1528
        %1531 = vrot.lane.b32.xlu0 %v543, 56
        %v1532 = vpop.permute.xlu0 %1531
        %v1535 = vsel %vm674, %v1530, 0
        %1537 = vmatpush.bf16.msra.mxu0 0
        %1538 = vmatpush.bf16.msra.mxu0 0
        %1539 = vmatpush.bf16.msra.mxu0 0
        %1540 = vmatpush.bf16.msra.mxu0 0
        %1541 = vmatpush.bf16.msra.mxu0 0
        %1542 = vmatpush.bf16.msra.mxu0 0
        %1543 = vmatpush.bf16.msra.mxu0 0
        %1544 = vmatpush.bf16.msra.mxu0 %v1532
        %1545 = vmatmul.bf16.gmra.mxu0 %v1535
        %v1546 = vpop.f32.mrf.mxu0
        %v1547 = vadd.f32 0.0, %v1546
        %v1548 = vpop.f32.mrf.mxu0
        %v1549 = vadd.f32 0.0, %v1548
        %1550 = vdwg.mxu0
        %v1553 = vunpack.c.l.b16 %v1443
        %v1554 = vunpack.c.l.b16 %v1444
        %v1555 = vpack.c.b16 %v1554, %v1553
        %1556 = vrot.lane.b32.xlu0 %v570, 56
        %v1557 = vpop.permute.xlu0 %1556
        %v1560 = vsel %vm674, %v1555, 0
        %1562 = vmatpush.bf16.msra.mxu0 0
        %1563 = vmatpush.bf16.msra.mxu0 0
        %1564 = vmatpush.bf16.msra.mxu0 0
        %1565 = vmatpush.bf16.msra.mxu0 0
        %1566 = vmatpush.bf16.msra.mxu0 0
        %1567 = vmatpush.bf16.msra.mxu0 0
        %1568 = vmatpush.bf16.msra.mxu0 0
        %1569 = vmatpush.bf16.msra.mxu0 %v1557
        %1570 = vmatmul.bf16.gmra.mxu0 %v1560
        %v1571 = vpop.f32.mrf.mxu0
        %v1572 = vadd.f32 0.0, %v1571
        %v1573 = vpop.f32.mrf.mxu0
        %v1574 = vadd.f32 0.0, %v1573
        %1575 = vdwg.mxu0
        %v1578 = vunpack.c.l.b16 %v1445
        %v1579 = vunpack.c.l.b16 %v1446
        %v1580 = vpack.c.b16 %v1579, %v1578
        %1581 = vrot.lane.b32.xlu0 %v597, 56
        %v1582 = vpop.permute.xlu0 %1581
        %v1585 = vsel %vm674, %v1580, 0
        %1587 = vmatpush.bf16.msra.mxu0 0
        %1588 = vmatpush.bf16.msra.mxu0 0
        %1589 = vmatpush.bf16.msra.mxu0 0
        %1590 = vmatpush.bf16.msra.mxu0 0
        %1591 = vmatpush.bf16.msra.mxu0 0
        %1592 = vmatpush.bf16.msra.mxu0 0
        %1593 = vmatpush.bf16.msra.mxu0 0
        %1594 = vmatpush.bf16.msra.mxu0 %v1582
        %1595 = vmatmul.bf16.gmra.mxu0 %v1585
        %v1596 = vpop.f32.mrf.mxu0
        %v1597 = vadd.f32 0.0, %v1596
        %v1598 = vpop.f32.mrf.mxu0
        %v1599 = vadd.f32 0.0, %v1598
        %1600 = vdwg.mxu0
        %v1603 = vunpack.c.l.b16 %v1447
        %v1604 = vunpack.c.l.b16 %v1448
        %v1605 = vpack.c.b16 %v1604, %v1603
        %1606 = vrot.lane.b32.xlu0 %v624, 56
        %v1607 = vpop.permute.xlu0 %1606
        %v1610 = vsel %vm674, %v1605, 0
        %1612 = vmatpush.bf16.msra.mxu0 0
        %1613 = vmatpush.bf16.msra.mxu0 0
        %1614 = vmatpush.bf16.msra.mxu0 0
        %1615 = vmatpush.bf16.msra.mxu0 0
        %1616 = vmatpush.bf16.msra.mxu0 0
        %1617 = vmatpush.bf16.msra.mxu0 0
        %1618 = vmatpush.bf16.msra.mxu0 0
        %1619 = vmatpush.bf16.msra.mxu0 %v1607
        %1620 = vmatmul.bf16.gmra.mxu0 %v1610
        %v1621 = vpop.f32.mrf.mxu0
        %v1622 = vadd.f32 0.0, %v1621
        %v1623 = vpop.f32.mrf.mxu0
        %v1624 = vadd.f32 0.0, %v1623
        %1625 = vdwg.mxu0
        %v1628 = vunpack.c.l.b16 %v1449
        %v1629 = vunpack.c.l.b16 %v1450
        %v1630 = vpack.c.b16 %v1629, %v1628
        %1631 = vrot.lane.b32.xlu0 %v651, 56
        %v1632 = vpop.permute.xlu0 %1631
        %v1635 = vsel %vm674, %v1630, 0
        %1637 = vmatpush.bf16.msra.mxu0 0
        %1638 = vmatpush.bf16.msra.mxu0 0
        %1639 = vmatpush.bf16.msra.mxu0 0
        %1640 = vmatpush.bf16.msra.mxu0 0
        %1641 = vmatpush.bf16.msra.mxu0 0
        %1642 = vmatpush.bf16.msra.mxu0 0
        %1643 = vmatpush.bf16.msra.mxu0 0
        %1644 = vmatpush.bf16.msra.mxu0 %v1632
        %1645 = vmatmul.bf16.gmra.mxu0 %v1635
        %v1646 = vpop.f32.mrf.mxu0
        %v1647 = vadd.f32 0.0, %v1646
        %v1648 = vpop.f32.mrf.mxu0
        %v1649 = vadd.f32 0.0, %v1648
        %1650 = vdwg.mxu0
        %1651 = vrot.lane.b32.xlu0 %v461, 112
        %v1652 = vpop.permute.xlu0 %1651
        %1653 = vrot.lane.b32.xlu0 %v461, 80
        %v1654 = vpop.permute.xlu0 %1653
        %v1656 = vsel %vm464, %v1652, 0
        %v1659 = vsel %vm464, %v1654, 0
        %1661 = vmatpush.bf16.xpose.msra.mxu0 0
        %1662 = vmatpush.bf16.xpose.msra.mxu0 0
        %1663 = vmatpush.bf16.xpose.msra.mxu0 0
        %1664 = vmatpush.bf16.xpose.msra.mxu0 0
        %1665 = vmatpush.bf16.xpose.msra.mxu0 0
        %1666 = vmatpush.bf16.xpose.msra.mxu0 0
        %1667 = vmatpush.bf16.xpose.msra.mxu0 0
        %1668 = vmatpush.bf16.xpose.msra.mxu0 %v1659
        %1669 = vmatmul.bf16.gmra.mxu0 %v1656
        %v1670 = vpop.f32.mrf.mxu0
        %v1671 = vadd.f32 0.0, %v1670
        %v1672 = vpop.f32.mrf.mxu0
        %v1673 = vadd.f32 0.0, %v1672
        %1674 = vdwg.mxu0
        %1675 = vrot.lane.b32.xlu0 %v489, 112
        %v1676 = vpop.permute.xlu0 %1675
        %1677 = vrot.lane.b32.xlu0 %v489, 80
        %v1678 = vpop.permute.xlu0 %1677
        %v1680 = vsel %vm464, %v1676, 0
        %v1683 = vsel %vm464, %v1678, 0
        %1685 = vmatpush.bf16.xpose.msra.mxu0 0
        %1686 = vmatpush.bf16.xpose.msra.mxu0 0
        %1687 = vmatpush.bf16.xpose.msra.mxu0 0
        %1688 = vmatpush.bf16.xpose.msra.mxu0 0
        %1689 = vmatpush.bf16.xpose.msra.mxu0 0
        %1690 = vmatpush.bf16.xpose.msra.mxu0 0
        %1691 = vmatpush.bf16.xpose.msra.mxu0 0
        %1692 = vmatpush.bf16.xpose.msra.mxu0 %v1683
        %1693 = vmatmul.bf16.gmra.mxu0 %v1680
        %v1694 = vpop.f32.mrf.mxu0
        %v1695 = vadd.f32 0.0, %v1694
        %v1696 = vpop.f32.mrf.mxu0
        %v1697 = vadd.f32 0.0, %v1696
        %1698 = vdwg.mxu0
        %1699 = vrot.lane.b32.xlu0 %v516, 112
        %v1700 = vpop.permute.xlu0 %1699
        %1701 = vrot.lane.b32.xlu0 %v516, 80
        %v1702 = vpop.permute.xlu0 %1701
        %v1704 = vsel %vm464, %v1700, 0
        %v1707 = vsel %vm464, %v1702, 0
        %1709 = vmatpush.bf16.xpose.msra.mxu0 0
        %1710 = vmatpush.bf16.xpose.msra.mxu0 0
        %1711 = vmatpush.bf16.xpose.msra.mxu0 0
        %1712 = vmatpush.bf16.xpose.msra.mxu0 0
        %1713 = vmatpush.bf16.xpose.msra.mxu0 0
        %1714 = vmatpush.bf16.xpose.msra.mxu0 0
        %1715 = vmatpush.bf16.xpose.msra.mxu0 0
        %1716 = vmatpush.bf16.xpose.msra.mxu0 %v1707
        %1717 = vmatmul.bf16.gmra.mxu0 %v1704
        %v1718 = vpop.f32.mrf.mxu0
        %v1719 = vadd.f32 0.0, %v1718
        %v1720 = vpop.f32.mrf.mxu0
        %v1721 = vadd.f32 0.0, %v1720
        %1722 = vdwg.mxu0
        %1723 = vrot.lane.b32.xlu0 %v543, 112
        %v1724 = vpop.permute.xlu0 %1723
        %1725 = vrot.lane.b32.xlu0 %v543, 80
        %v1726 = vpop.permute.xlu0 %1725
        %v1728 = vsel %vm464, %v1724, 0
        %v1731 = vsel %vm464, %v1726, 0
        %1733 = vmatpush.bf16.xpose.msra.mxu0 0
        %1734 = vmatpush.bf16.xpose.msra.mxu0 0
        %1735 = vmatpush.bf16.xpose.msra.mxu0 0
        %1736 = vmatpush.bf16.xpose.msra.mxu0 0
        %1737 = vmatpush.bf16.xpose.msra.mxu0 0
        %1738 = vmatpush.bf16.xpose.msra.mxu0 0
        %1739 = vmatpush.bf16.xpose.msra.mxu0 0
        %1740 = vmatpush.bf16.xpose.msra.mxu0 %v1731
        %1741 = vmatmul.bf16.gmra.mxu0 %v1728
        %v1742 = vpop.f32.mrf.mxu0
        %v1743 = vadd.f32 0.0, %v1742
        %v1744 = vpop.f32.mrf.mxu0
        %v1745 = vadd.f32 0.0, %v1744
        %1746 = vdwg.mxu0
        %1747 = vrot.lane.b32.xlu0 %v570, 112
        %v1748 = vpop.permute.xlu0 %1747
        %1749 = vrot.lane.b32.xlu0 %v570, 80
        %v1750 = vpop.permute.xlu0 %1749
        %v1752 = vsel %vm464, %v1748, 0
        %v1755 = vsel %vm464, %v1750, 0
        %1757 = vmatpush.bf16.xpose.msra.mxu0 0
        %1758 = vmatpush.bf16.xpose.msra.mxu0 0
        %1759 = vmatpush.bf16.xpose.msra.mxu0 0
        %1760 = vmatpush.bf16.xpose.msra.mxu0 0
        %1761 = vmatpush.bf16.xpose.msra.mxu0 0
        %1762 = vmatpush.bf16.xpose.msra.mxu0 0
        %1763 = vmatpush.bf16.xpose.msra.mxu0 0
        %1764 = vmatpush.bf16.xpose.msra.mxu0 %v1755
        %1765 = vmatmul.bf16.gmra.mxu0 %v1752
        %v1766 = vpop.f32.mrf.mxu0
        %v1767 = vadd.f32 0.0, %v1766
        %v1768 = vpop.f32.mrf.mxu0
        %v1769 = vadd.f32 0.0, %v1768
        %1770 = vdwg.mxu0
        %1771 = vrot.lane.b32.xlu0 %v597, 112
        %v1772 = vpop.permute.xlu0 %1771
        %1773 = vrot.lane.b32.xlu0 %v597, 80
        %v1774 = vpop.permute.xlu0 %1773
        %v1776 = vsel %vm464, %v1772, 0
        %v1779 = vsel %vm464, %v1774, 0
        %1781 = vmatpush.bf16.xpose.msra.mxu0 0
        %1782 = vmatpush.bf16.xpose.msra.mxu0 0
        %1783 = vmatpush.bf16.xpose.msra.mxu0 0
        %1784 = vmatpush.bf16.xpose.msra.mxu0 0
        %1785 = vmatpush.bf16.xpose.msra.mxu0 0
        %1786 = vmatpush.bf16.xpose.msra.mxu0 0
        %1787 = vmatpush.bf16.xpose.msra.mxu0 0
        %1788 = vmatpush.bf16.xpose.msra.mxu0 %v1779
        %1789 = vmatmul.bf16.gmra.mxu0 %v1776
        %v1790 = vpop.f32.mrf.mxu0
        %v1791 = vadd.f32 0.0, %v1790
        %v1792 = vpop.f32.mrf.mxu0
        %v1793 = vadd.f32 0.0, %v1792
        %1794 = vdwg.mxu0
        %1795 = vrot.lane.b32.xlu0 %v624, 112
        %v1796 = vpop.permute.xlu0 %1795
        %1797 = vrot.lane.b32.xlu0 %v624, 80
        %v1798 = vpop.permute.xlu0 %1797
        %v1800 = vsel %vm464, %v1796, 0
        %v1803 = vsel %vm464, %v1798, 0
        %1805 = vmatpush.bf16.xpose.msra.mxu0 0
        %1806 = vmatpush.bf16.xpose.msra.mxu0 0
        %1807 = vmatpush.bf16.xpose.msra.mxu0 0
        %1808 = vmatpush.bf16.xpose.msra.mxu0 0
        %1809 = vmatpush.bf16.xpose.msra.mxu0 0
        %1810 = vmatpush.bf16.xpose.msra.mxu0 0
        %1811 = vmatpush.bf16.xpose.msra.mxu0 0
        %1812 = vmatpush.bf16.xpose.msra.mxu0 %v1803
        %1813 = vmatmul.bf16.gmra.mxu0 %v1800
        %v1814 = vpop.f32.mrf.mxu0
        %v1815 = vadd.f32 0.0, %v1814
        %v1816 = vpop.f32.mrf.mxu0
        %v1817 = vadd.f32 0.0, %v1816
        %1818 = vdwg.mxu0
        %1819 = vrot.lane.b32.xlu0 %v651, 112
        %v1820 = vpop.permute.xlu0 %1819
        %1821 = vrot.lane.b32.xlu0 %v651, 80
        %v1822 = vpop.permute.xlu0 %1821
        %v1824 = vsel %vm464, %v1820, 0
        %v1827 = vsel %vm464, %v1822, 0
        %1829 = vmatpush.bf16.xpose.msra.mxu0 0
        %1830 = vmatpush.bf16.xpose.msra.mxu0 0
        %1831 = vmatpush.bf16.xpose.msra.mxu0 0
        %1832 = vmatpush.bf16.xpose.msra.mxu0 0
        %1833 = vmatpush.bf16.xpose.msra.mxu0 0
        %1834 = vmatpush.bf16.xpose.msra.mxu0 0
        %1835 = vmatpush.bf16.xpose.msra.mxu0 0
        %1836 = vmatpush.bf16.xpose.msra.mxu0 %v1827
        %1837 = vmatmul.bf16.gmra.mxu0 %v1824
        %v1838 = vpop.f32.mrf.mxu0
        %v1839 = vadd.f32 0.0, %v1838
        %v1840 = vpop.f32.mrf.mxu0
        %v1841 = vadd.f32 0.0, %v1840
        %1842 = vdwg.mxu0
        %v1843 = vsel %vm674, %v1671, -inf
        %1844 = vmax.xlane.f32.xlu0 %v1843
        %v1845 = vpop.xlane.xlu0 %1844
        %v1846 = vsel %vm674, %v1673, -inf
        %1847 = vmax.xlane.f32.xlu0 %v1846
        %v1848 = vpop.xlane.xlu0 %1847
        %v1849 = vsel %vm674, %v1695, -inf
        %1850 = vmax.xlane.f32.xlu0 %v1849
        %v1851 = vpop.xlane.xlu0 %1850
        %v1852 = vsel %vm674, %v1697, -inf
        %1853 = vmax.xlane.f32.xlu0 %v1852
        %v1854 = vpop.xlane.xlu0 %1853
        %v1855 = vsel %vm674, %v1719, -inf
        %1856 = vmax.xlane.f32.xlu0 %v1855
        %v1857 = vpop.xlane.xlu0 %1856
        %v1858 = vsel %vm674, %v1721, -inf
        %1859 = vmax.xlane.f32.xlu0 %v1858
        %v1860 = vpop.xlane.xlu0 %1859
        %v1861 = vsel %vm674, %v1743, -inf
        %1862 = vmax.xlane.f32.xlu0 %v1861
        %v1863 = vpop.xlane.xlu0 %1862
        %v1864 = vsel %vm674, %v1745, -inf
        %1865 = vmax.xlane.f32.xlu0 %v1864
        %v1866 = vpop.xlane.xlu0 %1865
        %v1867 = vsel %vm674, %v1767, -inf
        %1868 = vmax.xlane.f32.xlu0 %v1867
        %v1869 = vpop.xlane.xlu0 %1868
        %v1870 = vsel %vm674, %v1769, -inf
        %1871 = vmax.xlane.f32.xlu0 %v1870
        %v1872 = vpop.xlane.xlu0 %1871
        %v1873 = vsel %vm674, %v1791, -inf
        %1874 = vmax.xlane.f32.xlu0 %v1873
        %v1875 = vpop.xlane.xlu0 %1874
        %v1876 = vsel %vm674, %v1793, -inf
        %1877 = vmax.xlane.f32.xlu0 %v1876
        %v1878 = vpop.xlane.xlu0 %1877
        %v1879 = vsel %vm674, %v1815, -inf
        %1880 = vmax.xlane.f32.xlu0 %v1879
        %v1881 = vpop.xlane.xlu0 %1880
        %v1882 = vsel %vm674, %v1817, -inf
        %1883 = vmax.xlane.f32.xlu0 %v1882
        %v1884 = vpop.xlane.xlu0 %1883
        %v1885 = vsel %vm674, %v1839, -inf
        %1886 = vmax.xlane.f32.xlu0 %v1885
        %v1887 = vpop.xlane.xlu0 %1886
        %v1888 = vsel %vm674, %v1841, -inf
        %1889 = vmax.xlane.f32.xlu0 %v1888
        %v1890 = vpop.xlane.xlu0 %1889
        %v1891 = vsub.f32 %v1671, %v1845
        %v1892 = vsub.f32 %v1673, %v1848
        %v1893 = vsub.f32 %v1695, %v1851
        %v1894 = vsub.f32 %v1697, %v1854
        %v1895 = vsub.f32 %v1719, %v1857
        %v1896 = vsub.f32 %v1721, %v1860
        %v1897 = vsub.f32 %v1743, %v1863
        %v1898 = vsub.f32 %v1745, %v1866
        %v1899 = vsub.f32 %v1767, %v1869
        %v1900 = vsub.f32 %v1769, %v1872
        %v1901 = vsub.f32 %v1791, %v1875
        %v1902 = vsub.f32 %v1793, %v1878
        %v1903 = vsub.f32 %v1815, %v1881
        %v1904 = vsub.f32 %v1817, %v1884
        %v1905 = vsub.f32 %v1839, %v1887
        %v1906 = vsub.f32 %v1841, %v1890
        %v1907 = vmul.f32 %v1891, 1.442695
        %v1908 = vpow.pop %v1907
        %v1909 = vmul.f32 %v1892, 1.442695
        %v1910 = vpow.pop %v1909
        %v1911 = vmul.f32 %v1893, 1.442695
        %v1912 = vpow.pop %v1911
        %v1913 = vmul.f32 %v1894, 1.442695
        %v1914 = vpow.pop %v1913
        %v1915 = vmul.f32 %v1895, 1.442695
        %v1916 = vpow.pop %v1915
        %v1917 = vmul.f32 %v1896, 1.442695
        %v1918 = vpow.pop %v1917
        %v1919 = vmul.f32 %v1897, 1.442695
        %v1920 = vpow.pop %v1919
        %v1921 = vmul.f32 %v1898, 1.442695
        %v1922 = vpow.pop %v1921
        %v1923 = vmul.f32 %v1899, 1.442695
        %v1924 = vpow.pop %v1923
        %v1925 = vmul.f32 %v1900, 1.442695
        %v1926 = vpow.pop %v1925
        %v1927 = vmul.f32 %v1901, 1.442695
        %v1928 = vpow.pop %v1927
        %v1929 = vmul.f32 %v1902, 1.442695
        %v1930 = vpow.pop %v1929
        %v1931 = vmul.f32 %v1903, 1.442695
        %v1932 = vpow.pop %v1931
        %v1933 = vmul.f32 %v1904, 1.442695
        %v1934 = vpow.pop %v1933
        %v1935 = vmul.f32 %v1905, 1.442695
        %v1936 = vpow.pop %v1935
        %v1937 = vmul.f32 %v1906, 1.442695
        %v1938 = vpow.pop %v1937
        %v1939 = vsel %vm674, %v1908, 0.0
        %1940 = vadd.xlane.f32.xlu0 %v1939
        %v1941 = vpop.xlane.xlu0 %1940
        %v1942 = vsel %vm674, %v1910, 0.0
        %1943 = vadd.xlane.f32.xlu0 %v1942
        %v1944 = vpop.xlane.xlu0 %1943
        %v1945 = vsel %vm674, %v1912, 0.0
        %1946 = vadd.xlane.f32.xlu0 %v1945
        %v1947 = vpop.xlane.xlu0 %1946
        %v1948 = vsel %vm674, %v1914, 0.0
        %1949 = vadd.xlane.f32.xlu0 %v1948
        %v1950 = vpop.xlane.xlu0 %1949
        %v1951 = vsel %vm674, %v1916, 0.0
        %1952 = vadd.xlane.f32.xlu0 %v1951
        %v1953 = vpop.xlane.xlu0 %1952
        %v1954 = vsel %vm674, %v1918, 0.0
        %1955 = vadd.xlane.f32.xlu0 %v1954
        %v1956 = vpop.xlane.xlu0 %1955
        %v1957 = vsel %vm674, %v1920, 0.0
        %1958 = vadd.xlane.f32.xlu0 %v1957
        %v1959 = vpop.xlane.xlu0 %1958
        %v1960 = vsel %vm674, %v1922, 0.0
        %1961 = vadd.xlane.f32.xlu0 %v1960
        %v1962 = vpop.xlane.xlu0 %1961
        %v1963 = vsel %vm674, %v1924, 0.0
        %1964 = vadd.xlane.f32.xlu0 %v1963
        %v1965 = vpop.xlane.xlu0 %1964
        %v1966 = vsel %vm674, %v1926, 0.0
        %1967 = vadd.xlane.f32.xlu0 %v1966
        %v1968 = vpop.xlane.xlu0 %1967
        %v1969 = vsel %vm674, %v1928, 0.0
        %1970 = vadd.xlane.f32.xlu0 %v1969
        %v1971 = vpop.xlane.xlu0 %1970
        %v1972 = vsel %vm674, %v1930, 0.0
        %1973 = vadd.xlane.f32.xlu0 %v1972
        %v1974 = vpop.xlane.xlu0 %1973
        %v1975 = vsel %vm674, %v1932, 0.0
        %1976 = vadd.xlane.f32.xlu0 %v1975
        %v1977 = vpop.xlane.xlu0 %1976
        %v1978 = vsel %vm674, %v1934, 0.0
        %1979 = vadd.xlane.f32.xlu0 %v1978
        %v1980 = vpop.xlane.xlu0 %1979
        %v1981 = vsel %vm674, %v1936, 0.0
        %1982 = vadd.xlane.f32.xlu0 %v1981
        %v1983 = vpop.xlane.xlu0 %1982
        %v1984 = vsel %vm674, %v1938, 0.0
        %1985 = vadd.xlane.f32.xlu0 %v1984
        %v1986 = vpop.xlane.xlu0 %1985
        %v1987 = vrcp.pop %v1941
        %v1988 = vrcp.pop %v1944
        %v1989 = vrcp.pop %v1947
        %v1990 = vrcp.pop %v1950
        %v1991 = vrcp.pop %v1953
        %v1992 = vrcp.pop %v1956
        %v1993 = vrcp.pop %v1959
        %v1994 = vrcp.pop %v1962
        %v1995 = vrcp.pop %v1965
        %v1996 = vrcp.pop %v1968
        %v1997 = vrcp.pop %v1971
        %v1998 = vrcp.pop %v1974
        %v1999 = vrcp.pop %v1977
        %v2000 = vrcp.pop %v1980
        %v2001 = vrcp.pop %v1983
        %v2002 = vrcp.pop %v1986
        %v2003 = vmul.f32 %v1908, %v1987
        %v2004 = vmul.f32 %v1910, %v1988
        %v2005 = vmul.f32 %v1912, %v1989
        %v2006 = vmul.f32 %v1914, %v1990
        %v2007 = vmul.f32 %v1916, %v1991
        %v2008 = vmul.f32 %v1918, %v1992
        %v2009 = vmul.f32 %v1920, %v1993
        %v2010 = vmul.f32 %v1922, %v1994
        %v2011 = vmul.f32 %v1924, %v1995
        %v2012 = vmul.f32 %v1926, %v1996
        %v2013 = vmul.f32 %v1928, %v1997
        %v2014 = vmul.f32 %v1930, %v1998
        %v2015 = vmul.f32 %v1932, %v1999
        %v2016 = vmul.f32 %v1934, %v2000
        %v2017 = vmul.f32 %v1936, %v2001
        %v2018 = vmul.f32 %v1938, %v2002
        %v2019 = vpack.c.bf16 %v2003, %v2003
        %v2020 = vpack.c.bf16 %v2004, %v2004
        %v2021 = vpack.c.bf16 %v2005, %v2005
        %v2022 = vpack.c.bf16 %v2006, %v2006
        %v2023 = vpack.c.bf16 %v2007, %v2007
        %v2024 = vpack.c.bf16 %v2008, %v2008
        %v2025 = vpack.c.bf16 %v2009, %v2009
        %v2026 = vpack.c.bf16 %v2010, %v2010
        %v2027 = vpack.c.bf16 %v2011, %v2011
        %v2028 = vpack.c.bf16 %v2012, %v2012
        %v2029 = vpack.c.bf16 %v2013, %v2013
        %v2030 = vpack.c.bf16 %v2014, %v2014
        %v2031 = vpack.c.bf16 %v2015, %v2015
        %v2032 = vpack.c.bf16 %v2016, %v2016
        %v2033 = vpack.c.bf16 %v2017, %v2017
        %v2034 = vpack.c.bf16 %v2018, %v2018
        %v2037 = vunpack.c.l.b16 %v2019
        %v2038 = vunpack.c.l.b16 %v2020
        %v2039 = vpack.c.b16 %v2038, %v2037
        %2040 = vrot.lane.b32.xlu0 %v461, 48
        %v2041 = vpop.permute.xlu0 %2040
        %v2044 = vsel %vm674, %v2039, 0
        %2046 = vmatpush.bf16.msra.mxu0 0
        %2047 = vmatpush.bf16.msra.mxu0 0
        %2048 = vmatpush.bf16.msra.mxu0 0
        %2049 = vmatpush.bf16.msra.mxu0 0
        %2050 = vmatpush.bf16.msra.mxu0 0
        %2051 = vmatpush.bf16.msra.mxu0 0
        %2052 = vmatpush.bf16.msra.mxu0 0
        %2053 = vmatpush.bf16.msra.mxu0 %v2041
        %2054 = vmatmul.bf16.gmra.mxu0 %v2044
        %v2055 = vpop.f32.mrf.mxu0
        %v2056 = vadd.f32 0.0, %v2055
        %v2057 = vpop.f32.mrf.mxu0
        %v2058 = vadd.f32 0.0, %v2057
        %2059 = vdwg.mxu0
        %v2062 = vunpack.c.l.b16 %v2021
        %v2063 = vunpack.c.l.b16 %v2022
        %v2064 = vpack.c.b16 %v2063, %v2062
        %2065 = vrot.lane.b32.xlu0 %v489, 48
        %v2066 = vpop.permute.xlu0 %2065
        %v2069 = vsel %vm674, %v2064, 0
        %2071 = vmatpush.bf16.msra.mxu0 0
        %2072 = vmatpush.bf16.msra.mxu0 0
        %2073 = vmatpush.bf16.msra.mxu0 0
        %2074 = vmatpush.bf16.msra.mxu0 0
        %2075 = vmatpush.bf16.msra.mxu0 0
        %2076 = vmatpush.bf16.msra.mxu0 0
        %2077 = vmatpush.bf16.msra.mxu0 0
        %2078 = vmatpush.bf16.msra.mxu0 %v2066
        %2079 = vmatmul.bf16.gmra.mxu0 %v2069
        %v2080 = vpop.f32.mrf.mxu0
        %v2081 = vadd.f32 0.0, %v2080
        %v2082 = vpop.f32.mrf.mxu0
        %v2083 = vadd.f32 0.0, %v2082
        %2084 = vdwg.mxu0
        %v2087 = vunpack.c.l.b16 %v2023
        %v2088 = vunpack.c.l.b16 %v2024
        %v2089 = vpack.c.b16 %v2088, %v2087
        %2090 = vrot.lane.b32.xlu0 %v516, 48
        %v2091 = vpop.permute.xlu0 %2090
        %v2094 = vsel %vm674, %v2089, 0
        %2096 = vmatpush.bf16.msra.mxu0 0
        %2097 = vmatpush.bf16.msra.mxu0 0
        %2098 = vmatpush.bf16.msra.mxu0 0
        %2099 = vmatpush.bf16.msra.mxu0 0
        %2100 = vmatpush.bf16.msra.mxu0 0
        %2101 = vmatpush.bf16.msra.mxu0 0
        %2102 = vmatpush.bf16.msra.mxu0 0
        %2103 = vmatpush.bf16.msra.mxu0 %v2091
        %2104 = vmatmul.bf16.gmra.mxu0 %v2094
        %v2105 = vpop.f32.mrf.mxu0
        %v2106 = vadd.f32 0.0, %v2105
        %v2107 = vpop.f32.mrf.mxu0
        %v2108 = vadd.f32 0.0, %v2107
        %2109 = vdwg.mxu0
        %v2112 = vunpack.c.l.b16 %v2025
        %v2113 = vunpack.c.l.b16 %v2026
        %v2114 = vpack.c.b16 %v2113, %v2112
        %2115 = vrot.lane.b32.xlu0 %v543, 48
        %v2116 = vpop.permute.xlu0 %2115
        %v2119 = vsel %vm674, %v2114, 0
        %2121 = vmatpush.bf16.msra.mxu0 0
        %2122 = vmatpush.bf16.msra.mxu0 0
        %2123 = vmatpush.bf16.msra.mxu0 0
        %2124 = vmatpush.bf16.msra.mxu0 0
        %2125 = vmatpush.bf16.msra.mxu0 0
        %2126 = vmatpush.bf16.msra.mxu0 0
        %2127 = vmatpush.bf16.msra.mxu0 0
        %2128 = vmatpush.bf16.msra.mxu0 %v2116
        %2129 = vmatmul.bf16.gmra.mxu0 %v2119
        %v2130 = vpop.f32.mrf.mxu0
        %v2131 = vadd.f32 0.0, %v2130
        %v2132 = vpop.f32.mrf.mxu0
        %v2133 = vadd.f32 0.0, %v2132
        %2134 = vdwg.mxu0
        %v2137 = vunpack.c.l.b16 %v2027
        %v2138 = vunpack.c.l.b16 %v2028
        %v2139 = vpack.c.b16 %v2138, %v2137
        %2140 = vrot.lane.b32.xlu0 %v570, 48
        %v2141 = vpop.permute.xlu0 %2140
        %v2144 = vsel %vm674, %v2139, 0
        %2146 = vmatpush.bf16.msra.mxu0 0
        %2147 = vmatpush.bf16.msra.mxu0 0
        %2148 = vmatpush.bf16.msra.mxu0 0
        %2149 = vmatpush.bf16.msra.mxu0 0
        %2150 = vmatpush.bf16.msra.mxu0 0
        %2151 = vmatpush.bf16.msra.mxu0 0
        %2152 = vmatpush.bf16.msra.mxu0 0
        %2153 = vmatpush.bf16.msra.mxu0 %v2141
        %2154 = vmatmul.bf16.gmra.mxu0 %v2144
        %v2155 = vpop.f32.mrf.mxu0
        %v2156 = vadd.f32 0.0, %v2155
        %v2157 = vpop.f32.mrf.mxu0
        %v2158 = vadd.f32 0.0, %v2157
        %2159 = vdwg.mxu0
        %v2162 = vunpack.c.l.b16 %v2029
        %v2163 = vunpack.c.l.b16 %v2030
        %v2164 = vpack.c.b16 %v2163, %v2162
        %2165 = vrot.lane.b32.xlu0 %v597, 48
        %v2166 = vpop.permute.xlu0 %2165
        %v2169 = vsel %vm674, %v2164, 0
        %2171 = vmatpush.bf16.msra.mxu0 0
        %2172 = vmatpush.bf16.msra.mxu0 0
        %2173 = vmatpush.bf16.msra.mxu0 0
        %2174 = vmatpush.bf16.msra.mxu0 0
        %2175 = vmatpush.bf16.msra.mxu0 0
        %2176 = vmatpush.bf16.msra.mxu0 0
        %2177 = vmatpush.bf16.msra.mxu0 0
        %2178 = vmatpush.bf16.msra.mxu0 %v2166
        %2179 = vmatmul.bf16.gmra.mxu0 %v2169
        %v2180 = vpop.f32.mrf.mxu0
        %v2181 = vadd.f32 0.0, %v2180
        %v2182 = vpop.f32.mrf.mxu0
        %v2183 = vadd.f32 0.0, %v2182
        %2184 = vdwg.mxu0
        %v2187 = vunpack.c.l.b16 %v2031
        %v2188 = vunpack.c.l.b16 %v2032
        %v2189 = vpack.c.b16 %v2188, %v2187
        %2190 = vrot.lane.b32.xlu0 %v624, 48
        %v2191 = vpop.permute.xlu0 %2190
        %v2194 = vsel %vm674, %v2189, 0
        %2196 = vmatpush.bf16.msra.mxu0 0
        %2197 = vmatpush.bf16.msra.mxu0 0
        %2198 = vmatpush.bf16.msra.mxu0 0
        %2199 = vmatpush.bf16.msra.mxu0 0
        %2200 = vmatpush.bf16.msra.mxu0 0
        %2201 = vmatpush.bf16.msra.mxu0 0
        %2202 = vmatpush.bf16.msra.mxu0 0
        %2203 = vmatpush.bf16.msra.mxu0 %v2191
        %2204 = vmatmul.bf16.gmra.mxu0 %v2194
        %v2205 = vpop.f32.mrf.mxu0
        %v2206 = vadd.f32 0.0, %v2205
        %v2207 = vpop.f32.mrf.mxu0
        %v2208 = vadd.f32 0.0, %v2207
        %2209 = vdwg.mxu0
        %v2212 = vunpack.c.l.b16 %v2033
        %v2213 = vunpack.c.l.b16 %v2034
        %v2214 = vpack.c.b16 %v2213, %v2212
        %2215 = vrot.lane.b32.xlu0 %v651, 48
        %v2216 = vpop.permute.xlu0 %2215
        %v2219 = vsel %vm674, %v2214, 0
        %2221 = vmatpush.bf16.msra.mxu0 0
        %2222 = vmatpush.bf16.msra.mxu0 0
        %2223 = vmatpush.bf16.msra.mxu0 0
        %2224 = vmatpush.bf16.msra.mxu0 0
        %2225 = vmatpush.bf16.msra.mxu0 0
        %2226 = vmatpush.bf16.msra.mxu0 0
        %2227 = vmatpush.bf16.msra.mxu0 0
        %2228 = vmatpush.bf16.msra.mxu0 %v2216
        %2229 = vmatmul.bf16.gmra.mxu0 %v2219
        %v2230 = vpop.f32.mrf.mxu0
        %v2231 = vadd.f32 0.0, %v2230
        %v2232 = vpop.f32.mrf.mxu0
        %v2233 = vadd.f32 0.0, %v2232
        %2234 = vdwg.mxu0
        %2235 = vrot.lane.b32.xlu0 %v461, 104
        %v2236 = vpop.permute.xlu0 %2235
        %2237 = vrot.lane.b32.xlu0 %v461, 72
        %v2238 = vpop.permute.xlu0 %2237
        %v2240 = vsel %vm464, %v2236, 0
        %v2243 = vsel %vm464, %v2238, 0
        %2245 = vmatpush.bf16.xpose.msra.mxu0 0
        %2246 = vmatpush.bf16.xpose.msra.mxu0 0
        %2247 = vmatpush.bf16.xpose.msra.mxu0 0
        %2248 = vmatpush.bf16.xpose.msra.mxu0 0
        %2249 = vmatpush.bf16.xpose.msra.mxu0 0
        %2250 = vmatpush.bf16.xpose.msra.mxu0 0
        %2251 = vmatpush.bf16.xpose.msra.mxu0 0
        %2252 = vmatpush.bf16.xpose.msra.mxu0 %v2243
        %2253 = vmatmul.bf16.gmra.mxu0 %v2240
        %v2254 = vpop.f32.mrf.mxu0
        %v2255 = vadd.f32 0.0, %v2254
        %v2256 = vpop.f32.mrf.mxu0
        %v2257 = vadd.f32 0.0, %v2256
        %2258 = vdwg.mxu0
        %2259 = vrot.lane.b32.xlu0 %v489, 104
        %v2260 = vpop.permute.xlu0 %2259
        %2261 = vrot.lane.b32.xlu0 %v489, 72
        %v2262 = vpop.permute.xlu0 %2261
        %v2264 = vsel %vm464, %v2260, 0
        %v2267 = vsel %vm464, %v2262, 0
        %2269 = vmatpush.bf16.xpose.msra.mxu0 0
        %2270 = vmatpush.bf16.xpose.msra.mxu0 0
        %2271 = vmatpush.bf16.xpose.msra.mxu0 0
        %2272 = vmatpush.bf16.xpose.msra.mxu0 0
        %2273 = vmatpush.bf16.xpose.msra.mxu0 0
        %2274 = vmatpush.bf16.xpose.msra.mxu0 0
        %2275 = vmatpush.bf16.xpose.msra.mxu0 0
        %2276 = vmatpush.bf16.xpose.msra.mxu0 %v2267
        %2277 = vmatmul.bf16.gmra.mxu0 %v2264
        %v2278 = vpop.f32.mrf.mxu0
        %v2279 = vadd.f32 0.0, %v2278
        %v2280 = vpop.f32.mrf.mxu0
        %v2281 = vadd.f32 0.0, %v2280
        %2282 = vdwg.mxu0
        %2283 = vrot.lane.b32.xlu0 %v516, 104
        %v2284 = vpop.permute.xlu0 %2283
        %2285 = vrot.lane.b32.xlu0 %v516, 72
        %v2286 = vpop.permute.xlu0 %2285
        %v2288 = vsel %vm464, %v2284, 0
        %v2291 = vsel %vm464, %v2286, 0
        %2293 = vmatpush.bf16.xpose.msra.mxu0 0
        %2294 = vmatpush.bf16.xpose.msra.mxu0 0
        %2295 = vmatpush.bf16.xpose.msra.mxu0 0
        %2296 = vmatpush.bf16.xpose.msra.mxu0 0
        %2297 = vmatpush.bf16.xpose.msra.mxu0 0
        %2298 = vmatpush.bf16.xpose.msra.mxu0 0
        %2299 = vmatpush.bf16.xpose.msra.mxu0 0
        %2300 = vmatpush.bf16.xpose.msra.mxu0 %v2291
        %2301 = vmatmul.bf16.gmra.mxu0 %v2288
        %v2302 = vpop.f32.mrf.mxu0
        %v2303 = vadd.f32 0.0, %v2302
        %v2304 = vpop.f32.mrf.mxu0
        %v2305 = vadd.f32 0.0, %v2304
        %2306 = vdwg.mxu0
        %2307 = vrot.lane.b32.xlu0 %v543, 104
        %v2308 = vpop.permute.xlu0 %2307
        %2309 = vrot.lane.b32.xlu0 %v543, 72
        %v2310 = vpop.permute.xlu0 %2309
        %v2312 = vsel %vm464, %v2308, 0
        %v2315 = vsel %vm464, %v2310, 0
        %2317 = vmatpush.bf16.xpose.msra.mxu0 0
        %2318 = vmatpush.bf16.xpose.msra.mxu0 0
        %2319 = vmatpush.bf16.xpose.msra.mxu0 0
        %2320 = vmatpush.bf16.xpose.msra.mxu0 0
        %2321 = vmatpush.bf16.xpose.msra.mxu0 0
        %2322 = vmatpush.bf16.xpose.msra.mxu0 0
        %2323 = vmatpush.bf16.xpose.msra.mxu0 0
        %2324 = vmatpush.bf16.xpose.msra.mxu0 %v2315
        %2325 = vmatmul.bf16.gmra.mxu0 %v2312
        %v2326 = vpop.f32.mrf.mxu0
        %v2327 = vadd.f32 0.0, %v2326
        %v2328 = vpop.f32.mrf.mxu0
        %v2329 = vadd.f32 0.0, %v2328
        %2330 = vdwg.mxu0
        %2331 = vrot.lane.b32.xlu0 %v570, 104
        %v2332 = vpop.permute.xlu0 %2331
        %2333 = vrot.lane.b32.xlu0 %v570, 72
        %v2334 = vpop.permute.xlu0 %2333
        %v2336 = vsel %vm464, %v2332, 0
        %v2339 = vsel %vm464, %v2334, 0
        %2341 = vmatpush.bf16.xpose.msra.mxu0 0
        %2342 = vmatpush.bf16.xpose.msra.mxu0 0
        %2343 = vmatpush.bf16.xpose.msra.mxu0 0
        %2344 = vmatpush.bf16.xpose.msra.mxu0 0
        %2345 = vmatpush.bf16.xpose.msra.mxu0 0
        %2346 = vmatpush.bf16.xpose.msra.mxu0 0
        %2347 = vmatpush.bf16.xpose.msra.mxu0 0
        %2348 = vmatpush.bf16.xpose.msra.mxu0 %v2339
        %2349 = vmatmul.bf16.gmra.mxu0 %v2336
        %v2350 = vpop.f32.mrf.mxu0
        %v2351 = vadd.f32 0.0, %v2350
        %v2352 = vpop.f32.mrf.mxu0
        %v2353 = vadd.f32 0.0, %v2352
        %2354 = vdwg.mxu0
        %2355 = vrot.lane.b32.xlu0 %v597, 104
        %v2356 = vpop.permute.xlu0 %2355
        %2357 = vrot.lane.b32.xlu0 %v597, 72
        %v2358 = vpop.permute.xlu0 %2357
        %v2360 = vsel %vm464, %v2356, 0
        %v2363 = vsel %vm464, %v2358, 0
        %2365 = vmatpush.bf16.xpose.msra.mxu0 0
        %2366 = vmatpush.bf16.xpose.msra.mxu0 0
        %2367 = vmatpush.bf16.xpose.msra.mxu0 0
        %2368 = vmatpush.bf16.xpose.msra.mxu0 0
        %2369 = vmatpush.bf16.xpose.msra.mxu0 0
        %2370 = vmatpush.bf16.xpose.msra.mxu0 0
        %2371 = vmatpush.bf16.xpose.msra.mxu0 0
        %2372 = vmatpush.bf16.xpose.msra.mxu0 %v2363
        %2373 = vmatmul.bf16.gmra.mxu0 %v2360
        %v2374 = vpop.f32.mrf.mxu0
        %v2375 = vadd.f32 0.0, %v2374
        %v2376 = vpop.f32.mrf.mxu0
        %v2377 = vadd.f32 0.0, %v2376
        %2378 = vdwg.mxu0
        %2379 = vrot.lane.b32.xlu0 %v624, 104
        %v2380 = vpop.permute.xlu0 %2379
        %2381 = vrot.lane.b32.xlu0 %v624, 72
        %v2382 = vpop.permute.xlu0 %2381
        %v2384 = vsel %vm464, %v2380, 0
        %v2387 = vsel %vm464, %v2382, 0
        %2389 = vmatpush.bf16.xpose.msra.mxu0 0
        %2390 = vmatpush.bf16.xpose.msra.mxu0 0
        %2391 = vmatpush.bf16.xpose.msra.mxu0 0
        %2392 = vmatpush.bf16.xpose.msra.mxu0 0
        %2393 = vmatpush.bf16.xpose.msra.mxu0 0
        %2394 = vmatpush.bf16.xpose.msra.mxu0 0
        %2395 = vmatpush.bf16.xpose.msra.mxu0 0
        %2396 = vmatpush.bf16.xpose.msra.mxu0 %v2387
        %2397 = vmatmul.bf16.gmra.mxu0 %v2384
        %v2398 = vpop.f32.mrf.mxu0
        %v2399 = vadd.f32 0.0, %v2398
        %v2400 = vpop.f32.mrf.mxu0
        %v2401 = vadd.f32 0.0, %v2400
        %2402 = vdwg.mxu0
        %2403 = vrot.lane.b32.xlu0 %v651, 104
        %v2404 = vpop.permute.xlu0 %2403
        %2405 = vrot.lane.b32.xlu0 %v651, 72
        %v2406 = vpop.permute.xlu0 %2405
        %v2408 = vsel %vm464, %v2404, 0
        %v2411 = vsel %vm464, %v2406, 0
        %2413 = vmatpush.bf16.xpose.msra.mxu0 0
        %2414 = vmatpush.bf16.xpose.msra.mxu0 0
        %2415 = vmatpush.bf16.xpose.msra.mxu0 0
        %2416 = vmatpush.bf16.xpose.msra.mxu0 0
        %2417 = vmatpush.bf16.xpose.msra.mxu0 0
        %2418 = vmatpush.bf16.xpose.msra.mxu0 0
        %2419 = vmatpush.bf16.xpose.msra.mxu0 0
        %2420 = vmatpush.bf16.xpose.msra.mxu0 %v2411
        %2421 = vmatmul.bf16.gmra.mxu0 %v2408
        %v2422 = vpop.f32.mrf.mxu0
        %v2423 = vadd.f32 0.0, %v2422
        %v2424 = vpop.f32.mrf.mxu0
        %v2425 = vadd.f32 0.0, %v2424
        %2426 = vdwg.mxu0
        %v2427 = vsel %vm674, %v2255, -inf
        %2428 = vmax.xlane.f32.xlu0 %v2427
        %v2429 = vpop.xlane.xlu0 %2428
        %v2430 = vsel %vm674, %v2257, -inf
        %2431 = vmax.xlane.f32.xlu0 %v2430
        %v2432 = vpop.xlane.xlu0 %2431
        %v2433 = vsel %vm674, %v2279, -inf
        %2434 = vmax.xlane.f32.xlu0 %v2433
        %v2435 = vpop.xlane.xlu0 %2434
        %v2436 = vsel %vm674, %v2281, -inf
        %2437 = vmax.xlane.f32.xlu0 %v2436
        %v2438 = vpop.xlane.xlu0 %2437
        %v2439 = vsel %vm674, %v2303, -inf
        %2440 = vmax.xlane.f32.xlu0 %v2439
        %v2441 = vpop.xlane.xlu0 %2440
        %v2442 = vsel %vm674, %v2305, -inf
        %2443 = vmax.xlane.f32.xlu0 %v2442
        %v2444 = vpop.xlane.xlu0 %2443
        %v2445 = vsel %vm674, %v2327, -inf
        %2446 = vmax.xlane.f32.xlu0 %v2445
        %v2447 = vpop.xlane.xlu0 %2446
        %v2448 = vsel %vm674, %v2329, -inf
        %2449 = vmax.xlane.f32.xlu0 %v2448
        %v2450 = vpop.xlane.xlu0 %2449
        %v2451 = vsel %vm674, %v2351, -inf
        %2452 = vmax.xlane.f32.xlu0 %v2451
        %v2453 = vpop.xlane.xlu0 %2452
        %v2454 = vsel %vm674, %v2353, -inf
        %2455 = vmax.xlane.f32.xlu0 %v2454
        %v2456 = vpop.xlane.xlu0 %2455
        %v2457 = vsel %vm674, %v2375, -inf
        %2458 = vmax.xlane.f32.xlu0 %v2457
        %v2459 = vpop.xlane.xlu0 %2458
        %v2460 = vsel %vm674, %v2377, -inf
        %2461 = vmax.xlane.f32.xlu0 %v2460
        %v2462 = vpop.xlane.xlu0 %2461
        %v2463 = vsel %vm674, %v2399, -inf
        %2464 = vmax.xlane.f32.xlu0 %v2463
        %v2465 = vpop.xlane.xlu0 %2464
        %v2466 = vsel %vm674, %v2401, -inf
        %2467 = vmax.xlane.f32.xlu0 %v2466
        %v2468 = vpop.xlane.xlu0 %2467
        %v2469 = vsel %vm674, %v2423, -inf
        %2470 = vmax.xlane.f32.xlu0 %v2469
        %v2471 = vpop.xlane.xlu0 %2470
        %v2472 = vsel %vm674, %v2425, -inf
        %2473 = vmax.xlane.f32.xlu0 %v2472
        %v2474 = vpop.xlane.xlu0 %2473
        %v2475 = vsub.f32 %v2255, %v2429
        %v2476 = vsub.f32 %v2257, %v2432
        %v2477 = vsub.f32 %v2279, %v2435
        %v2478 = vsub.f32 %v2281, %v2438
        %v2479 = vsub.f32 %v2303, %v2441
        %v2480 = vsub.f32 %v2305, %v2444
        %v2481 = vsub.f32 %v2327, %v2447
        %v2482 = vsub.f32 %v2329, %v2450
        %v2483 = vsub.f32 %v2351, %v2453
        %v2484 = vsub.f32 %v2353, %v2456
        %v2485 = vsub.f32 %v2375, %v2459
        %v2486 = vsub.f32 %v2377, %v2462
        %v2487 = vsub.f32 %v2399, %v2465
        %v2488 = vsub.f32 %v2401, %v2468
        %v2489 = vsub.f32 %v2423, %v2471
        %v2490 = vsub.f32 %v2425, %v2474
        %v2491 = vmul.f32 %v2475, 1.442695
        %v2492 = vpow.pop %v2491
        %v2493 = vmul.f32 %v2476, 1.442695
        %v2494 = vpow.pop %v2493
        %v2495 = vmul.f32 %v2477, 1.442695
        %v2496 = vpow.pop %v2495
        %v2497 = vmul.f32 %v2478, 1.442695
        %v2498 = vpow.pop %v2497
        %v2499 = vmul.f32 %v2479, 1.442695
        %v2500 = vpow.pop %v2499
        %v2501 = vmul.f32 %v2480, 1.442695
        %v2502 = vpow.pop %v2501
        %v2503 = vmul.f32 %v2481, 1.442695
        %v2504 = vpow.pop %v2503
        %v2505 = vmul.f32 %v2482, 1.442695
        %v2506 = vpow.pop %v2505
        %v2507 = vmul.f32 %v2483, 1.442695
        %v2508 = vpow.pop %v2507
        %v2509 = vmul.f32 %v2484, 1.442695
        %v2510 = vpow.pop %v2509
        %v2511 = vmul.f32 %v2485, 1.442695
        %v2512 = vpow.pop %v2511
        %v2513 = vmul.f32 %v2486, 1.442695
        %v2514 = vpow.pop %v2513
        %v2515 = vmul.f32 %v2487, 1.442695
        %v2516 = vpow.pop %v2515
        %v2517 = vmul.f32 %v2488, 1.442695
        %v2518 = vpow.pop %v2517
        %v2519 = vmul.f32 %v2489, 1.442695
        %v2520 = vpow.pop %v2519
        %v2521 = vmul.f32 %v2490, 1.442695
        %v2522 = vpow.pop %v2521
        %v2523 = vsel %vm674, %v2492, 0.0
        %2524 = vadd.xlane.f32.xlu0 %v2523
        %v2525 = vpop.xlane.xlu0 %2524
        %v2526 = vsel %vm674, %v2494, 0.0
        %2527 = vadd.xlane.f32.xlu0 %v2526
        %v2528 = vpop.xlane.xlu0 %2527
        %v2529 = vsel %vm674, %v2496, 0.0
        %2530 = vadd.xlane.f32.xlu0 %v2529
        %v2531 = vpop.xlane.xlu0 %2530
        %v2532 = vsel %vm674, %v2498, 0.0
        %2533 = vadd.xlane.f32.xlu0 %v2532
        %v2534 = vpop.xlane.xlu0 %2533
        %v2535 = vsel %vm674, %v2500, 0.0
        %2536 = vadd.xlane.f32.xlu0 %v2535
        %v2537 = vpop.xlane.xlu0 %2536
        %v2538 = vsel %vm674, %v2502, 0.0
        %2539 = vadd.xlane.f32.xlu0 %v2538
        %v2540 = vpop.xlane.xlu0 %2539
        %v2541 = vsel %vm674, %v2504, 0.0
        %2542 = vadd.xlane.f32.xlu0 %v2541
        %v2543 = vpop.xlane.xlu0 %2542
        %v2544 = vsel %vm674, %v2506, 0.0
        %2545 = vadd.xlane.f32.xlu0 %v2544
        %v2546 = vpop.xlane.xlu0 %2545
        %v2547 = vsel %vm674, %v2508, 0.0
        %2548 = vadd.xlane.f32.xlu0 %v2547
        %v2549 = vpop.xlane.xlu0 %2548
        %v2550 = vsel %vm674, %v2510, 0.0
        %2551 = vadd.xlane.f32.xlu0 %v2550
        %v2552 = vpop.xlane.xlu0 %2551
        %v2553 = vsel %vm674, %v2512, 0.0
        %2554 = vadd.xlane.f32.xlu0 %v2553
        %v2555 = vpop.xlane.xlu0 %2554
        %v2556 = vsel %vm674, %v2514, 0.0
        %2557 = vadd.xlane.f32.xlu0 %v2556
        %v2558 = vpop.xlane.xlu0 %2557
        %v2559 = vsel %vm674, %v2516, 0.0
        %2560 = vadd.xlane.f32.xlu0 %v2559
        %v2561 = vpop.xlane.xlu0 %2560
        %v2562 = vsel %vm674, %v2518, 0.0
        %2563 = vadd.xlane.f32.xlu0 %v2562
        %v2564 = vpop.xlane.xlu0 %2563
        %v2565 = vsel %vm674, %v2520, 0.0
        %2566 = vadd.xlane.f32.xlu0 %v2565
        %v2567 = vpop.xlane.xlu0 %2566
        %v2568 = vsel %vm674, %v2522, 0.0
        %2569 = vadd.xlane.f32.xlu0 %v2568
        %v2570 = vpop.xlane.xlu0 %2569
        %v2571 = vrcp.pop %v2525
        %v2572 = vrcp.pop %v2528
        %v2573 = vrcp.pop %v2531
        %v2574 = vrcp.pop %v2534
        %v2575 = vrcp.pop %v2537
        %v2576 = vrcp.pop %v2540
        %v2577 = vrcp.pop %v2543
        %v2578 = vrcp.pop %v2546
        %v2579 = vrcp.pop %v2549
        %v2580 = vrcp.pop %v2552
        %v2581 = vrcp.pop %v2555
        %v2582 = vrcp.pop %v2558
        %v2583 = vrcp.pop %v2561
        %v2584 = vrcp.pop %v2564
        %v2585 = vrcp.pop %v2567
        %v2586 = vrcp.pop %v2570
        %v2587 = vmul.f32 %v2492, %v2571
        %v2588 = vmul.f32 %v2494, %v2572
        %v2589 = vmul.f32 %v2496, %v2573
        %v2590 = vmul.f32 %v2498, %v2574
        %v2591 = vmul.f32 %v2500, %v2575
        %v2592 = vmul.f32 %v2502, %v2576
        %v2593 = vmul.f32 %v2504, %v2577
        %v2594 = vmul.f32 %v2506, %v2578
        %v2595 = vmul.f32 %v2508, %v2579
        %v2596 = vmul.f32 %v2510, %v2580
        %v2597 = vmul.f32 %v2512, %v2581
        %v2598 = vmul.f32 %v2514, %v2582
        %v2599 = vmul.f32 %v2516, %v2583
        %v2600 = vmul.f32 %v2518, %v2584
        %v2601 = vmul.f32 %v2520, %v2585
        %v2602 = vmul.f32 %v2522, %v2586
        %v2603 = vpack.c.bf16 %v2587, %v2587
        %v2604 = vpack.c.bf16 %v2588, %v2588
        %v2605 = vpack.c.bf16 %v2589, %v2589
        %v2606 = vpack.c.bf16 %v2590, %v2590
        %v2607 = vpack.c.bf16 %v2591, %v2591
        %v2608 = vpack.c.bf16 %v2592, %v2592
        %v2609 = vpack.c.bf16 %v2593, %v2593
        %v2610 = vpack.c.bf16 %v2594, %v2594
        %v2611 = vpack.c.bf16 %v2595, %v2595
        %v2612 = vpack.c.bf16 %v2596, %v2596
        %v2613 = vpack.c.bf16 %v2597, %v2597
        %v2614 = vpack.c.bf16 %v2598, %v2598
        %v2615 = vpack.c.bf16 %v2599, %v2599
        %v2616 = vpack.c.bf16 %v2600, %v2600
        %v2617 = vpack.c.bf16 %v2601, %v2601
        %v2618 = vpack.c.bf16 %v2602, %v2602
        %v2621 = vunpack.c.l.b16 %v2603
        %v2622 = vunpack.c.l.b16 %v2604
        %v2623 = vpack.c.b16 %v2622, %v2621
        %2624 = vrot.lane.b32.xlu0 %v461, 40
        %v2625 = vpop.permute.xlu0 %2624
        %v2628 = vsel %vm674, %v2623, 0
        %2630 = vmatpush.bf16.msra.mxu0 0
        %2631 = vmatpush.bf16.msra.mxu0 0
        %2632 = vmatpush.bf16.msra.mxu0 0
        %2633 = vmatpush.bf16.msra.mxu0 0
        %2634 = vmatpush.bf16.msra.mxu0 0
        %2635 = vmatpush.bf16.msra.mxu0 0
        %2636 = vmatpush.bf16.msra.mxu0 0
        %2637 = vmatpush.bf16.msra.mxu0 %v2625
        %2638 = vmatmul.bf16.gmra.mxu0 %v2628
        %v2639 = vpop.f32.mrf.mxu0
        %v2640 = vadd.f32 0.0, %v2639
        %v2641 = vpop.f32.mrf.mxu0
        %v2642 = vadd.f32 0.0, %v2641
        %2643 = vdwg.mxu0
        %v2646 = vunpack.c.l.b16 %v2605
        %v2647 = vunpack.c.l.b16 %v2606
        %v2648 = vpack.c.b16 %v2647, %v2646
        %2649 = vrot.lane.b32.xlu0 %v489, 40
        %v2650 = vpop.permute.xlu0 %2649
        %v2653 = vsel %vm674, %v2648, 0
        %2655 = vmatpush.bf16.msra.mxu0 0
        %2656 = vmatpush.bf16.msra.mxu0 0
        %2657 = vmatpush.bf16.msra.mxu0 0
        %2658 = vmatpush.bf16.msra.mxu0 0
        %2659 = vmatpush.bf16.msra.mxu0 0
        %2660 = vmatpush.bf16.msra.mxu0 0
        %2661 = vmatpush.bf16.msra.mxu0 0
        %2662 = vmatpush.bf16.msra.mxu0 %v2650
        %2663 = vmatmul.bf16.gmra.mxu0 %v2653
        %v2664 = vpop.f32.mrf.mxu0
        %v2665 = vadd.f32 0.0, %v2664
        %v2666 = vpop.f32.mrf.mxu0
        %v2667 = vadd.f32 0.0, %v2666
        %2668 = vdwg.mxu0
        %v2671 = vunpack.c.l.b16 %v2607
        %v2672 = vunpack.c.l.b16 %v2608
        %v2673 = vpack.c.b16 %v2672, %v2671
        %2674 = vrot.lane.b32.xlu0 %v516, 40
        %v2675 = vpop.permute.xlu0 %2674
        %v2678 = vsel %vm674, %v2673, 0
        %2680 = vmatpush.bf16.msra.mxu0 0
        %2681 = vmatpush.bf16.msra.mxu0 0
        %2682 = vmatpush.bf16.msra.mxu0 0
        %2683 = vmatpush.bf16.msra.mxu0 0
        %2684 = vmatpush.bf16.msra.mxu0 0
        %2685 = vmatpush.bf16.msra.mxu0 0
        %2686 = vmatpush.bf16.msra.mxu0 0
        %2687 = vmatpush.bf16.msra.mxu0 %v2675
        %2688 = vmatmul.bf16.gmra.mxu0 %v2678
        %v2689 = vpop.f32.mrf.mxu0
        %v2690 = vadd.f32 0.0, %v2689
        %v2691 = vpop.f32.mrf.mxu0
        %v2692 = vadd.f32 0.0, %v2691
        %2693 = vdwg.mxu0
        %v2696 = vunpack.c.l.b16 %v2609
        %v2697 = vunpack.c.l.b16 %v2610
        %v2698 = vpack.c.b16 %v2697, %v2696
        %2699 = vrot.lane.b32.xlu0 %v543, 40
        %v2700 = vpop.permute.xlu0 %2699
        %v2703 = vsel %vm674, %v2698, 0
        %2705 = vmatpush.bf16.msra.mxu0 0
        %2706 = vmatpush.bf16.msra.mxu0 0
        %2707 = vmatpush.bf16.msra.mxu0 0
        %2708 = vmatpush.bf16.msra.mxu0 0
        %2709 = vmatpush.bf16.msra.mxu0 0
        %2710 = vmatpush.bf16.msra.mxu0 0
        %2711 = vmatpush.bf16.msra.mxu0 0
        %2712 = vmatpush.bf16.msra.mxu0 %v2700
        %2713 = vmatmul.bf16.gmra.mxu0 %v2703
        %v2714 = vpop.f32.mrf.mxu0
        %v2715 = vadd.f32 0.0, %v2714
        %v2716 = vpop.f32.mrf.mxu0
        %v2717 = vadd.f32 0.0, %v2716
        %2718 = vdwg.mxu0
        %v2721 = vunpack.c.l.b16 %v2611
        %v2722 = vunpack.c.l.b16 %v2612
        %v2723 = vpack.c.b16 %v2722, %v2721
        %2724 = vrot.lane.b32.xlu0 %v570, 40
        %v2725 = vpop.permute.xlu0 %2724
        %v2728 = vsel %vm674, %v2723, 0
        %2730 = vmatpush.bf16.msra.mxu0 0
        %2731 = vmatpush.bf16.msra.mxu0 0
        %2732 = vmatpush.bf16.msra.mxu0 0
        %2733 = vmatpush.bf16.msra.mxu0 0
        %2734 = vmatpush.bf16.msra.mxu0 0
        %2735 = vmatpush.bf16.msra.mxu0 0
        %2736 = vmatpush.bf16.msra.mxu0 0
        %2737 = vmatpush.bf16.msra.mxu0 %v2725
        %2738 = vmatmul.bf16.gmra.mxu0 %v2728
        %v2739 = vpop.f32.mrf.mxu0
        %v2740 = vadd.f32 0.0, %v2739
        %v2741 = vpop.f32.mrf.mxu0
        %v2742 = vadd.f32 0.0, %v2741
        %2743 = vdwg.mxu0
        %v2746 = vunpack.c.l.b16 %v2613
        %v2747 = vunpack.c.l.b16 %v2614
        %v2748 = vpack.c.b16 %v2747, %v2746
        %2749 = vrot.lane.b32.xlu0 %v597, 40
        %v2750 = vpop.permute.xlu0 %2749
        %v2753 = vsel %vm674, %v2748, 0
        %2755 = vmatpush.bf16.msra.mxu0 0
        %2756 = vmatpush.bf16.msra.mxu0 0
        %2757 = vmatpush.bf16.msra.mxu0 0
        %2758 = vmatpush.bf16.msra.mxu0 0
        %2759 = vmatpush.bf16.msra.mxu0 0
        %2760 = vmatpush.bf16.msra.mxu0 0
        %2761 = vmatpush.bf16.msra.mxu0 0
        %2762 = vmatpush.bf16.msra.mxu0 %v2750
        %2763 = vmatmul.bf16.gmra.mxu0 %v2753
        %v2764 = vpop.f32.mrf.mxu0
        %v2765 = vadd.f32 0.0, %v2764
        %v2766 = vpop.f32.mrf.mxu0
        %v2767 = vadd.f32 0.0, %v2766
        %2768 = vdwg.mxu0
        %v2771 = vunpack.c.l.b16 %v2615
        %v2772 = vunpack.c.l.b16 %v2616
        %v2773 = vpack.c.b16 %v2772, %v2771
        %2774 = vrot.lane.b32.xlu0 %v624, 40
        %v2775 = vpop.permute.xlu0 %2774
        %v2778 = vsel %vm674, %v2773, 0
        %2780 = vmatpush.bf16.msra.mxu0 0
        %2781 = vmatpush.bf16.msra.mxu0 0
        %2782 = vmatpush.bf16.msra.mxu0 0
        %2783 = vmatpush.bf16.msra.mxu0 0
        %2784 = vmatpush.bf16.msra.mxu0 0
        %2785 = vmatpush.bf16.msra.mxu0 0
        %2786 = vmatpush.bf16.msra.mxu0 0
        %2787 = vmatpush.bf16.msra.mxu0 %v2775
        %2788 = vmatmul.bf16.gmra.mxu0 %v2778
        %v2789 = vpop.f32.mrf.mxu0
        %v2790 = vadd.f32 0.0, %v2789
        %v2791 = vpop.f32.mrf.mxu0
        %v2792 = vadd.f32 0.0, %v2791
        %2793 = vdwg.mxu0
        %v2796 = vunpack.c.l.b16 %v2617
        %v2797 = vunpack.c.l.b16 %v2618
        %v2798 = vpack.c.b16 %v2797, %v2796
        %2799 = vrot.lane.b32.xlu0 %v651, 40
        %v2800 = vpop.permute.xlu0 %2799
        %v2803 = vsel %vm674, %v2798, 0
        %2805 = vmatpush.bf16.msra.mxu0 0
        %2806 = vmatpush.bf16.msra.mxu0 0
        %2807 = vmatpush.bf16.msra.mxu0 0
        %2808 = vmatpush.bf16.msra.mxu0 0
        %2809 = vmatpush.bf16.msra.mxu0 0
        %2810 = vmatpush.bf16.msra.mxu0 0
        %2811 = vmatpush.bf16.msra.mxu0 0
        %2812 = vmatpush.bf16.msra.mxu0 %v2800
        %2813 = vmatmul.bf16.gmra.mxu0 %v2803
        %v2814 = vpop.f32.mrf.mxu0
        %v2815 = vadd.f32 0.0, %v2814
        %v2816 = vpop.f32.mrf.mxu0
        %v2817 = vadd.f32 0.0, %v2816
        %2818 = vdwg.mxu0
        %2835 = vrot.lane.b32.xlu0 %v1472, 8
        %v2836 = vpop.permute.xlu0 %2835
        %2837 = vrot.lane.b32.xlu0 %v1474, 8
        %v2838 = vpop.permute.xlu0 %2837
        %2839 = vrot.lane.b32.xlu0 %v1497, 8
        %v2840 = vpop.permute.xlu0 %2839
        %2841 = vrot.lane.b32.xlu0 %v1499, 8
        %v2842 = vpop.permute.xlu0 %2841
        %2843 = vrot.lane.b32.xlu0 %v1522, 8
        %v2844 = vpop.permute.xlu0 %2843
        %2845 = vrot.lane.b32.xlu0 %v1524, 8
        %v2846 = vpop.permute.xlu0 %2845
        %2847 = vrot.lane.b32.xlu0 %v1547, 8
        %v2848 = vpop.permute.xlu0 %2847
        %2849 = vrot.lane.b32.xlu0 %v1549, 8
        %v2850 = vpop.permute.xlu0 %2849
        %2851 = vrot.lane.b32.xlu0 %v1572, 8
        %v2852 = vpop.permute.xlu0 %2851
        %2853 = vrot.lane.b32.xlu0 %v1574, 8
        %v2854 = vpop.permute.xlu0 %2853
        %2855 = vrot.lane.b32.xlu0 %v1597, 8
        %v2856 = vpop.permute.xlu0 %2855
        %2857 = vrot.lane.b32.xlu0 %v1599, 8
        %v2858 = vpop.permute.xlu0 %2857
        %2859 = vrot.lane.b32.xlu0 %v1622, 8
        %v2860 = vpop.permute.xlu0 %2859
        %2861 = vrot.lane.b32.xlu0 %v1624, 8
        %v2862 = vpop.permute.xlu0 %2861
        %2863 = vrot.lane.b32.xlu0 %v1647, 8
        %v2864 = vpop.permute.xlu0 %2863
        %2865 = vrot.lane.b32.xlu0 %v1649, 8
        %v2866 = vpop.permute.xlu0 %2865
        %2899 = vrot.lane.b32.xlu0 %v2056, 16
        %v2900 = vpop.permute.xlu0 %2899
        %2901 = vrot.lane.b32.xlu0 %v2058, 16
        %v2902 = vpop.permute.xlu0 %2901
        %2903 = vrot.lane.b32.xlu0 %v2081, 16
        %v2904 = vpop.permute.xlu0 %2903
        %2905 = vrot.lane.b32.xlu0 %v2083, 16
        %v2906 = vpop.permute.xlu0 %2905
        %2907 = vrot.lane.b32.xlu0 %v2106, 16
        %v2908 = vpop.permute.xlu0 %2907
        %2909 = vrot.lane.b32.xlu0 %v2108, 16
        %v2910 = vpop.permute.xlu0 %2909
        %2911 = vrot.lane.b32.xlu0 %v2131, 16
        %v2912 = vpop.permute.xlu0 %2911
        %2913 = vrot.lane.b32.xlu0 %v2133, 16
        %v2914 = vpop.permute.xlu0 %2913
        %2915 = vrot.lane.b32.xlu0 %v2156, 16
        %v2916 = vpop.permute.xlu0 %2915
        %2917 = vrot.lane.b32.xlu0 %v2158, 16
        %v2918 = vpop.permute.xlu0 %2917
        %2919 = vrot.lane.b32.xlu0 %v2181, 16
        %v2920 = vpop.permute.xlu0 %2919
        %2921 = vrot.lane.b32.xlu0 %v2183, 16
        %v2922 = vpop.permute.xlu0 %2921
        %2923 = vrot.lane.b32.xlu0 %v2206, 16
        %v2924 = vpop.permute.xlu0 %2923
        %2925 = vrot.lane.b32.xlu0 %v2208, 16
        %v2926 = vpop.permute.xlu0 %2925
        %2927 = vrot.lane.b32.xlu0 %v2231, 16
        %v2928 = vpop.permute.xlu0 %2927
        %2929 = vrot.lane.b32.xlu0 %v2233, 16
        %v2930 = vpop.permute.xlu0 %2929
        %2963 = vrot.lane.b32.xlu0 %v2640, 24
        %v2964 = vpop.permute.xlu0 %2963
        %2965 = vrot.lane.b32.xlu0 %v2642, 24
        %v2966 = vpop.permute.xlu0 %2965
        %2967 = vrot.lane.b32.xlu0 %v2665, 24
        %v2968 = vpop.permute.xlu0 %2967
        %2969 = vrot.lane.b32.xlu0 %v2667, 24
        %v2970 = vpop.permute.xlu0 %2969
        %2971 = vrot.lane.b32.xlu0 %v2690, 24
        %v2972 = vpop.permute.xlu0 %2971
        %2973 = vrot.lane.b32.xlu0 %v2692, 24
        %v2974 = vpop.permute.xlu0 %2973
        %2975 = vrot.lane.b32.xlu0 %v2715, 24
        %v2976 = vpop.permute.xlu0 %2975
        %2977 = vrot.lane.b32.xlu0 %v2717, 24
        %v2978 = vpop.permute.xlu0 %2977
        %2979 = vrot.lane.b32.xlu0 %v2740, 24
        %v2980 = vpop.permute.xlu0 %2979
        %2981 = vrot.lane.b32.xlu0 %v2742, 24
        %v2982 = vpop.permute.xlu0 %2981
        %2983 = vrot.lane.b32.xlu0 %v2765, 24
        %v2984 = vpop.permute.xlu0 %2983
        %2985 = vrot.lane.b32.xlu0 %v2767, 24
        %v2986 = vpop.permute.xlu0 %2985
        %2987 = vrot.lane.b32.xlu0 %v2790, 24
        %v2988 = vpop.permute.xlu0 %2987
        %2989 = vrot.lane.b32.xlu0 %v2792, 24
        %v2990 = vpop.permute.xlu0 %2989
        %2991 = vrot.lane.b32.xlu0 %v2815, 24
        %v2992 = vpop.permute.xlu0 %2991
        %2993 = vrot.lane.b32.xlu0 %v2817, 24
        %v2994 = vpop.permute.xlu0 %2993
        %v3011 = vsel %vm464, %v888, %v2836
        %v3012 = vsel %vm464, %v890, %v2838
        %v3013 = vsel %vm464, %v913, %v2840
        %v3014 = vsel %vm464, %v915, %v2842
        %v3015 = vsel %vm464, %v938, %v2844
        %v3016 = vsel %vm464, %v940, %v2846
        %v3017 = vsel %vm464, %v963, %v2848
        %v3018 = vsel %vm464, %v965, %v2850
        %v3019 = vsel %vm464, %v988, %v2852
        %v3020 = vsel %vm464, %v990, %v2854
        %v3021 = vsel %vm464, %v1013, %v2856
        %v3022 = vsel %vm464, %v1015, %v2858
        %v3023 = vsel %vm464, %v1038, %v2860
        %v3024 = vsel %vm464, %v1040, %v2862
        %v3025 = vsel %vm464, %v1063, %v2864
        %v3026 = vsel %vm464, %v1065, %v2866
        %v3027 = vsel %vm674, %v3011, %v2900
        %v3028 = vsel %vm674, %v3012, %v2902
        %v3029 = vsel %vm674, %v3013, %v2904
        %v3030 = vsel %vm674, %v3014, %v2906
        %v3031 = vsel %vm674, %v3015, %v2908
        %v3032 = vsel %vm674, %v3016, %v2910
        %v3033 = vsel %vm674, %v3017, %v2912
        %v3034 = vsel %vm674, %v3018, %v2914
        %v3035 = vsel %vm674, %v3019, %v2916
        %v3036 = vsel %vm674, %v3020, %v2918
        %v3037 = vsel %vm674, %v3021, %v2920
        %v3038 = vsel %vm674, %v3022, %v2922
        %v3039 = vsel %vm674, %v3023, %v2924
        %v3040 = vsel %vm674, %v3024, %v2926
        %v3041 = vsel %vm674, %v3025, %v2928
        %v3042 = vsel %vm674, %v3026, %v2930
        %vm3043 = vcmask 195584
        %v3044 = vsel %vm3043, %v3027, %v2964
        %v3045 = vsel %vm3043, %v3028, %v2966
        %v3046 = vsel %vm3043, %v3029, %v2968
        %v3047 = vsel %vm3043, %v3030, %v2970
        %v3048 = vsel %vm3043, %v3031, %v2972
        %v3049 = vsel %vm3043, %v3032, %v2974
        %v3050 = vsel %vm3043, %v3033, %v2976
        %v3051 = vsel %vm3043, %v3034, %v2978
        %v3052 = vsel %vm3043, %v3035, %v2980
        %v3053 = vsel %vm3043, %v3036, %v2982
        %v3054 = vsel %vm3043, %v3037, %v2984
        %v3055 = vsel %vm3043, %v3038, %v2986
        %v3056 = vsel %vm3043, %v3039, %v2988
        %v3057 = vsel %vm3043, %v3040, %v2990
        %v3058 = vsel %vm3043, %v3041, %v2992
        %v3059 = vsel %vm3043, %v3042, %v2994
        %v3060 = vpack.c.bf16 %v3045, %v3044
        %v3061 = vpack.c.bf16 %v3047, %v3046
        %v3062 = vpack.c.bf16 %v3049, %v3048
        %v3063 = vpack.c.bf16 %v3051, %v3050
        %v3064 = vpack.c.bf16 %v3053, %v3052
        %v3065 = vpack.c.bf16 %v3055, %v3054
        %v3066 = vpack.c.bf16 %v3057, %v3056
        %v3067 = vpack.c.bf16 %v3059, %v3058
        %v3068 = vld [vmem:[%s3] sm:$0xf]
        %v3069 = vld [vmem:[%s3 + $0x4] sm:$0xf]
        %v3070 = vld [vmem:[%s3 + $0x8] sm:$0xf]
        %v3071 = vld [vmem:[%s3 + $0xc] sm:$0xf]
        %v3072 = vld [vmem:[%s4] sm:$0x1]
        %v3074 = vperm.slane %v3072, 0
        %v3080 = vunpack.c.l.b16 %v3068
        %v3081 = vunpack.c.l.b16 %v3069
        %v3082 = vunpack.c.l.b16 %v3070
        %v3083 = vunpack.c.l.b16 %v3071
        %v3084 = vpack.c.b16 %v3081, %v3080
        %v3085 = vpack.c.b16 %v3083, %v3082
        %v3089 = vsel %vm367, %v3060, 0
        %v3092 = vsel %vm367, %v3061, 0
        %v3095 = vsel %vm367, %v3062, 0
        %v3098 = vsel %vm367, %v3063, 0
        %v3101 = vsel %vm367, %v3064, 0
        %v3104 = vsel %vm367, %v3065, 0
        %v3107 = vsel %vm367, %v3066, 0
        %v3110 = vsel %vm367, %v3067, 0
        %3112 = vmatpush.bf16.msra.mxu0 0
        %3113 = vmatpush.bf16.msra.mxu0 0
        %3114 = vmatpush.bf16.msra.mxu0 0
        %3115 = vmatpush.bf16.msra.mxu0 0
        %3116 = vmatpush.bf16.msra.mxu0 0
        %3117 = vmatpush.bf16.msra.mxu0 0
        %3118 = vmatpush.bf16.msra.mxu0 %v3085
        %3119 = vmatpush.bf16.msra.mxu0 %v3084
        %3120 = vmatmul.bf16.gmra.mxu0 %v3089
        %v3121 = vpop.f32.mrf.mxu0
        %v3122 = vadd.f32 %v3074, %v3121
        %v3123 = vpop.f32.mrf.mxu0
        %v3124 = vadd.f32 %v3074, %v3123
        %3125 = vmatmul.bf16.gmra.mxu0 %v3092
        %v3126 = vpop.f32.mrf.mxu0
        %v3127 = vadd.f32 %v3074, %v3126
        %v3128 = vpop.f32.mrf.mxu0
        %v3129 = vadd.f32 %v3074, %v3128
        %3130 = vmatmul.bf16.gmra.mxu0 %v3095
        %v3131 = vpop.f32.mrf.mxu0
        %v3132 = vadd.f32 %v3074, %v3131
        %v3133 = vpop.f32.mrf.mxu0
        %v3134 = vadd.f32 %v3074, %v3133
        %3135 = vmatmul.bf16.gmra.mxu0 %v3098
        %v3136 = vpop.f32.mrf.mxu0
        %v3137 = vadd.f32 %v3074, %v3136
        %v3138 = vpop.f32.mrf.mxu0
        %v3139 = vadd.f32 %v3074, %v3138
        %3140 = vmatmul.bf16.gmra.mxu0 %v3101
        %v3141 = vpop.f32.mrf.mxu0
        %v3142 = vadd.f32 %v3074, %v3141
        %v3143 = vpop.f32.mrf.mxu0
        %v3144 = vadd.f32 %v3074, %v3143
        %3145 = vmatmul.bf16.gmra.mxu0 %v3104
        %v3146 = vpop.f32.mrf.mxu0
        %v3147 = vadd.f32 %v3074, %v3146
        %v3148 = vpop.f32.mrf.mxu0
        %v3149 = vadd.f32 %v3074, %v3148
        %3150 = vmatmul.bf16.gmra.mxu0 %v3107
        %v3151 = vpop.f32.mrf.mxu0
        %v3152 = vadd.f32 %v3074, %v3151
        %v3153 = vpop.f32.mrf.mxu0
        %v3154 = vadd.f32 %v3074, %v3153
        %3155 = vmatmul.bf16.gmra.mxu0 %v3110
        %v3156 = vpop.f32.mrf.mxu0
        %v3157 = vadd.f32 %v3074, %v3156
        %v3158 = vpop.f32.mrf.mxu0
        %v3159 = vadd.f32 %v3074, %v3158
        %3160 = vdwg.mxu0
        %v3161 = vadd.f32 %v3122, %v323
        %v3162 = vadd.f32 %v3124, %v324
        %v3163 = vadd.f32 %v3127, %v325
        %v3164 = vadd.f32 %v3129, %v326
        %v3165 = vadd.f32 %v3132, %v327
        %v3166 = vadd.f32 %v3134, %v328
        %v3167 = vadd.f32 %v3137, %v329
        %v3168 = vadd.f32 %v3139, %v330
        %v3169 = vadd.f32 %v3142, %v331
        %v3170 = vadd.f32 %v3144, %v332
        %v3171 = vadd.f32 %v3147, %v333
        %v3172 = vadd.f32 %v3149, %v334
        %v3173 = vadd.f32 %v3152, %v335
        %v3174 = vadd.f32 %v3154, %v336
        %v3175 = vadd.f32 %v3157, %v337
        %v3176 = vadd.f32 %v3159, %v338
        %v3177 = vsel %vm367, %v3161, 0.0
        %3178 = vadd.xlane.f32.xlu0 %v3177
        %v3179 = vpop.xlane.xlu0 %3178
        %v3180 = vsel %vm367, %v3162, 0.0
        %3181 = vadd.xlane.f32.xlu0 %v3180
        %v3182 = vpop.xlane.xlu0 %3181
        %v3183 = vsel %vm367, %v3163, 0.0
        %3184 = vadd.xlane.f32.xlu0 %v3183
        %v3185 = vpop.xlane.xlu0 %3184
        %v3186 = vsel %vm367, %v3164, 0.0
        %3187 = vadd.xlane.f32.xlu0 %v3186
        %v3188 = vpop.xlane.xlu0 %3187
        %v3189 = vsel %vm367, %v3165, 0.0
        %3190 = vadd.xlane.f32.xlu0 %v3189
        %v3191 = vpop.xlane.xlu0 %3190
        %v3192 = vsel %vm367, %v3166, 0.0
        %3193 = vadd.xlane.f32.xlu0 %v3192
        %v3194 = vpop.xlane.xlu0 %3193
        %v3195 = vsel %vm367, %v3167, 0.0
        %3196 = vadd.xlane.f32.xlu0 %v3195
        %v3197 = vpop.xlane.xlu0 %3196
        %v3198 = vsel %vm367, %v3168, 0.0
        %3199 = vadd.xlane.f32.xlu0 %v3198
        %v3200 = vpop.xlane.xlu0 %3199
        %v3201 = vsel %vm367, %v3169, 0.0
        %3202 = vadd.xlane.f32.xlu0 %v3201
        %v3203 = vpop.xlane.xlu0 %3202
        %v3204 = vsel %vm367, %v3170, 0.0
        %3205 = vadd.xlane.f32.xlu0 %v3204
        %v3206 = vpop.xlane.xlu0 %3205
        %v3207 = vsel %vm367, %v3171, 0.0
        %3208 = vadd.xlane.f32.xlu0 %v3207
        %v3209 = vpop.xlane.xlu0 %3208
        %v3210 = vsel %vm367, %v3172, 0.0
        %3211 = vadd.xlane.f32.xlu0 %v3210
        %v3212 = vpop.xlane.xlu0 %3211
        %v3213 = vsel %vm367, %v3173, 0.0
        %3214 = vadd.xlane.f32.xlu0 %v3213
        %v3215 = vpop.xlane.xlu0 %3214
        %v3216 = vsel %vm367, %v3174, 0.0
        %3217 = vadd.xlane.f32.xlu0 %v3216
        %v3218 = vpop.xlane.xlu0 %3217
        %v3219 = vsel %vm367, %v3175, 0.0
        %3220 = vadd.xlane.f32.xlu0 %v3219
        %v3221 = vpop.xlane.xlu0 %3220
        %v3222 = vsel %vm367, %v3176, 0.0
        %3223 = vadd.xlane.f32.xlu0 %v3222
        %v3224 = vpop.xlane.xlu0 %3223
        %v3225 = vrcp.pop 32.0
        %v3226 = vmul.f32 32.0, %v3225
        %v3227 = vsub.f32 1.0, %v3226
        %v3228 = vmul.f32 %v3225, %v3227
        %v3229 = vadd.f32 %v3225, %v3228
        %vm3230 = vweird.f32 %v3225
        %v3231 = vsel %vm3230, %v3225, %v3229
        %v3232 = vmul.f32 %v3179, %v3231
        %v3233 = vmul.f32 %v3182, %v3231
        %v3234 = vmul.f32 %v3185, %v3231
        %v3235 = vmul.f32 %v3188, %v3231
        %v3236 = vmul.f32 %v3191, %v3231
        %v3237 = vmul.f32 %v3194, %v3231
        %v3238 = vmul.f32 %v3197, %v3231
        %v3239 = vmul.f32 %v3200, %v3231
        %v3240 = vmul.f32 %v3203, %v3231
        %v3241 = vmul.f32 %v3206, %v3231
        %v3242 = vmul.f32 %v3209, %v3231
        %v3243 = vmul.f32 %v3212, %v3231
        %v3244 = vmul.f32 %v3215, %v3231
        %v3245 = vmul.f32 %v3218, %v3231
        %v3246 = vmul.f32 %v3221, %v3231
        %v3247 = vmul.f32 %v3224, %v3231
        %v3248 = vsub.f32 %v3161, %v3232
        %v3249 = vsub.f32 %v3162, %v3233
        %v3250 = vsub.f32 %v3163, %v3234
        %v3251 = vsub.f32 %v3164, %v3235
        %v3252 = vsub.f32 %v3165, %v3236
        %v3253 = vsub.f32 %v3166, %v3237
        %v3254 = vsub.f32 %v3167, %v3238
        %v3255 = vsub.f32 %v3168, %v3239
        %v3256 = vsub.f32 %v3169, %v3240
        %v3257 = vsub.f32 %v3170, %v3241
        %v3258 = vsub.f32 %v3171, %v3242
        %v3259 = vsub.f32 %v3172, %v3243
        %v3260 = vsub.f32 %v3173, %v3244
        %v3261 = vsub.f32 %v3174, %v3245
        %v3262 = vsub.f32 %v3175, %v3246
        %v3263 = vsub.f32 %v3176, %v3247
        %v3264 = vmul.f32 %v3248, %v3248
        %v3265 = vmul.f32 %v3249, %v3249
        %v3266 = vmul.f32 %v3250, %v3250
        %v3267 = vmul.f32 %v3251, %v3251
        %v3268 = vmul.f32 %v3252, %v3252
        %v3269 = vmul.f32 %v3253, %v3253
        %v3270 = vmul.f32 %v3254, %v3254
        %v3271 = vmul.f32 %v3255, %v3255
        %v3272 = vmul.f32 %v3256, %v3256
        %v3273 = vmul.f32 %v3257, %v3257
        %v3274 = vmul.f32 %v3258, %v3258
        %v3275 = vmul.f32 %v3259, %v3259
        %v3276 = vmul.f32 %v3260, %v3260
        %v3277 = vmul.f32 %v3261, %v3261
        %v3278 = vmul.f32 %v3262, %v3262
        %v3279 = vmul.f32 %v3263, %v3263
        %v3280 = vsel %vm367, %v3264, 0.0
        %3281 = vadd.xlane.f32.xlu0 %v3280
        %v3282 = vpop.xlane.xlu0 %3281
        %v3283 = vsel %vm367, %v3265, 0.0
        %3284 = vadd.xlane.f32.xlu0 %v3283
        %v3285 = vpop.xlane.xlu0 %3284
        %v3286 = vsel %vm367, %v3266, 0.0
        %3287 = vadd.xlane.f32.xlu0 %v3286
        %v3288 = vpop.xlane.xlu0 %3287
        %v3289 = vsel %vm367, %v3267, 0.0
        %3290 = vadd.xlane.f32.xlu0 %v3289
        %v3291 = vpop.xlane.xlu0 %3290
        %v3292 = vsel %vm367, %v3268, 0.0
        %3293 = vadd.xlane.f32.xlu0 %v3292
        %v3294 = vpop.xlane.xlu0 %3293
        %v3295 = vsel %vm367, %v3269, 0.0
        %3296 = vadd.xlane.f32.xlu0 %v3295
        %v3297 = vpop.xlane.xlu0 %3296
        %v3298 = vsel %vm367, %v3270, 0.0
        %3299 = vadd.xlane.f32.xlu0 %v3298
        %v3300 = vpop.xlane.xlu0 %3299
        %v3301 = vsel %vm367, %v3271, 0.0
        %3302 = vadd.xlane.f32.xlu0 %v3301
        %v3303 = vpop.xlane.xlu0 %3302
        %v3304 = vsel %vm367, %v3272, 0.0
        %3305 = vadd.xlane.f32.xlu0 %v3304
        %v3306 = vpop.xlane.xlu0 %3305
        %v3307 = vsel %vm367, %v3273, 0.0
        %3308 = vadd.xlane.f32.xlu0 %v3307
        %v3309 = vpop.xlane.xlu0 %3308
        %v3310 = vsel %vm367, %v3274, 0.0
        %3311 = vadd.xlane.f32.xlu0 %v3310
        %v3312 = vpop.xlane.xlu0 %3311
        %v3313 = vsel %vm367, %v3275, 0.0
        %3314 = vadd.xlane.f32.xlu0 %v3313
        %v3315 = vpop.xlane.xlu0 %3314
        %v3316 = vsel %vm367, %v3276, 0.0
        %3317 = vadd.xlane.f32.xlu0 %v3316
        %v3318 = vpop.xlane.xlu0 %3317
        %v3319 = vsel %vm367, %v3277, 0.0
        %3320 = vadd.xlane.f32.xlu0 %v3319
        %v3321 = vpop.xlane.xlu0 %3320
        %v3322 = vsel %vm367, %v3278, 0.0
        %3323 = vadd.xlane.f32.xlu0 %v3322
        %v3324 = vpop.xlane.xlu0 %3323
        %v3325 = vsel %vm367, %v3279, 0.0
        %3326 = vadd.xlane.f32.xlu0 %v3325
        %v3327 = vpop.xlane.xlu0 %3326
        %v3328 = vmul.f32 %v3282, %v3231
        %v3329 = vmul.f32 %v3285, %v3231
        %v3330 = vmul.f32 %v3288, %v3231
        %v3331 = vmul.f32 %v3291, %v3231
        %v3332 = vmul.f32 %v3294, %v3231
        %v3333 = vmul.f32 %v3297, %v3231
        %v3334 = vmul.f32 %v3300, %v3231
        %v3335 = vmul.f32 %v3303, %v3231
        %v3336 = vmul.f32 %v3306, %v3231
        %v3337 = vmul.f32 %v3309, %v3231
        %v3338 = vmul.f32 %v3312, %v3231
        %v3339 = vmul.f32 %v3315, %v3231
        %v3340 = vmul.f32 %v3318, %v3231
        %v3341 = vmul.f32 %v3321, %v3231
        %v3342 = vmul.f32 %v3324, %v3231
        %v3343 = vmul.f32 %v3327, %v3231
        %v3344 = vadd.f32 %v3328, 1e-05
        %v3345 = vadd.f32 %v3329, 1e-05
        %v3346 = vadd.f32 %v3330, 1e-05
        %v3347 = vadd.f32 %v3331, 1e-05
        %v3348 = vadd.f32 %v3332, 1e-05
        %v3349 = vadd.f32 %v3333, 1e-05
        %v3350 = vadd.f32 %v3334, 1e-05
        %v3351 = vadd.f32 %v3335, 1e-05
        %v3352 = vadd.f32 %v3336, 1e-05
        %v3353 = vadd.f32 %v3337, 1e-05
        %v3354 = vadd.f32 %v3338, 1e-05
        %v3355 = vadd.f32 %v3339, 1e-05
        %v3356 = vadd.f32 %v3340, 1e-05
        %v3357 = vadd.f32 %v3341, 1e-05
        %v3358 = vadd.f32 %v3342, 1e-05
        %v3359 = vadd.f32 %v3343, 1e-05
        %v3360 = vrsqrt.pop %v3344
        %v3361 = vmul.f32 %v3360, %v3344
        %v3362 = vmul.f32 %v3361, %v3360
        %v3363 = vmul.f32 0.5, %v3362
        %v3364 = vsub.f32 1.5, %v3363
        %v3365 = vmul.f32 %v3360, %v3364
        %vm3366 = vweird.f32 %v3344
        %vm3367 = vweird.f32 %v3360
        %vm3368 = vmor %vm3366, %vm3367
        %v3369 = vsel %vm3368, %v3360, %v3365
        %v3370 = vrsqrt.pop %v3345
        %v3371 = vmul.f32 %v3370, %v3345
        %v3372 = vmul.f32 %v3371, %v3370
        %v3373 = vmul.f32 0.5, %v3372
        %v3374 = vsub.f32 1.5, %v3373
        %v3375 = vmul.f32 %v3370, %v3374
        %vm3376 = vweird.f32 %v3345
        %vm3377 = vweird.f32 %v3370
        %vm3378 = vmor %vm3376, %vm3377
        %v3379 = vsel %vm3378, %v3370, %v3375
        %v3380 = vrsqrt.pop %v3346
        %v3381 = vmul.f32 %v3380, %v3346
        %v3382 = vmul.f32 %v3381, %v3380
        %v3383 = vmul.f32 0.5, %v3382
        %v3384 = vsub.f32 1.5, %v3383
        %v3385 = vmul.f32 %v3380, %v3384
        %vm3386 = vweird.f32 %v3346
        %vm3387 = vweird.f32 %v3380
        %vm3388 = vmor %vm3386, %vm3387
        %v3389 = vsel %vm3388, %v3380, %v3385
        %v3390 = vrsqrt.pop %v3347
        %v3391 = vmul.f32 %v3390, %v3347
        %v3392 = vmul.f32 %v3391, %v3390
        %v3393 = vmul.f32 0.5, %v3392
        %v3394 = vsub.f32 1.5, %v3393
        %v3395 = vmul.f32 %v3390, %v3394
        %vm3396 = vweird.f32 %v3347
        %vm3397 = vweird.f32 %v3390
        %vm3398 = vmor %vm3396, %vm3397
        %v3399 = vsel %vm3398, %v3390, %v3395
        %v3400 = vrsqrt.pop %v3348
        %v3401 = vmul.f32 %v3400, %v3348
        %v3402 = vmul.f32 %v3401, %v3400
        %v3403 = vmul.f32 0.5, %v3402
        %v3404 = vsub.f32 1.5, %v3403
        %v3405 = vmul.f32 %v3400, %v3404
        %vm3406 = vweird.f32 %v3348
        %vm3407 = vweird.f32 %v3400
        %vm3408 = vmor %vm3406, %vm3407
        %v3409 = vsel %vm3408, %v3400, %v3405
        %v3410 = vrsqrt.pop %v3349
        %v3411 = vmul.f32 %v3410, %v3349
        %v3412 = vmul.f32 %v3411, %v3410
        %v3413 = vmul.f32 0.5, %v3412
        %v3414 = vsub.f32 1.5, %v3413
        %v3415 = vmul.f32 %v3410, %v3414
        %vm3416 = vweird.f32 %v3349
        %vm3417 = vweird.f32 %v3410
        %vm3418 = vmor %vm3416, %vm3417
        %v3419 = vsel %vm3418, %v3410, %v3415
        %v3420 = vrsqrt.pop %v3350
        %v3421 = vmul.f32 %v3420, %v3350
        %v3422 = vmul.f32 %v3421, %v3420
        %v3423 = vmul.f32 0.5, %v3422
        %v3424 = vsub.f32 1.5, %v3423
        %v3425 = vmul.f32 %v3420, %v3424
        %vm3426 = vweird.f32 %v3350
        %vm3427 = vweird.f32 %v3420
        %vm3428 = vmor %vm3426, %vm3427
        %v3429 = vsel %vm3428, %v3420, %v3425
        %v3430 = vrsqrt.pop %v3351
        %v3431 = vmul.f32 %v3430, %v3351
        %v3432 = vmul.f32 %v3431, %v3430
        %v3433 = vmul.f32 0.5, %v3432
        %v3434 = vsub.f32 1.5, %v3433
        %v3435 = vmul.f32 %v3430, %v3434
        %vm3436 = vweird.f32 %v3351
        %vm3437 = vweird.f32 %v3430
        %vm3438 = vmor %vm3436, %vm3437
        %v3439 = vsel %vm3438, %v3430, %v3435
        %v3440 = vrsqrt.pop %v3352
        %v3441 = vmul.f32 %v3440, %v3352
        %v3442 = vmul.f32 %v3441, %v3440
        %v3443 = vmul.f32 0.5, %v3442
        %v3444 = vsub.f32 1.5, %v3443
        %v3445 = vmul.f32 %v3440, %v3444
        %vm3446 = vweird.f32 %v3352
        %vm3447 = vweird.f32 %v3440
        %vm3448 = vmor %vm3446, %vm3447
        %v3449 = vsel %vm3448, %v3440, %v3445
        %v3450 = vrsqrt.pop %v3353
        %v3451 = vmul.f32 %v3450, %v3353
        %v3452 = vmul.f32 %v3451, %v3450
        %v3453 = vmul.f32 0.5, %v3452
        %v3454 = vsub.f32 1.5, %v3453
        %v3455 = vmul.f32 %v3450, %v3454
        %vm3456 = vweird.f32 %v3353
        %vm3457 = vweird.f32 %v3450
        %vm3458 = vmor %vm3456, %vm3457
        %v3459 = vsel %vm3458, %v3450, %v3455
        %v3460 = vrsqrt.pop %v3354
        %v3461 = vmul.f32 %v3460, %v3354
        %v3462 = vmul.f32 %v3461, %v3460
        %v3463 = vmul.f32 0.5, %v3462
        %v3464 = vsub.f32 1.5, %v3463
        %v3465 = vmul.f32 %v3460, %v3464
        %vm3466 = vweird.f32 %v3354
        %vm3467 = vweird.f32 %v3460
        %vm3468 = vmor %vm3466, %vm3467
        %v3469 = vsel %vm3468, %v3460, %v3465
        %v3470 = vrsqrt.pop %v3355
        %v3471 = vmul.f32 %v3470, %v3355
        %v3472 = vmul.f32 %v3471, %v3470
        %v3473 = vmul.f32 0.5, %v3472
        %v3474 = vsub.f32 1.5, %v3473
        %v3475 = vmul.f32 %v3470, %v3474
        %vm3476 = vweird.f32 %v3355
        %vm3477 = vweird.f32 %v3470
        %vm3478 = vmor %vm3476, %vm3477
        %v3479 = vsel %vm3478, %v3470, %v3475
        %v3480 = vrsqrt.pop %v3356
        %v3481 = vmul.f32 %v3480, %v3356
        %v3482 = vmul.f32 %v3481, %v3480
        %v3483 = vmul.f32 0.5, %v3482
        %v3484 = vsub.f32 1.5, %v3483
        %v3485 = vmul.f32 %v3480, %v3484
        %vm3486 = vweird.f32 %v3356
        %vm3487 = vweird.f32 %v3480
        %vm3488 = vmor %vm3486, %vm3487
        %v3489 = vsel %vm3488, %v3480, %v3485
        %v3490 = vrsqrt.pop %v3357
        %v3491 = vmul.f32 %v3490, %v3357
        %v3492 = vmul.f32 %v3491, %v3490
        %v3493 = vmul.f32 0.5, %v3492
        %v3494 = vsub.f32 1.5, %v3493
        %v3495 = vmul.f32 %v3490, %v3494
        %vm3496 = vweird.f32 %v3357
        %vm3497 = vweird.f32 %v3490
        %vm3498 = vmor %vm3496, %vm3497
        %v3499 = vsel %vm3498, %v3490, %v3495
        %v3500 = vrsqrt.pop %v3358
        %v3501 = vmul.f32 %v3500, %v3358
        %v3502 = vmul.f32 %v3501, %v3500
        %v3503 = vmul.f32 0.5, %v3502
        %v3504 = vsub.f32 1.5, %v3503
        %v3505 = vmul.f32 %v3500, %v3504
        %vm3506 = vweird.f32 %v3358
        %vm3507 = vweird.f32 %v3500
        %vm3508 = vmor %vm3506, %vm3507
        %v3509 = vsel %vm3508, %v3500, %v3505
        %v3510 = vrsqrt.pop %v3359
        %v3511 = vmul.f32 %v3510, %v3359
        %v3512 = vmul.f32 %v3511, %v3510
        %v3513 = vmul.f32 0.5, %v3512
        %v3514 = vsub.f32 1.5, %v3513
        %v3515 = vmul.f32 %v3510, %v3514
        %vm3516 = vweird.f32 %v3359
        %vm3517 = vweird.f32 %v3510
        %vm3518 = vmor %vm3516, %vm3517
        %v3519 = vsel %vm3518, %v3510, %v3515
        %v3520 = vmul.f32 %v3248, %v3369
        %v3521 = vmul.f32 %v3249, %v3379
        %v3522 = vmul.f32 %v3250, %v3389
        %v3523 = vmul.f32 %v3251, %v3399
        %v3524 = vmul.f32 %v3252, %v3409
        %v3525 = vmul.f32 %v3253, %v3419
        %v3526 = vmul.f32 %v3254, %v3429
        %v3527 = vmul.f32 %v3255, %v3439
        %v3528 = vmul.f32 %v3256, %v3449
        %v3529 = vmul.f32 %v3257, %v3459
        %v3530 = vmul.f32 %v3258, %v3469
        %v3531 = vmul.f32 %v3259, %v3479
        %v3532 = vmul.f32 %v3260, %v3489
        %v3533 = vmul.f32 %v3261, %v3499
        %v3534 = vmul.f32 %v3262, %v3509
        %v3535 = vmul.f32 %v3263, %v3519
        %v3536 = vld [vmem:[%s5] sm:$0x1]
        %v3538 = vperm.slane %v3536, 0
        %v3540 = vmul.f32 %v3520, %v3538
        %v3541 = vmul.f32 %v3521, %v3538
        %v3542 = vmul.f32 %v3522, %v3538
        %v3543 = vmul.f32 %v3523, %v3538
        %v3544 = vmul.f32 %v3524, %v3538
        %v3545 = vmul.f32 %v3525, %v3538
        %v3546 = vmul.f32 %v3526, %v3538
        %v3547 = vmul.f32 %v3527, %v3538
        %v3548 = vmul.f32 %v3528, %v3538
        %v3549 = vmul.f32 %v3529, %v3538
        %v3550 = vmul.f32 %v3530, %v3538
        %v3551 = vmul.f32 %v3531, %v3538
        %v3552 = vmul.f32 %v3532, %v3538
        %v3553 = vmul.f32 %v3533, %v3538
        %v3554 = vmul.f32 %v3534, %v3538
        %v3555 = vmul.f32 %v3535, %v3538
        %v3556 = vld [vmem:[%s6] sm:$0x1]
        %v3558 = vperm.slane %v3556, 0
        %v3560 = vadd.f32 %v3540, %v3558
        %v3561 = vadd.f32 %v3541, %v3558
        %v3562 = vadd.f32 %v3542, %v3558
        %v3563 = vadd.f32 %v3543, %v3558
        %v3564 = vadd.f32 %v3544, %v3558
        %v3565 = vadd.f32 %v3545, %v3558
        %v3566 = vadd.f32 %v3546, %v3558
        %v3567 = vadd.f32 %v3547, %v3558
        %v3568 = vadd.f32 %v3548, %v3558
        %v3569 = vadd.f32 %v3549, %v3558
        %v3570 = vadd.f32 %v3550, %v3558
        %v3571 = vadd.f32 %v3551, %v3558
        %v3572 = vadd.f32 %v3552, %v3558
        %v3573 = vadd.f32 %v3553, %v3558
        %v3574 = vadd.f32 %v3554, %v3558
        %v3575 = vadd.f32 %v3555, %v3558
        %3576 = vxpose.xlu0.b32.start [1/16] %v3560, 128
        %3577 = vxpose.xlu0.b32.cont [2/16] %v3561, 128
        %3578 = vxpose.xlu0.b32.cont [3/16] %v3562, 128
        %3579 = vxpose.xlu0.b32.cont [4/16] %v3563, 128
        %3580 = vxpose.xlu0.b32.cont [5/16] %v3564, 128
        %3581 = vxpose.xlu0.b32.cont [6/16] %v3565, 128
        %3582 = vxpose.xlu0.b32.cont [7/16] %v3566, 128
        %3583 = vxpose.xlu0.b32.cont [8/16] %v3567, 128
        %3584 = vxpose.xlu0.b32.cont [9/16] %v3568, 128
        %3585 = vxpose.xlu0.b32.cont [10/16] %v3569, 128
        %3586 = vxpose.xlu0.b32.cont [11/16] %v3570, 128
        %3587 = vxpose.xlu0.b32.cont [12/16] %v3571, 128
        %3588 = vxpose.xlu0.b32.cont [13/16] %v3572, 128
        %3589 = vxpose.xlu0.b32.cont [14/16] %v3573, 128
        %3590 = vxpose.xlu0.b32.cont [15/16] %v3574, 128
        %3591 = vxpose.xlu0.b32.end [16/16] %v3575, 128
        %v3592 = vpop.trf.xlu0
        %v3593 = vpop.trf.xlu0
        %v3594 = vpop.trf.xlu0
        %v3595 = vpop.trf.xlu0
        %v3596 = vpop.trf.xlu0
        %v3597 = vpop.trf.xlu0
        %v3598 = vpop.trf.xlu0
        %v3599 = vpop.trf.xlu0
        %v3600 = vpop.trf.xlu0
        %v3601 = vpop.trf.xlu0
        %v3602 = vpop.trf.xlu0
        %v3603 = vpop.trf.xlu0
        %v3604 = vpop.trf.xlu0
        %v3605 = vpop.trf.xlu0
        %v3606 = vpop.trf.xlu0
        %v3607 = vpop.trf.xlu0
        %3608 = vst [vmem:[%s293] sm:$0xff] %v3592
        %3609 = vst [vmem:[%s293 + $0x8] sm:$0xff] %v3593
        %3610 = vst [vmem:[%s293 + $0x10] sm:$0xff] %v3594
        %3611 = vst [vmem:[%s293 + $0x18] sm:$0xff] %v3595
        %s3612 = sand.u32 %s197, 1
        %s3613 = scalar_lea.sflag [#allocation3], %s3612
        %s3614 = sand.u32 %s197, 1
        %s3615 = smul.addr %s3614, 32
        %s3616 = scalar_lea.vmem [#allocation2], %s3615
        // Predicated region
        $region49: #{swin_attention_1d.1} parent=47 // pred_check
          %p3617 = pneg %p207
        $region50: #{swin_attention_1d.1} parent=47 // pred_check_branch
          %3619 = sbr.rel (%p3617) target = $region52
        $region51: #{swin_attention_1d.1} parent=47 // pred_region
          %3621 = vsyncadd %s3613, 0
          %s3622 = smul.addr %s25, 4
          %s3623 = sadd.s32 %s26, %s3622
          %s3624 = smul.addr %s3623, 8
          %s3625 = scalar_lea.hbm %s7, %s3624
          %s3626 = sshll.u32 %s3616, 4
          %s3627 = int_to_ptr.vmem [resolvable:$true] %s3626
          %s3628 = sshll.u32 %s3625, 4
          %s3629 = int_to_ptr.hbm [resolvable:$true] %s3628
          %3634 = dma.vmem_to_hbm [thread:$0]  %s3627, 512, %s3629, %s3613, 128, 128, 8
        $region52: #{swin_attention_1d.1} parent=47 // pred_fallthru
          _
      $region48: #{swin_attention_1d.1} parent=5 // pred_fallthru
        _
      %p3635 = scmp.le.s32.totalorder 2, %s16
      // Predicated region
      $region53: #{swin_attention_1d.1} parent=5 // pred_check
        %p3636 = pneg %p3635
      $region54: #{swin_attention_1d.1} parent=5 // pred_check_branch
        %3638 = sbr.rel (%p3636) target = $region56
      $region55: #{swin_attention_1d.1} parent=5 // pred_region
        %s3639 = ssub.s32 %s16, 2
        // Predicated region
        $region57: #{swin_attention_1d.1} parent=55 // pred_check
          %p3640 = pneg %p213
        $region58: #{swin_attention_1d.1} parent=55 // pred_check_branch
          %3642 = sbr.rel (%p3640) target = $region60
        $region59: #{swin_attention_1d.1} parent=55 // pred_region
          %s3643 = sand.u32 %s198, 1
          %s3644 = scalar_lea.sflag [#allocation3], %s3643
          %s3645 = sand.u32 %s198, 1
          %s3646 = smul.addr %s3645, 32
          %s3647 = scalar_lea.vmem [#allocation2], %s3646
          %3649 = dma.done %s3644, 512
        $region60: #{swin_attention_1d.1} parent=55 // pred_fallthru
          _
      $region56: #{swin_attention_1d.1} parent=5 // pred_fallthru
        _
    $region6: #{swin_attention_1d.1} parent=1 // loop_footer
      %s20 = sadd.s32 1, %s16
    $region7: #{swin_attention_1d.1} parent=1 // loop_footer_branch
      %15 = sbr.rel target = $region3
    $region8: #{swin_attention_1d.1} parent=1 // loop_exit
      _
    %3650 = vsyncpa [#allocation3], 1
    %s3651 = scalar_lea.sflag [#allocation3], 1
    %3652 = vsyncpa %s3651, 1

</llo_original>
